<compile_context>
chip_gen: v7x
topology: tpu7x:2x2x1
jax: 0.10.0
libtpu: 0.0.40
codegen_flags: <defaults>
</compile_context>

<pallas_src>
import functools
import math

import jax
import jax.numpy as jnp
from jax.experimental import pallas as pl
from jax.experimental.pallas import tpu as pltpu

KSIZE = 5                 # Conv2d kernel size in the module
LANE = 128                # TPU lane width
DT = jnp.bfloat16         # MXU operand dtype (accumulation is always f32)


def _round_up(x, m):
    return ((x + m - 1) // m) * m


def _pick_b_blk():
    """Images per conv grid step.  MXU M = B_BLK*H0 - 4*layer:
    ~128 rows saturate v5e's 4x128^2 MXU; ~256 rows feed v6e/v7x's 2x256^2."""
    try:
        kind = jax.devices()[0].device_kind.lower()
    except Exception:
        return 8
    if "v5 lite" in kind or "v5e" in kind or "v5lite" in kind:
        return 4
    return 8


# ----------------------------------------------------------------------------
# Kernel 1: fused conv stack (all conv layers), B_BLK images per grid step.
#
# Activation layout: a 2-D slab with image b occupying rows [b*H0, (b+1)*H0)
# (H0 = input height); columns are W*C (channels innermost), lane-padded.
# Each 5x5 valid conv is 5 shifted lane-dense matmuls against pre-baked banded
# (Toeplitz) weights B[dy] of shape (W_in*C_in_pad, W_out*C_out_pad):
#     out[j, :] = relu( sum_dy slab[j + dy, :] @ B[dy] )
# Rows that straddle an image boundary are computed but never read.
# ----------------------------------------------------------------------------
def _conv_stack_kernel(x_ref, *rest, n_conv, h0, b_blk, h_last):
    """x_ref : (b_blk*h0, K0_pad) bf16 input slab for this batch block.
    rest  : n_conv banded weights (KSIZE, K_pad, N_pad) bf16,
            o_ref (b_blk, h_last, N_last_pad) bf16,
            n_conv-1 bf16 VMEM scratch slabs (one per intermediate layer)."""
    b_refs = rest[:n_conv]
    o_ref = rest[n_conv]
    scratch = rest[n_conv + 1:]

    for i in range(n_conv):
        # Rows produced by layer i (shrinks by KSIZE-1 per layer).
        m_rows = b_blk * h0 - (KSIZE - 1) * (i + 1)
        src = x_ref if i == 0 else scratch[i - 1]

        acc = jnp.dot(src[0:m_rows, :], b_refs[i][0],
                      preferred_element_type=jnp.float32)
        for dy in range(1, KSIZE):          # 5 shifted lane-dense matmuls
            acc = acc + jnp.dot(src[dy:dy + m_rows, :], b_refs[i][dy],
                                preferred_element_type=jnp.float32)
        act = jnp.maximum(acc, 0.0)          # fused ReLU (f32 VPU)

        if i == n_conv - 1:
            # Scatter only the valid h_last rows of each image to the output.
            for b in range(b_blk):
                o_ref[b, :, :] = act[b * h0:b * h0 + h_last, :].astype(
                    o_ref.dtype)
        else:
            scratch[i][...] = act.astype(scratch[i].dtype)


def conv_stack(x2d, conv_banded, *, b_blk, h0, h_last):
    total_rows, k0_pad = x2d.shape
    n_img = total_rows // h0
    n_conv = len(conv_banded)
    n_last_pad = conv_banded[-1].shape[2]
    steps = n_img // b_blk

    flops = 0
    for i, bw in enumerate(conv_banded):
        m_rows = b_blk * h0 - (KSIZE - 1) * (i + 1)
        flops += 2 * steps * KSIZE * m_rows * bw.shape[1] * bw.shape[2]
    bytes_acc = (x2d.size + sum(bw.size for bw in conv_banded)
                 + n_img * h_last * n_last_pad) * 2

    kernel = functools.partial(_conv_stack_kernel, n_conv=n_conv, h0=h0,
                               b_blk=b_blk, h_last=h_last)
    return pl.pallas_call(
        kernel,
        out_shape=jax.ShapeDtypeStruct((n_img, h_last, n_last_pad), DT),
        grid=(steps,),
        in_specs=[pl.BlockSpec((b_blk * h0, k0_pad), lambda i: (i, 0))]
                + [pl.BlockSpec(bw.shape, lambda i: (0, 0, 0))
                   for bw in conv_banded],
        out_specs=pl.BlockSpec((b_blk, h_last, n_last_pad),
                               lambda i: (i, 0, 0)),
        scratch_shapes=[
            pltpu.VMEM((b_blk * h0 - (KSIZE - 1) * (j + 1),
                        conv_banded[j].shape[2]), DT)
            for j in range(n_conv - 1)],
        compiler_params=pltpu.CompilerParams(
            dimension_semantics=("parallel",)),
        cost_estimate=pl.CostEstimate(flops=flops, transcendentals=0,
                                      bytes_accessed=bytes_acc),
    )(x2d, *conv_banded)


# ----------------------------------------------------------------------------
# Kernel 2: fused linear stack (conv_to_lin -> hidden -> lin_to_output).
# Single step per batch block (w1 fits VMEM), grid over batch = "parallel".
# ----------------------------------------------------------------------------
def _lin_stack_kernel(x_ref, w1_ref, *rest, n_mid):
    """x_ref (NB, K1) bf16, w1_ref (K1, LWP) bf16, rest = n_mid hidden weights
    (LWP, LWP) bf16, wout (LWP, OUTP) bf16, o_ref (NB, OUTP) f32."""
    mid_refs = rest[:n_mid]
    wout_ref = rest[n_mid]
    o_ref = rest[n_mid + 1]

    h = jnp.maximum(
        jnp.dot(x_ref[...], w1_ref[...], preferred_element_type=jnp.float32),
        0.0).astype(DT)
    for m_ref in mid_refs:
        h = jnp.maximum(
            jnp.dot(h, m_ref[...], preferred_element_type=jnp.float32),
            0.0).astype(DT)
    o_ref[...] = jnp.dot(h, wout_ref[...],
                         preferred_element_type=jnp.float32).astype(o_ref.dtype)


def lin_stack(x_flat, w1, w_mid, w_out, *, nb):
    n, k1 = x_flat.shape
    lwp = w1.shape[1]
    outp = w_out.shape[1]
    n_mid = len(w_mid)

    flops = 2 * n * (k1 * lwp + n_mid * lwp * lwp + lwp * outp)
    bytes_acc = (x_flat.size + w1.size + sum(m.size for m in w_mid)
                 + w_out.size) * 2 + n * outp * 4

    kernel = functools.partial(_lin_stack_kernel, n_mid=n_mid)
    return pl.pallas_call(
        kernel,
        out_shape=jax.ShapeDtypeStruct((n, outp), jnp.float32),
        grid=(n // nb,),
        in_specs=[pl.BlockSpec((nb, k1), lambda i: (i, 0)),
                  pl.BlockSpec((k1, lwp), lambda i: (0, 0))]
                + [pl.BlockSpec((lwp, lwp), lambda i: (0, 0)) for _ in w_mid]
                + [pl.BlockSpec((lwp, outp), lambda i: (0, 0))],
        out_specs=pl.BlockSpec((nb, outp), lambda i: (i, 0)),
        compiler_params=pltpu.CompilerParams(
            dimension_semantics=("parallel",)),
        cost_estimate=pl.CostEstimate(flops=flops, transcendentals=0,
                                      bytes_accessed=bytes_acc),
    )(x_flat, w1, *w_mid, w_out)


# ----------------------------------------------------------------------------
# One-time weight re-layout (at init, never per-forward).
# ----------------------------------------------------------------------------
def _build_banded_conv_weight(w_torch, w_in, k_pad, n_pad):
    """(Cout, Cin, KH, KW) -> (KH, K_pad, N_pad) bf16 banded matrices with
    B[dy, w*Cin + c, xw*Cout + co] = w[co, c, dy, w - xw] for 0<=w-xw<KW,
    so sum_dy slab[dy:dy+M, :] @ B[dy] equals nn.Conv2d's 'valid' output."""
    cout, cin, kh, kw = w_torch.shape
    wo = w_in - kw + 1
    w_perm = jnp.transpose(w_torch, (2, 3, 1, 0))            # (KH,KW,Cin,Cout)
    widx = jnp.arange(w_in)[:, None]
    xidx = jnp.arange(wo)[None, :]
    dx = widx - xidx                                          # (W_in, Wo)
    valid = (dx >= 0) & (dx < kw)
    dxc = jnp.clip(dx, 0, kw - 1)
    b5 = w_perm[:, dxc]                                       # (KH,W_in,Wo,Cin,Cout)
    b5 = b5 * valid[None, :, :, None, None].astype(w_perm.dtype)
    b = jnp.transpose(b5, (0, 1, 3, 2, 4)).reshape(kh, w_in * cin, wo * cout)
    b = jnp.pad(b, ((0, 0), (0, k_pad - w_in * cin), (0, n_pad - wo * cout)))
    return b.astype(DT)


def init_params(key, conv_depth, conv_width, lin_depth, lin_width,
                *, in_ch=3, in_hw=32):
    """Returns (kernel_params, raw_torch_params).  Raw weights use PyTorch's
    default uniform(+-1/sqrt(fan_in)) init (bias=False, as in the module);
    kernel params are re-layouts of the same numbers."""
    n_conv = conv_depth - 1
    n_mid = lin_depth - 2
    ks = iter(jax.random.split(key, n_conv + n_mid + 2))

    def conv_w(k, cin, cout):
        bound = 1.0 / math.sqrt(cin * KSIZE * KSIZE)
        return jax.random.uniform(k, (cout, cin, KSIZE, KSIZE), jnp.float32,
                                  -bound, bound)

    def lin_w(k, din, dout):
        bound = 1.0 / math.sqrt(din)
        return jax.random.uniform(k, (dout, din), jnp.float32, -bound, bound)

    conv_raw = []
    cin = in_ch
    for _ in range(n_conv):
        conv_raw.append(conv_w(next(ks), cin, conv_width))
        cin = conv_width
    h_last = in_hw - n_conv * (KSIZE - 1)
    w_last = in_hw - n_conv * (KSIZE - 1)
    w1_raw = lin_w(next(ks), conv_width * h_last * w_last, lin_width)
    mid_raw = [lin_w(next(ks), lin_width, lin_width) for _ in range(n_mid)]
    wout_raw = lin_w(next(ks), lin_width, 1)

    # ---- conv weights -> banded lane-dense bf16 matrices ----
    conv_banded = []
    w_in = in_hw
    for wt in conv_raw:
        cout, cin_i, _, kw = wt.shape
        k_pad = _round_up(w_in * cin_i, LANE)
        wo = w_in - kw + 1
        n_pad = _round_up(wo * cout, LANE)
        conv_banded.append(_build_banded_conv_weight(wt, w_in, k_pad, n_pad))
        w_in = wo

    lwp = _round_up(lin_width, LANE)
    n_last_pad = conv_banded[-1].shape[2]

    # conv_to_lin: fold torch's (C,H,W) flatten order into an (H, W*C)-ordered,
    # lane-padded weight so the conv output flattens with zero data movement.
    w1 = w1_raw.reshape(lin_width, conv_width, h_last, w_last)
    w1 = jnp.transpose(w1, (2, 3, 1, 0)).reshape(h_last, w_last * conv_width,
                                                 lin_width)
    w1 = jnp.pad(w1, ((0, 0), (0, n_last_pad - w_last * conv_width),
                      (0, lwp - lin_width)))
    w1 = w1.reshape(h_last * n_last_pad, lwp).astype(DT)

    mids = tuple(
        jnp.pad(jnp.transpose(m),
                ((0, lwp - lin_width), (0, lwp - lin_width))).astype(DT)
        for m in mid_raw)
    wout = jnp.pad(jnp.transpose(wout_raw),
                   ((0, lwp - lin_width), (0, LANE - 1))).astype(DT)

    kernel_params = {
        "conv_banded": tuple(conv_banded),
        "lin_w1": w1, "lin_mid": mids, "lin_out": wout,
        "meta": {"in_ch": in_ch, "in_hw": in_hw, "h_last": h_last},
    }
    raw_params = {"conv": conv_raw, "w1": w1_raw, "mid": mid_raw,
                  "wout": wout_raw}
    return kernel_params, raw_params


# ----------------------------------------------------------------------------
# Forward pass (matches AdaptiveConvNet.forward; x in NCHW float32).
# ----------------------------------------------------------------------------
def adaptive_conv_net(x_nchw, params):
    meta = params["meta"]
    conv_ws = params["conv_banded"]
    n, c, h, w = x_nchw.shape
    if (c, h, w) != (meta["in_ch"], meta["in_hw"], meta["in_hw"]):
        raise ValueError(
            f"input {(c, h, w)} does not match the shapes the kernel weights "
            f"were built for {(meta['in_ch'], meta['in_hw'], meta['in_hw'])}")

    k0_pad = conv_ws[0].shape[1]
    n_last_pad = conv_ws[-1].shape[2]
    h_last = meta["h_last"]

    b_blk = _pick_b_blk()
    n_pad = _round_up(n, b_blk)

    # NCHW -> (H, W*C) slabs (channels innermost), lane zero-padded, bf16,
    # batch zero-padded to a multiple of b_blk, stacked into one 2-D slab.
    x = jnp.transpose(x_nchw, (0, 2, 3, 1)).reshape(n, h, w * c)
    x = jnp.pad(x, ((0, n_pad - n), (0, 0), (0, k0_pad - w * c)))
    x2d = x.astype(DT).reshape(n_pad * h, k0_pad)

    a = conv_stack(x2d, conv_ws, b_blk=b_blk, h0=h,
                   h_last=h_last)                     # (n_pad, h_last, Npad) bf16
    a_flat = a.reshape(n_pad, h_last * n_last_pad)    # already (H, W, C) order

    n_lin = _round_up(n_pad, 8)
    if n_lin != n_pad:
        a_flat = jnp.pad(a_flat, ((0, n_lin - n_pad), (0, 0)))
    nb = math.gcd(n_lin, 256)                         # batch block for linear

    y = lin_stack(a_flat, params["lin_w1"], params["lin_mid"],
                  params["lin_out"], nb=nb)           # (n_lin, 128) f32
    return y[:n, :1]


# ----------------------------------------------------------------------------
# Plain-JAX reference of the torch module (numerical sanity check).
# ----------------------------------------------------------------------------
def reference_forward(x_nchw, raw):
    hp = jax.lax.Precision.HIGHEST
    y = x_nchw
    for wt in raw["conv"]:
        y = jax.lax.conv_general_dilated(
            y, wt, window_strides=(1, 1), padding="VALID",
            dimension_numbers=("NCHW", "OIHW", "NCHW"), precision=hp)
        y = jnp.maximum(y, 0.0)
    y = y.reshape(y.shape[0], -1)
    y = jnp.maximum(jnp.dot(y, raw["w1"].T, precision=hp), 0.0)
    for m in raw["mid"]:
        y = jnp.maximum(jnp.dot(y, m.T, precision=hp), 0.0)
    return jnp.dot(y, raw["wout"].T, precision=hp)


if __name__ == "__main__":
    # conv_depth=3 with a 32x32, 3-channel input -> 24x24 spatial at flatten,
    # matching the module's hard-coded conv_width * 24 * 24 conv_to_lin fan-in.
    conv_depth, conv_width, lin_depth, lin_width = 3, 4, 3, 32

    key = jax.random.PRNGKey(0)
    pkey, xkey = jax.random.split(key)
    params, raw = init_params(pkey, conv_depth, conv_width, lin_depth,
                              lin_width)
    x = jax.random.normal(xkey, (4, 3, 32, 32), dtype=jnp.float32)

    fwd = jax.jit(functools.partial(adaptive_conv_net, params=params))
    out = jax.block_until_ready(fwd(x))
    assert out.shape == (4, 1), out.shape
    assert bool(jnp.all(jnp.isfinite(out)))

    # Numerical check vs. an XLA reference (tolerance covers the bf16 operands
    # used on the MXU paths; accumulation is f32 everywhere).
    ref = reference_forward(x, raw)
    err = float(jnp.max(jnp.abs(out - ref)))
    scale = float(jnp.max(jnp.abs(ref))) + 1.0
    assert err <= 0.05 * scale, (err, float(jnp.max(jnp.abs(ref))))

    print("KERNEL_OK")
</pallas_src>

<mosaic_0001>
module attributes {stable_mosaic.version = 11 : i64} {
  func.func @_conv_stack_kernel(%arg0: i32, %arg1: memref<256x128xbf16, #tpu.memory_space<vmem>>, %arg2: memref<5x128x128xbf16, #tpu.memory_space<vmem>>, %arg3: memref<5x128x128xbf16, #tpu.memory_space<vmem>>, %arg4: memref<8x24x128xbf16, #tpu.memory_space<vmem>>, %arg5: memref<252x128xbf16, #tpu.memory_space<vmem>>) attributes {dimension_semantics = [#tpu.dimension_semantics<parallel>], iteration_bounds = array<i64: 1>, scalar_prefetch = 0 : i64, scratch_operands = 1 : i64, tpu.core_type = #tpu.core_type<tc>, window_params = [{transform_indices = @transform_0, window_bounds = array<i64: 256, 128>}, {pipeline_mode = #tpu.pipeline_mode<synchronous>, transform_indices = @transform_1, window_bounds = array<i64: 5, 128, 128>}, {pipeline_mode = #tpu.pipeline_mode<synchronous>, transform_indices = @transform_2, window_bounds = array<i64: 5, 128, 128>}, {transform_indices = @transform_3, window_bounds = array<i64: 8, 24, 128>}]} {
    %c0 = arith.constant 0 : index
    %c0_0 = arith.constant 0 : index
    %0 = vector.load %arg1[%c0, %c0_0] : memref<256x128xbf16, #tpu.memory_space<vmem>>, vector<252x128xbf16>
    %c0_1 = arith.constant 0 : index
    %c0_2 = arith.constant 0 : index
    %c0_3 = arith.constant 0 : index
    %1 = vector.load %arg2[%c0_1, %c0_2, %c0_3] : memref<5x128x128xbf16, #tpu.memory_space<vmem>>, vector<1x128x128xbf16>
    %2 = vector.shape_cast %1 : vector<1x128x128xbf16> to vector<128x128xbf16>
    %cst = arith.constant dense<0.000000e+00> : vector<252x128xf32>
    %3 = tpu.matmul %0, %2, %cst {dimension_numbers = #tpu.dot_dimension_numbers<[1], [0], [0], [1], [0, 0, 1, 1], [], []>} : vector<252x128xbf16>, vector<128x128xbf16>, vector<252x128xf32> -> vector<252x128xf32>
    %c1 = arith.constant 1 : index
    %c0_4 = arith.constant 0 : index
    %4 = vector.load %arg1[%c1, %c0_4] : memref<256x128xbf16, #tpu.memory_space<vmem>>, vector<252x128xbf16>
    %c1_5 = arith.constant 1 : index
    %c0_6 = arith.constant 0 : index
    %c0_7 = arith.constant 0 : index
    %5 = vector.load %arg2[%c1_5, %c0_6, %c0_7] : memref<5x128x128xbf16, #tpu.memory_space<vmem>>, vector<1x128x128xbf16>
    %6 = vector.shape_cast %5 : vector<1x128x128xbf16> to vector<128x128xbf16>
    %cst_8 = arith.constant dense<0.000000e+00> : vector<252x128xf32>
    %7 = tpu.matmul %4, %6, %cst_8 {dimension_numbers = #tpu.dot_dimension_numbers<[1], [0], [0], [1], [0, 0, 1, 1], [], []>} : vector<252x128xbf16>, vector<128x128xbf16>, vector<252x128xf32> -> vector<252x128xf32>
    %8 = arith.addf %3, %7 : vector<252x128xf32>
    %c2 = arith.constant 2 : index
    %c0_9 = arith.constant 0 : index
    %9 = vector.load %arg1[%c2, %c0_9] : memref<256x128xbf16, #tpu.memory_space<vmem>>, vector<252x128xbf16>
    %c2_10 = arith.constant 2 : index
    %c0_11 = arith.constant 0 : index
    %c0_12 = arith.constant 0 : index
    %10 = vector.load %arg2[%c2_10, %c0_11, %c0_12] : memref<5x128x128xbf16, #tpu.memory_space<vmem>>, vector<1x128x128xbf16>
    %11 = vector.shape_cast %10 : vector<1x128x128xbf16> to vector<128x128xbf16>
    %cst_13 = arith.constant dense<0.000000e+00> : vector<252x128xf32>
    %12 = tpu.matmul %9, %11, %cst_13 {dimension_numbers = #tpu.dot_dimension_numbers<[1], [0], [0], [1], [0, 0, 1, 1], [], []>} : vector<252x128xbf16>, vector<128x128xbf16>, vector<252x128xf32> -> vector<252x128xf32>
    %13 = arith.addf %8, %12 : vector<252x128xf32>
    %c3 = arith.constant 3 : index
    %c0_14 = arith.constant 0 : index
    %14 = vector.load %arg1[%c3, %c0_14] : memref<256x128xbf16, #tpu.memory_space<vmem>>, vector<252x128xbf16>
    %c3_15 = arith.constant 3 : index
    %c0_16 = arith.constant 0 : index
    %c0_17 = arith.constant 0 : index
    %15 = vector.load %arg2[%c3_15, %c0_16, %c0_17] : memref<5x128x128xbf16, #tpu.memory_space<vmem>>, vector<1x128x128xbf16>
    %16 = vector.shape_cast %15 : vector<1x128x128xbf16> to vector<128x128xbf16>
    %cst_18 = arith.constant dense<0.000000e+00> : vector<252x128xf32>
    %17 = tpu.matmul %14, %16, %cst_18 {dimension_numbers = #tpu.dot_dimension_numbers<[1], [0], [0], [1], [0, 0, 1, 1], [], []>} : vector<252x128xbf16>, vector<128x128xbf16>, vector<252x128xf32> -> vector<252x128xf32>
    %18 = arith.addf %13, %17 : vector<252x128xf32>
    %c4 = arith.constant 4 : index
    %c0_19 = arith.constant 0 : index
    %19 = vector.load %arg1[%c4, %c0_19] : memref<256x128xbf16, #tpu.memory_space<vmem>>, vector<252x128xbf16>
    %c4_20 = arith.constant 4 : index
    %c0_21 = arith.constant 0 : index
    %c0_22 = arith.constant 0 : index
    %20 = vector.load %arg2[%c4_20, %c0_21, %c0_22] : memref<5x128x128xbf16, #tpu.memory_space<vmem>>, vector<1x128x128xbf16>
    %21 = vector.shape_cast %20 : vector<1x128x128xbf16> to vector<128x128xbf16>
    %cst_23 = arith.constant dense<0.000000e+00> : vector<252x128xf32>
    %22 = tpu.matmul %19, %21, %cst_23 {dimension_numbers = #tpu.dot_dimension_numbers<[1], [0], [0], [1], [0, 0, 1, 1], [], []>} : vector<252x128xbf16>, vector<128x128xbf16>, vector<252x128xf32> -> vector<252x128xf32>
    %23 = arith.addf %18, %22 : vector<252x128xf32>
    %cst_24 = arith.constant 0.000000e+00 : f32
    %24 = vector.broadcast %cst_24 : f32 to vector<252x128xf32>
    %25 = arith.maximumf %23, %24 : vector<252x128xf32>
    %26 = arith.truncf %25 : vector<252x128xf32> to vector<252x128xbf16>
    %c0_25 = arith.constant 0 : index
    %c0_26 = arith.constant 0 : index
    %27 = vector.load %arg5[%c0_25, %c0_26] : memref<252x128xbf16, #tpu.memory_space<vmem>>, vector<252x128xbf16>
    tpu.vector_store %arg5[%c0_25, %c0_26], %26 {strides = array<i32>} : memref<252x128xbf16, #tpu.memory_space<vmem>>, vector<252x128xbf16>,
    %c0_27 = arith.constant 0 : index
    %c0_28 = arith.constant 0 : index
    %28 = vector.load %arg5[%c0_27, %c0_28] : memref<252x128xbf16, #tpu.memory_space<vmem>>, vector<248x128xbf16>
    %c0_29 = arith.constant 0 : index
    %c0_30 = arith.constant 0 : index
    %c0_31 = arith.constant 0 : index
    %29 = vector.load %arg3[%c0_29, %c0_30, %c0_31] : memref<5x128x128xbf16, #tpu.memory_space<vmem>>, vector<1x128x128xbf16>
    %30 = vector.shape_cast %29 : vector<1x128x128xbf16> to vector<128x128xbf16>
    %cst_32 = arith.constant dense<0.000000e+00> : vector<248x128xf32>
    %31 = tpu.matmul %28, %30, %cst_32 {dimension_numbers = #tpu.dot_dimension_numbers<[1], [0], [0], [1], [0, 0, 1, 1], [], []>} : vector<248x128xbf16>, vector<128x128xbf16>, vector<248x128xf32> -> vector<248x128xf32>
    %c1_33 = arith.constant 1 : index
    %c0_34 = arith.constant 0 : index
    %32 = vector.load %arg5[%c1_33, %c0_34] : memref<252x128xbf16, #tpu.memory_space<vmem>>, vector<248x128xbf16>
    %c1_35 = arith.constant 1 : index
    %c0_36 = arith.constant 0 : index
    %c0_37 = arith.constant 0 : index
    %33 = vector.load %arg3[%c1_35, %c0_36, %c0_37] : memref<5x128x128xbf16, #tpu.memory_space<vmem>>, vector<1x128x128xbf16>
    %34 = vector.shape_cast %33 : vector<1x128x128xbf16> to vector<128x128xbf16>
    %cst_38 = arith.constant dense<0.000000e+00> : vector<248x128xf32>
    %35 = tpu.matmul %32, %34, %cst_38 {dimension_numbers = #tpu.dot_dimension_numbers<[1], [0], [0], [1], [0, 0, 1, 1], [], []>} : vector<248x128xbf16>, vector<128x128xbf16>, vector<248x128xf32> -> vector<248x128xf32>
    %36 = arith.addf %31, %35 : vector<248x128xf32>
    %c2_39 = arith.constant 2 : index
    %c0_40 = arith.constant 0 : index
    %37 = vector.load %arg5[%c2_39, %c0_40] : memref<252x128xbf16, #tpu.memory_space<vmem>>, vector<248x128xbf16>
    %c2_41 = arith.constant 2 : index
    %c0_42 = arith.constant 0 : index
    %c0_43 = arith.constant 0 : index
    %38 = vector.load %arg3[%c2_41, %c0_42, %c0_43] : memref<5x128x128xbf16, #tpu.memory_space<vmem>>, vector<1x128x128xbf16>
    %39 = vector.shape_cast %38 : vector<1x128x128xbf16> to vector<128x128xbf16>
    %cst_44 = arith.constant dense<0.000000e+00> : vector<248x128xf32>
    %40 = tpu.matmul %37, %39, %cst_44 {dimension_numbers = #tpu.dot_dimension_numbers<[1], [0], [0], [1], [0, 0, 1, 1], [], []>} : vector<248x128xbf16>, vector<128x128xbf16>, vector<248x128xf32> -> vector<248x128xf32>
    %41 = arith.addf %36, %40 : vector<248x128xf32>
    %c3_45 = arith.constant 3 : index
    %c0_46 = arith.constant 0 : index
    %42 = vector.load %arg5[%c3_45, %c0_46] : memref<252x128xbf16, #tpu.memory_space<vmem>>, vector<248x128xbf16>
    %c3_47 = arith.constant 3 : index
    %c0_48 = arith.constant 0 : index
    %c0_49 = arith.constant 0 : index
    %43 = vector.load %arg3[%c3_47, %c0_48, %c0_49] : memref<5x128x128xbf16, #tpu.memory_space<vmem>>, vector<1x128x128xbf16>
    %44 = vector.shape_cast %43 : vector<1x128x128xbf16> to vector<128x128xbf16>
    %cst_50 = arith.constant dense<0.000000e+00> : vector<248x128xf32>
    %45 = tpu.matmul %42, %44, %cst_50 {dimension_numbers = #tpu.dot_dimension_numbers<[1], [0], [0], [1], [0, 0, 1, 1], [], []>} : vector<248x128xbf16>, vector<128x128xbf16>, vector<248x128xf32> -> vector<248x128xf32>
    %46 = arith.addf %41, %45 : vector<248x128xf32>
    %c4_51 = arith.constant 4 : index
    %c0_52 = arith.constant 0 : index
    %47 = vector.load %arg5[%c4_51, %c0_52] : memref<252x128xbf16, #tpu.memory_space<vmem>>, vector<248x128xbf16>
    %c4_53 = arith.constant 4 : index
    %c0_54 = arith.constant 0 : index
    %c0_55 = arith.constant 0 : index
    %48 = vector.load %arg3[%c4_53, %c0_54, %c0_55] : memref<5x128x128xbf16, #tpu.memory_space<vmem>>, vector<1x128x128xbf16>
    %49 = vector.shape_cast %48 : vector<1x128x128xbf16> to vector<128x128xbf16>
    %cst_56 = arith.constant dense<0.000000e+00> : vector<248x128xf32>
    %50 = tpu.matmul %47, %49, %cst_56 {dimension_numbers = #tpu.dot_dimension_numbers<[1], [0], [0], [1], [0, 0, 1, 1], [], []>} : vector<248x128xbf16>, vector<128x128xbf16>, vector<248x128xf32> -> vector<248x128xf32>
    %51 = arith.addf %46, %50 : vector<248x128xf32>
    %cst_57 = arith.constant 0.000000e+00 : f32
    %52 = vector.broadcast %cst_57 : f32 to vector<248x128xf32>
    %53 = arith.maximumf %51, %52 : vector<248x128xf32>
    %54 = vector.extract_strided_slice %53 {offsets = [0, 0], sizes = [24, 128], strides = [1, 1]} : vector<248x128xf32> to vector<24x128xf32>
    %55 = arith.truncf %54 : vector<24x128xf32> to vector<24x128xbf16>
    %c0_58 = arith.constant 0 : index
    %c0_59 = arith.constant 0 : index
    %c0_60 = arith.constant 0 : index
    %56 = vector.load %arg4[%c0_58, %c0_59, %c0_60] : memref<8x24x128xbf16, #tpu.memory_space<vmem>>, vector<1x24x128xbf16>
    %57 = vector.shape_cast %56 : vector<1x24x128xbf16> to vector<24x128xbf16>
    %58 = vector.shape_cast %55 : vector<24x128xbf16> to vector<1x24x128xbf16>
    tpu.vector_store %arg4[%c0_58, %c0_59, %c0_60], %58 {strides = array<i32>} : memref<8x24x128xbf16, #tpu.memory_space<vmem>>, vector<1x24x128xbf16>,
    %59 = vector.extract_strided_slice %53 {offsets = [32, 0], sizes = [24, 128], strides = [1, 1]} : vector<248x128xf32> to vector<24x128xf32>
    %60 = arith.truncf %59 : vector<24x128xf32> to vector<24x128xbf16>
    %c1_61 = arith.constant 1 : index
    %c0_62 = arith.constant 0 : index
    %c0_63 = arith.constant 0 : index
    %61 = vector.load %arg4[%c1_61, %c0_62, %c0_63] : memref<8x24x128xbf16, #tpu.memory_space<vmem>>, vector<1x24x128xbf16>
    %62 = vector.shape_cast %61 : vector<1x24x128xbf16> to vector<24x128xbf16>
    %63 = vector.shape_cast %60 : vector<24x128xbf16> to vector<1x24x128xbf16>
    tpu.vector_store %arg4[%c1_61, %c0_62, %c0_63], %63 {strides = array<i32>} : memref<8x24x128xbf16, #tpu.memory_space<vmem>>, vector<1x24x128xbf16>,
    %64 = vector.extract_strided_slice %53 {offsets = [64, 0], sizes = [24, 128], strides = [1, 1]} : vector<248x128xf32> to vector<24x128xf32>
    %65 = arith.truncf %64 : vector<24x128xf32> to vector<24x128xbf16>
    %c2_64 = arith.constant 2 : index
    %c0_65 = arith.constant 0 : index
    %c0_66 = arith.constant 0 : index
    %66 = vector.load %arg4[%c2_64, %c0_65, %c0_66] : memref<8x24x128xbf16, #tpu.memory_space<vmem>>, vector<1x24x128xbf16>
    %67 = vector.shape_cast %66 : vector<1x24x128xbf16> to vector<24x128xbf16>
    %68 = vector.shape_cast %65 : vector<24x128xbf16> to vector<1x24x128xbf16>
    tpu.vector_store %arg4[%c2_64, %c0_65, %c0_66], %68 {strides = array<i32>} : memref<8x24x128xbf16, #tpu.memory_space<vmem>>, vector<1x24x128xbf16>,
    %69 = vector.extract_strided_slice %53 {offsets = [96, 0], sizes = [24, 128], strides = [1, 1]} : vector<248x128xf32> to vector<24x128xf32>
    %70 = arith.truncf %69 : vector<24x128xf32> to vector<24x128xbf16>
    %c3_67 = arith.constant 3 : index
    %c0_68 = arith.constant 0 : index
    %c0_69 = arith.constant 0 : index
    %71 = vector.load %arg4[%c3_67, %c0_68, %c0_69] : memref<8x24x128xbf16, #tpu.memory_space<vmem>>, vector<1x24x128xbf16>
    %72 = vector.shape_cast %71 : vector<1x24x128xbf16> to vector<24x128xbf16>
    %73 = vector.shape_cast %70 : vector<24x128xbf16> to vector<1x24x128xbf16>
    tpu.vector_store %arg4[%c3_67, %c0_68, %c0_69], %73 {strides = array<i32>} : memref<8x24x128xbf16, #tpu.memory_space<vmem>>, vector<1x24x128xbf16>,
    %74 = vector.extract_strided_slice %53 {offsets = [128, 0], sizes = [24, 128], strides = [1, 1]} : vector<248x128xf32> to vector<24x128xf32>
    %75 = arith.truncf %74 : vector<24x128xf32> to vector<24x128xbf16>
    %c4_70 = arith.constant 4 : index
    %c0_71 = arith.constant 0 : index
    %c0_72 = arith.constant 0 : index
    %76 = vector.load %arg4[%c4_70, %c0_71, %c0_72] : memref<8x24x128xbf16, #tpu.memory_space<vmem>>, vector<1x24x128xbf16>
    %77 = vector.shape_cast %76 : vector<1x24x128xbf16> to vector<24x128xbf16>
    %78 = vector.shape_cast %75 : vector<24x128xbf16> to vector<1x24x128xbf16>
    tpu.vector_store %arg4[%c4_70, %c0_71, %c0_72], %78 {strides = array<i32>} : memref<8x24x128xbf16, #tpu.memory_space<vmem>>, vector<1x24x128xbf16>,
    %79 = vector.extract_strided_slice %53 {offsets = [160, 0], sizes = [24, 128], strides = [1, 1]} : vector<248x128xf32> to vector<24x128xf32>
    %80 = arith.truncf %79 : vector<24x128xf32> to vector<24x128xbf16>
    %c5 = arith.constant 5 : index
    %c0_73 = arith.constant 0 : index
    %c0_74 = arith.constant 0 : index
    %81 = vector.load %arg4[%c5, %c0_73, %c0_74] : memref<8x24x128xbf16, #tpu.memory_space<vmem>>, vector<1x24x128xbf16>
    %82 = vector.shape_cast %81 : vector<1x24x128xbf16> to vector<24x128xbf16>
    %83 = vector.shape_cast %80 : vector<24x128xbf16> to vector<1x24x128xbf16>
    tpu.vector_store %arg4[%c5, %c0_73, %c0_74], %83 {strides = array<i32>} : memref<8x24x128xbf16, #tpu.memory_space<vmem>>, vector<1x24x128xbf16>,
    %84 = vector.extract_strided_slice %53 {offsets = [192, 0], sizes = [24, 128], strides = [1, 1]} : vector<248x128xf32> to vector<24x128xf32>
    %85 = arith.truncf %84 : vector<24x128xf32> to vector<24x128xbf16>
    %c6 = arith.constant 6 : index
    %c0_75 = arith.constant 0 : index
    %c0_76 = arith.constant 0 : index
    %86 = vector.load %arg4[%c6, %c0_75, %c0_76] : memref<8x24x128xbf16, #tpu.memory_space<vmem>>, vector<1x24x128xbf16>
    %87 = vector.shape_cast %86 : vector<1x24x128xbf16> to vector<24x128xbf16>
    %88 = vector.shape_cast %85 : vector<24x128xbf16> to vector<1x24x128xbf16>
    tpu.vector_store %arg4[%c6, %c0_75, %c0_76], %88 {strides = array<i32>} : memref<8x24x128xbf16, #tpu.memory_space<vmem>>, vector<1x24x128xbf16>,
    %89 = vector.extract_strided_slice %53 {offsets = [224, 0], sizes = [24, 128], strides = [1, 1]} : vector<248x128xf32> to vector<24x128xf32>
    %90 = arith.truncf %89 : vector<24x128xf32> to vector<24x128xbf16>
    %c7 = arith.constant 7 : index
    %c0_77 = arith.constant 0 : index
    %c0_78 = arith.constant 0 : index
    %91 = vector.load %arg4[%c7, %c0_77, %c0_78] : memref<8x24x128xbf16, #tpu.memory_space<vmem>>, vector<1x24x128xbf16>
    %92 = vector.shape_cast %91 : vector<1x24x128xbf16> to vector<24x128xbf16>
    %93 = vector.shape_cast %90 : vector<24x128xbf16> to vector<1x24x128xbf16>
    tpu.vector_store %arg4[%c7, %c0_77, %c0_78], %93 {strides = array<i32>} : memref<8x24x128xbf16, #tpu.memory_space<vmem>>, vector<1x24x128xbf16>,
    return
  }
  func.func @transform_0(%arg0: i32) -> (i32, i32) {
    %c0_i32 = arith.constant 0 : i32
    %c0_i32_0 = arith.constant 0 : i32
    return %arg0, %c0_i32 : i32, i32
  }
  func.func @transform_1(%arg0: i32) -> (i32, i32, i32) {
    %c0_i32 = arith.constant 0 : i32
    %c0_i32_0 = arith.constant 0 : i32
    %c0_i32_1 = arith.constant 0 : i32
    %c0_i32_2 = arith.constant 0 : i32
    return %c0_i32, %c0_i32_0, %c0_i32_1 : i32, i32, i32
  }
  func.func @transform_2(%arg0: i32) -> (i32, i32, i32) {
    %c0_i32 = arith.constant 0 : i32
    %c0_i32_0 = arith.constant 0 : i32
    %c0_i32_1 = arith.constant 0 : i32
    %c0_i32_2 = arith.constant 0 : i32
    return %c0_i32, %c0_i32_0, %c0_i32_1 : i32, i32, i32
  }
  func.func @transform_3(%arg0: i32) -> (i32, i32, i32) {
    %c0_i32 = arith.constant 0 : i32
    %c0_i32_0 = arith.constant 0 : i32
    %c0_i32_1 = arith.constant 0 : i32
    return %arg0, %c0_i32, %c0_i32_0 : i32, i32, i32
  }
}

module attributes {stable_mosaic.version = 11 : i64} {
  func.func @_lin_stack_kernel(%arg0: i32, %arg1: memref<8x3072xbf16, #tpu.memory_space<vmem>>, %arg2: memref<3072x128xbf16, #tpu.memory_space<vmem>>, %arg3: memref<128x128xbf16, #tpu.memory_space<vmem>>, %arg4: memref<128x128xbf16, #tpu.memory_space<vmem>>, %arg5: memref<8x128xf32, #tpu.memory_space<vmem>>) attributes {dimension_semantics = [#tpu.dimension_semantics<parallel>], iteration_bounds = array<i64: 1>, scalar_prefetch = 0 : i64, scratch_operands = 0 : i64, tpu.core_type = #tpu.core_type<tc>, window_params = [{transform_indices = @transform_0, window_bounds = array<i64: 8, 3072>}, {pipeline_mode = #tpu.pipeline_mode<synchronous>, transform_indices = @transform_1, window_bounds = array<i64: 3072, 128>}, {pipeline_mode = #tpu.pipeline_mode<synchronous>, transform_indices = @transform_2, window_bounds = array<i64: 128, 128>}, {pipeline_mode = #tpu.pipeline_mode<synchronous>, transform_indices = @transform_3, window_bounds = array<i64: 128, 128>}, {transform_indices = @transform_4, window_bounds = array<i64: 8, 128>}]} {
    %c0 = arith.constant 0 : index
    %c0_0 = arith.constant 0 : index
    %0 = vector.load %arg1[%c0, %c0_0] : memref<8x3072xbf16, #tpu.memory_space<vmem>>, vector<8x3072xbf16>
    %c0_1 = arith.constant 0 : index
    %c0_2 = arith.constant 0 : index
    %1 = vector.load %arg2[%c0_1, %c0_2] : memref<3072x128xbf16, #tpu.memory_space<vmem>>, vector<3072x128xbf16>
    %cst = arith.constant dense<0.000000e+00> : vector<8x128xf32>
    %2 = tpu.matmul %0, %1, %cst {dimension_numbers = #tpu.dot_dimension_numbers<[1], [0], [0], [1], [0, 0, 1, 1], [], []>} : vector<8x3072xbf16>, vector<3072x128xbf16>, vector<8x128xf32> -> vector<8x128xf32>
    %cst_3 = arith.constant 0.000000e+00 : f32
    %3 = vector.broadcast %cst_3 : f32 to vector<8x128xf32>
    %4 = arith.maximumf %2, %3 : vector<8x128xf32>
    %5 = arith.truncf %4 : vector<8x128xf32> to vector<8x128xbf16>
    %c0_4 = arith.constant 0 : index
    %c0_5 = arith.constant 0 : index
    %6 = vector.load %arg3[%c0_4, %c0_5] : memref<128x128xbf16, #tpu.memory_space<vmem>>, vector<128x128xbf16>
    %cst_6 = arith.constant dense<0.000000e+00> : vector<8x128xf32>
    %7 = tpu.matmul %5, %6, %cst_6 {dimension_numbers = #tpu.dot_dimension_numbers<[1], [0], [0], [1], [0, 0, 1, 1], [], []>} : vector<8x128xbf16>, vector<128x128xbf16>, vector<8x128xf32> -> vector<8x128xf32>
    %cst_7 = arith.constant 0.000000e+00 : f32
    %8 = vector.broadcast %cst_7 : f32 to vector<8x128xf32>
    %9 = arith.maximumf %7, %8 : vector<8x128xf32>
    %10 = arith.truncf %9 : vector<8x128xf32> to vector<8x128xbf16>
    %c0_8 = arith.constant 0 : index
    %c0_9 = arith.constant 0 : index
    %11 = vector.load %arg4[%c0_8, %c0_9] : memref<128x128xbf16, #tpu.memory_space<vmem>>, vector<128x128xbf16>
    %cst_10 = arith.constant dense<0.000000e+00> : vector<8x128xf32>
    %12 = tpu.matmul %10, %11, %cst_10 {dimension_numbers = #tpu.dot_dimension_numbers<[1], [0], [0], [1], [0, 0, 1, 1], [], []>} : vector<8x128xbf16>, vector<128x128xbf16>, vector<8x128xf32> -> vector<8x128xf32>
    %c0_11 = arith.constant 0 : index
    %c0_12 = arith.constant 0 : index
    %13 = vector.load %arg5[%c0_11, %c0_12] : memref<8x128xf32, #tpu.memory_space<vmem>>, vector<8x128xf32>
    tpu.vector_store %arg5[%c0_11, %c0_12], %12 {strides = array<i32>} : memref<8x128xf32, #tpu.memory_space<vmem>>, vector<8x128xf32>,
    return
  }
  func.func @transform_0(%arg0: i32) -> (i32, i32) {
    %c0_i32 = arith.constant 0 : i32
    %c0_i32_0 = arith.constant 0 : i32
    return %arg0, %c0_i32 : i32, i32
  }
  func.func @transform_1(%arg0: i32) -> (i32, i32) {
    %c0_i32 = arith.constant 0 : i32
    %c0_i32_0 = arith.constant 0 : i32
    %c0_i32_1 = arith.constant 0 : i32
    return %c0_i32, %c0_i32_0 : i32, i32
  }
  func.func @transform_2(%arg0: i32) -> (i32, i32) {
    %c0_i32 = arith.constant 0 : i32
    %c0_i32_0 = arith.constant 0 : i32
    %c0_i32_1 = arith.constant 0 : i32
    return %c0_i32, %c0_i32_0 : i32, i32
  }
  func.func @transform_3(%arg0: i32) -> (i32, i32) {
    %c0_i32 = arith.constant 0 : i32
    %c0_i32_0 = arith.constant 0 : i32
    %c0_i32_1 = arith.constant 0 : i32
    return %c0_i32, %c0_i32_0 : i32, i32
  }
  func.func @transform_4(%arg0: i32) -> (i32, i32) {
    %c0_i32 = arith.constant 0 : i32
    %c0_i32_0 = arith.constant 0 : i32
    return %arg0, %c0_i32 : i32, i32
  }
}

</mosaic_0001>

<llo_original>
// kernel: adaptive_conv_net.3
$region0: #{adaptive_conv_net.3}
  #allocation0 [shape = 'u32[]', space=smem, size = 0x4, offset = 0x4, fixed_abs, tag = 'smem constant byte address 0x4 - core index']
  #allocation1 [shape = 'u32[144,128]{1,0:T(1,128)}', space=vmem, size = 0x12000, scoped, tag = 'internal scratch']
  %s0 = inlined_call_operand.vmem [shape: bf16[8,3072], index: 0, kind: input, shape index: {}]
  %s1 = inlined_call_operand.vmem [shape: bf16[3072,128], index: 1, kind: input, shape index: {}]
  %s2 = inlined_call_operand.vmem [shape: bf16[128,128], index: 2, kind: input, shape index: {}]
  %s3 = inlined_call_operand.vmem [shape: bf16[128,128], index: 3, kind: input, shape index: {}]
  %s4 = inlined_call_operand.vmem [shape: f32[8,128], index: 4, kind: output, shape index: {}]
  %s5 = sld [smem:[#allocation0]]
  $region26: #{adaptive_conv_net.3} parent=0
    _
  %s7 = ssub.s32 1, %s5
  %s8 = scalar_select 0, %s7, %s5
  // Predicated region
  $region2: #{adaptive_conv_net.3} parent=0 // pred_check
    _
  $region3: #{adaptive_conv_net.3} parent=0 // pred_check_branch
    %10 = sbr.rel (0) target = $region5
  $region4: #{adaptive_conv_net.3} parent=0 // pred_region
    _
  $region5: #{adaptive_conv_net.3} parent=0 // pred_fallthru
    _
  // Predicated region
  $region6: #{adaptive_conv_net.3} parent=0 // pred_check
    _
  $region7: #{adaptive_conv_net.3} parent=0 // pred_check_branch
    %12 = sbr.rel (0) target = $region9
  $region8: #{adaptive_conv_net.3} parent=0 // pred_region
    _
  $region9: #{adaptive_conv_net.3} parent=0 // pred_fallthru
    _
  // Predicated region
  $region10: #{adaptive_conv_net.3} parent=0 // pred_check
    _
  $region11: #{adaptive_conv_net.3} parent=0 // pred_check_branch
    %14 = sbr.rel (0) target = $region13
  $region12: #{adaptive_conv_net.3} parent=0 // pred_region
    _
  $region13: #{adaptive_conv_net.3} parent=0 // pred_fallthru
    _
  // Predicated region
  $region14: #{adaptive_conv_net.3} parent=0 // pred_check
    _
  $region15: #{adaptive_conv_net.3} parent=0 // pred_check_branch
    %16 = sbr.rel (0) target = $region17
  $region16: #{adaptive_conv_net.3} parent=0 // pred_region
    _
  $region17: #{adaptive_conv_net.3} parent=0 // pred_fallthru
    _
  %v18 = vld [vmem:[%s0] sm:$0xff]
  %v19 = vld [vmem:[%s0 + $0x8] sm:$0xff]
  %v20 = vld [vmem:[%s0 + $0x10] sm:$0xff]
  %v21 = vld [vmem:[%s0 + $0x18] sm:$0xff]
  %v22 = vld [vmem:[%s0 + $0x20] sm:$0xff]
  %v23 = vld [vmem:[%s0 + $0x28] sm:$0xff]
  %v24 = vld [vmem:[%s0 + $0x30] sm:$0xff]
  %v25 = vld [vmem:[%s0 + $0x38] sm:$0xff]
  %v26 = vld [vmem:[%s0 + $0x40] sm:$0xff]
  %v27 = vld [vmem:[%s0 + $0x48] sm:$0xff]
  %v28 = vld [vmem:[%s0 + $0x50] sm:$0xff]
  %v29 = vld [vmem:[%s0 + $0x58] sm:$0xff]
  %v30 = vld [vmem:[%s1] sm:$0xf]
  %v31 = vld [vmem:[%s1 + $0x4] sm:$0xf]
  %v32 = vld [vmem:[%s1 + $0x8] sm:$0xf]
  %v33 = vld [vmem:[%s1 + $0xc] sm:$0xf]
  %v34 = vld [vmem:[%s1 + $0x10] sm:$0xf]
  %v35 = vld [vmem:[%s1 + $0x14] sm:$0xf]
  %v36 = vld [vmem:[%s1 + $0x18] sm:$0xf]
  %v37 = vld [vmem:[%s1 + $0x1c] sm:$0xf]
  %v38 = vld [vmem:[%s1 + $0x20] sm:$0xf]
  %v39 = vld [vmem:[%s1 + $0x24] sm:$0xf]
  %v40 = vld [vmem:[%s1 + $0x28] sm:$0xf]
  %v41 = vld [vmem:[%s1 + $0x2c] sm:$0xf]
  %v42 = vld [vmem:[%s1 + $0x30] sm:$0xf]
  %v43 = vld [vmem:[%s1 + $0x34] sm:$0xf]
  %v44 = vld [vmem:[%s1 + $0x38] sm:$0xf]
  %v45 = vld [vmem:[%s1 + $0x3c] sm:$0xf]
  %v46 = vld [vmem:[%s1 + $0x40] sm:$0xf]
  %v47 = vld [vmem:[%s1 + $0x44] sm:$0xf]
  %v48 = vld [vmem:[%s1 + $0x48] sm:$0xf]
  %v49 = vld [vmem:[%s1 + $0x4c] sm:$0xf]
  %v50 = vld [vmem:[%s1 + $0x50] sm:$0xf]
  %v51 = vld [vmem:[%s1 + $0x54] sm:$0xf]
  %v52 = vld [vmem:[%s1 + $0x58] sm:$0xf]
  %v53 = vld [vmem:[%s1 + $0x5c] sm:$0xf]
  %v54 = vld [vmem:[%s1 + $0x60] sm:$0xf]
  %v55 = vld [vmem:[%s1 + $0x64] sm:$0xf]
  %v56 = vld [vmem:[%s1 + $0x68] sm:$0xf]
  %v57 = vld [vmem:[%s1 + $0x6c] sm:$0xf]
  %v58 = vld [vmem:[%s1 + $0x70] sm:$0xf]
  %v59 = vld [vmem:[%s1 + $0x74] sm:$0xf]
  %v60 = vld [vmem:[%s1 + $0x78] sm:$0xf]
  %v61 = vld [vmem:[%s1 + $0x7c] sm:$0xf]
  %v62 = vld [vmem:[%s1 + $0x80] sm:$0xf]
  %v63 = vld [vmem:[%s1 + $0x84] sm:$0xf]
  %v64 = vld [vmem:[%s1 + $0x88] sm:$0xf]
  %v65 = vld [vmem:[%s1 + $0x8c] sm:$0xf]
  %v66 = vld [vmem:[%s1 + $0x90] sm:$0xf]
  %v67 = vld [vmem:[%s1 + $0x94] sm:$0xf]
  %v68 = vld [vmem:[%s1 + $0x98] sm:$0xf]
  %v69 = vld [vmem:[%s1 + $0x9c] sm:$0xf]
  %v70 = vld [vmem:[%s1 + $0xa0] sm:$0xf]
  %v71 = vld [vmem:[%s1 + $0xa4] sm:$0xf]
  %v72 = vld [vmem:[%s1 + $0xa8] sm:$0xf]
  %v73 = vld [vmem:[%s1 + $0xac] sm:$0xf]
  %v74 = vld [vmem:[%s1 + $0xb0] sm:$0xf]
  %v75 = vld [vmem:[%s1 + $0xb4] sm:$0xf]
  %v76 = vld [vmem:[%s1 + $0xb8] sm:$0xf]
  %v77 = vld [vmem:[%s1 + $0xbc] sm:$0xf]
  %v78 = vld [vmem:[%s1 + $0xc0] sm:$0xf]
  %v79 = vld [vmem:[%s1 + $0xc4] sm:$0xf]
  %v80 = vld [vmem:[%s1 + $0xc8] sm:$0xf]
  %v81 = vld [vmem:[%s1 + $0xcc] sm:$0xf]
  %v82 = vld [vmem:[%s1 + $0xd0] sm:$0xf]
  %v83 = vld [vmem:[%s1 + $0xd4] sm:$0xf]
  %v84 = vld [vmem:[%s1 + $0xd8] sm:$0xf]
  %v85 = vld [vmem:[%s1 + $0xdc] sm:$0xf]
  %v86 = vld [vmem:[%s1 + $0xe0] sm:$0xf]
  %v87 = vld [vmem:[%s1 + $0xe4] sm:$0xf]
  %v88 = vld [vmem:[%s1 + $0xe8] sm:$0xf]
  %v89 = vld [vmem:[%s1 + $0xec] sm:$0xf]
  %v90 = vld [vmem:[%s1 + $0xf0] sm:$0xf]
  %v91 = vld [vmem:[%s1 + $0xf4] sm:$0xf]
  %v92 = vld [vmem:[%s1 + $0xf8] sm:$0xf]
  %v93 = vld [vmem:[%s1 + $0xfc] sm:$0xf]
  %v94 = vld [vmem:[%s1 + $0x100] sm:$0xf]
  %v95 = vld [vmem:[%s1 + $0x104] sm:$0xf]
  %v96 = vld [vmem:[%s1 + $0x108] sm:$0xf]
  %v97 = vld [vmem:[%s1 + $0x10c] sm:$0xf]
  %v98 = vld [vmem:[%s1 + $0x110] sm:$0xf]
  %v99 = vld [vmem:[%s1 + $0x114] sm:$0xf]
  %v100 = vld [vmem:[%s1 + $0x118] sm:$0xf]
  %v101 = vld [vmem:[%s1 + $0x11c] sm:$0xf]
  %v102 = vld [vmem:[%s1 + $0x120] sm:$0xf]
  %v103 = vld [vmem:[%s1 + $0x124] sm:$0xf]
  %v104 = vld [vmem:[%s1 + $0x128] sm:$0xf]
  %v105 = vld [vmem:[%s1 + $0x12c] sm:$0xf]
  %v106 = vld [vmem:[%s1 + $0x130] sm:$0xf]
  %v107 = vld [vmem:[%s1 + $0x134] sm:$0xf]
  %v108 = vld [vmem:[%s1 + $0x138] sm:$0xf]
  %v109 = vld [vmem:[%s1 + $0x13c] sm:$0xf]
  %v110 = vld [vmem:[%s1 + $0x140] sm:$0xf]
  %v111 = vld [vmem:[%s1 + $0x144] sm:$0xf]
  %v112 = vld [vmem:[%s1 + $0x148] sm:$0xf]
  %v113 = vld [vmem:[%s1 + $0x14c] sm:$0xf]
  %v114 = vld [vmem:[%s1 + $0x150] sm:$0xf]
  %v115 = vld [vmem:[%s1 + $0x154] sm:$0xf]
  %v116 = vld [vmem:[%s1 + $0x158] sm:$0xf]
  %v117 = vld [vmem:[%s1 + $0x15c] sm:$0xf]
  %v118 = vld [vmem:[%s1 + $0x160] sm:$0xf]
  %v119 = vld [vmem:[%s1 + $0x164] sm:$0xf]
  %v120 = vld [vmem:[%s1 + $0x168] sm:$0xf]
  %v121 = vld [vmem:[%s1 + $0x16c] sm:$0xf]
  %v122 = vld [vmem:[%s1 + $0x170] sm:$0xf]
  %v123 = vld [vmem:[%s1 + $0x174] sm:$0xf]
  %v124 = vld [vmem:[%s1 + $0x178] sm:$0xf]
  %v125 = vld [vmem:[%s1 + $0x17c] sm:$0xf]
  %v126 = vld [vmem:[%s1 + $0x180] sm:$0xf]
  %v127 = vld [vmem:[%s1 + $0x184] sm:$0xf]
  %v128 = vld [vmem:[%s1 + $0x188] sm:$0xf]
  %v129 = vld [vmem:[%s1 + $0x18c] sm:$0xf]
  %v130 = vld [vmem:[%s1 + $0x190] sm:$0xf]
  %v131 = vld [vmem:[%s1 + $0x194] sm:$0xf]
  %v132 = vld [vmem:[%s1 + $0x198] sm:$0xf]
  %v133 = vld [vmem:[%s1 + $0x19c] sm:$0xf]
  %v134 = vld [vmem:[%s1 + $0x1a0] sm:$0xf]
  %v135 = vld [vmem:[%s1 + $0x1a4] sm:$0xf]
  %v136 = vld [vmem:[%s1 + $0x1a8] sm:$0xf]
  %v137 = vld [vmem:[%s1 + $0x1ac] sm:$0xf]
  %v138 = vld [vmem:[%s1 + $0x1b0] sm:$0xf]
  %v139 = vld [vmem:[%s1 + $0x1b4] sm:$0xf]
  %v140 = vld [vmem:[%s1 + $0x1b8] sm:$0xf]
  %v141 = vld [vmem:[%s1 + $0x1bc] sm:$0xf]
  %v142 = vld [vmem:[%s1 + $0x1c0] sm:$0xf]
  %v143 = vld [vmem:[%s1 + $0x1c4] sm:$0xf]
  %v144 = vld [vmem:[%s1 + $0x1c8] sm:$0xf]
  %v145 = vld [vmem:[%s1 + $0x1cc] sm:$0xf]
  %v146 = vld [vmem:[%s1 + $0x1d0] sm:$0xf]
  %v147 = vld [vmem:[%s1 + $0x1d4] sm:$0xf]
  %v148 = vld [vmem:[%s1 + $0x1d8] sm:$0xf]
  %v149 = vld [vmem:[%s1 + $0x1dc] sm:$0xf]
  %v150 = vld [vmem:[%s1 + $0x1e0] sm:$0xf]
  %v151 = vld [vmem:[%s1 + $0x1e4] sm:$0xf]
  %v152 = vld [vmem:[%s1 + $0x1e8] sm:$0xf]
  %v153 = vld [vmem:[%s1 + $0x1ec] sm:$0xf]
  %v154 = vld [vmem:[%s1 + $0x1f0] sm:$0xf]
  %v155 = vld [vmem:[%s1 + $0x1f4] sm:$0xf]
  %v156 = vld [vmem:[%s1 + $0x1f8] sm:$0xf]
  %v157 = vld [vmem:[%s1 + $0x1fc] sm:$0xf]
  %v158 = vld [vmem:[%s1 + $0x200] sm:$0xf]
  %v159 = vld [vmem:[%s1 + $0x204] sm:$0xf]
  %v160 = vld [vmem:[%s1 + $0x208] sm:$0xf]
  %v161 = vld [vmem:[%s1 + $0x20c] sm:$0xf]
  %v162 = vld [vmem:[%s1 + $0x210] sm:$0xf]
  %v163 = vld [vmem:[%s1 + $0x214] sm:$0xf]
  %v164 = vld [vmem:[%s1 + $0x218] sm:$0xf]
  %v165 = vld [vmem:[%s1 + $0x21c] sm:$0xf]
  %v166 = vld [vmem:[%s1 + $0x220] sm:$0xf]
  %v167 = vld [vmem:[%s1 + $0x224] sm:$0xf]
  %v168 = vld [vmem:[%s1 + $0x228] sm:$0xf]
  %v169 = vld [vmem:[%s1 + $0x22c] sm:$0xf]
  %v170 = vld [vmem:[%s1 + $0x230] sm:$0xf]
  %v171 = vld [vmem:[%s1 + $0x234] sm:$0xf]
  %v172 = vld [vmem:[%s1 + $0x238] sm:$0xf]
  %v173 = vld [vmem:[%s1 + $0x23c] sm:$0xf]
  %v174 = vld [vmem:[%s1 + $0x240] sm:$0xf]
  %v175 = vld [vmem:[%s1 + $0x244] sm:$0xf]
  %v176 = vld [vmem:[%s1 + $0x248] sm:$0xf]
  %v177 = vld [vmem:[%s1 + $0x24c] sm:$0xf]
  %v178 = vld [vmem:[%s1 + $0x250] sm:$0xf]
  %v179 = vld [vmem:[%s1 + $0x254] sm:$0xf]
  %v180 = vld [vmem:[%s1 + $0x258] sm:$0xf]
  %v181 = vld [vmem:[%s1 + $0x25c] sm:$0xf]
  %v182 = vld [vmem:[%s1 + $0x260] sm:$0xf]
  %v183 = vld [vmem:[%s1 + $0x264] sm:$0xf]
  %v184 = vld [vmem:[%s1 + $0x268] sm:$0xf]
  %v185 = vld [vmem:[%s1 + $0x26c] sm:$0xf]
  %v186 = vld [vmem:[%s1 + $0x270] sm:$0xf]
  %v187 = vld [vmem:[%s1 + $0x274] sm:$0xf]
  %v188 = vld [vmem:[%s1 + $0x278] sm:$0xf]
  %v189 = vld [vmem:[%s1 + $0x27c] sm:$0xf]
  %v190 = vld [vmem:[%s1 + $0x280] sm:$0xf]
  %v191 = vld [vmem:[%s1 + $0x284] sm:$0xf]
  %v192 = vld [vmem:[%s1 + $0x288] sm:$0xf]
  %v193 = vld [vmem:[%s1 + $0x28c] sm:$0xf]
  %v194 = vld [vmem:[%s1 + $0x290] sm:$0xf]
  %v195 = vld [vmem:[%s1 + $0x294] sm:$0xf]
  %v196 = vld [vmem:[%s1 + $0x298] sm:$0xf]
  %v197 = vld [vmem:[%s1 + $0x29c] sm:$0xf]
  %v198 = vld [vmem:[%s1 + $0x2a0] sm:$0xf]
  %v199 = vld [vmem:[%s1 + $0x2a4] sm:$0xf]
  %v200 = vld [vmem:[%s1 + $0x2a8] sm:$0xf]
  %v201 = vld [vmem:[%s1 + $0x2ac] sm:$0xf]
  %v202 = vld [vmem:[%s1 + $0x2b0] sm:$0xf]
  %v203 = vld [vmem:[%s1 + $0x2b4] sm:$0xf]
  %v204 = vld [vmem:[%s1 + $0x2b8] sm:$0xf]
  %v205 = vld [vmem:[%s1 + $0x2bc] sm:$0xf]
  %v206 = vld [vmem:[%s1 + $0x2c0] sm:$0xf]
  %v207 = vld [vmem:[%s1 + $0x2c4] sm:$0xf]
  %v208 = vld [vmem:[%s1 + $0x2c8] sm:$0xf]
  %v209 = vld [vmem:[%s1 + $0x2cc] sm:$0xf]
  %v210 = vld [vmem:[%s1 + $0x2d0] sm:$0xf]
  %v211 = vld [vmem:[%s1 + $0x2d4] sm:$0xf]
  %v212 = vld [vmem:[%s1 + $0x2d8] sm:$0xf]
  %v213 = vld [vmem:[%s1 + $0x2dc] sm:$0xf]
  %v214 = vld [vmem:[%s1 + $0x2e0] sm:$0xf]
  %v215 = vld [vmem:[%s1 + $0x2e4] sm:$0xf]
  %v216 = vld [vmem:[%s1 + $0x2e8] sm:$0xf]
  %v217 = vld [vmem:[%s1 + $0x2ec] sm:$0xf]
  %v218 = vld [vmem:[%s1 + $0x2f0] sm:$0xf]
  %v219 = vld [vmem:[%s1 + $0x2f4] sm:$0xf]
  %v220 = vld [vmem:[%s1 + $0x2f8] sm:$0xf]
  %v221 = vld [vmem:[%s1 + $0x2fc] sm:$0xf]
  %v222 = vld [vmem:[%s1 + $0x300] sm:$0xf]
  %v223 = vld [vmem:[%s1 + $0x304] sm:$0xf]
  %v224 = vld [vmem:[%s1 + $0x308] sm:$0xf]
  %v225 = vld [vmem:[%s1 + $0x30c] sm:$0xf]
  %v226 = vld [vmem:[%s1 + $0x310] sm:$0xf]
  %v227 = vld [vmem:[%s1 + $0x314] sm:$0xf]
  %v228 = vld [vmem:[%s1 + $0x318] sm:$0xf]
  %v229 = vld [vmem:[%s1 + $0x31c] sm:$0xf]
  %v230 = vld [vmem:[%s1 + $0x320] sm:$0xf]
  %v231 = vld [vmem:[%s1 + $0x324] sm:$0xf]
  %v232 = vld [vmem:[%s1 + $0x328] sm:$0xf]
  %v233 = vld [vmem:[%s1 + $0x32c] sm:$0xf]
  %v234 = vld [vmem:[%s1 + $0x330] sm:$0xf]
  %v235 = vld [vmem:[%s1 + $0x334] sm:$0xf]
  %v236 = vld [vmem:[%s1 + $0x338] sm:$0xf]
  %v237 = vld [vmem:[%s1 + $0x33c] sm:$0xf]
  %v238 = vld [vmem:[%s1 + $0x340] sm:$0xf]
  %v239 = vld [vmem:[%s1 + $0x344] sm:$0xf]
  %v240 = vld [vmem:[%s1 + $0x348] sm:$0xf]
  %v241 = vld [vmem:[%s1 + $0x34c] sm:$0xf]
  %v242 = vld [vmem:[%s1 + $0x350] sm:$0xf]
  %v243 = vld [vmem:[%s1 + $0x354] sm:$0xf]
  %v244 = vld [vmem:[%s1 + $0x358] sm:$0xf]
  %v245 = vld [vmem:[%s1 + $0x35c] sm:$0xf]
  %v246 = vld [vmem:[%s1 + $0x360] sm:$0xf]
  %v247 = vld [vmem:[%s1 + $0x364] sm:$0xf]
  %v248 = vld [vmem:[%s1 + $0x368] sm:$0xf]
  %v249 = vld [vmem:[%s1 + $0x36c] sm:$0xf]
  %v250 = vld [vmem:[%s1 + $0x370] sm:$0xf]
  %v251 = vld [vmem:[%s1 + $0x374] sm:$0xf]
  %v252 = vld [vmem:[%s1 + $0x378] sm:$0xf]
  %v253 = vld [vmem:[%s1 + $0x37c] sm:$0xf]
  %v254 = vld [vmem:[%s1 + $0x380] sm:$0xf]
  %v255 = vld [vmem:[%s1 + $0x384] sm:$0xf]
  %v256 = vld [vmem:[%s1 + $0x388] sm:$0xf]
  %v257 = vld [vmem:[%s1 + $0x38c] sm:$0xf]
  %v258 = vld [vmem:[%s1 + $0x390] sm:$0xf]
  %v259 = vld [vmem:[%s1 + $0x394] sm:$0xf]
  %v260 = vld [vmem:[%s1 + $0x398] sm:$0xf]
  %v261 = vld [vmem:[%s1 + $0x39c] sm:$0xf]
  %v262 = vld [vmem:[%s1 + $0x3a0] sm:$0xf]
  %v263 = vld [vmem:[%s1 + $0x3a4] sm:$0xf]
  %v264 = vld [vmem:[%s1 + $0x3a8] sm:$0xf]
  %v265 = vld [vmem:[%s1 + $0x3ac] sm:$0xf]
  %v266 = vld [vmem:[%s1 + $0x3b0] sm:$0xf]
  %v267 = vld [vmem:[%s1 + $0x3b4] sm:$0xf]
  %v268 = vld [vmem:[%s1 + $0x3b8] sm:$0xf]
  %v269 = vld [vmem:[%s1 + $0x3bc] sm:$0xf]
  %v270 = vld [vmem:[%s1 + $0x3c0] sm:$0xf]
  %v271 = vld [vmem:[%s1 + $0x3c4] sm:$0xf]
  %v272 = vld [vmem:[%s1 + $0x3c8] sm:$0xf]
  %v273 = vld [vmem:[%s1 + $0x3cc] sm:$0xf]
  %v274 = vld [vmem:[%s1 + $0x3d0] sm:$0xf]
  %v275 = vld [vmem:[%s1 + $0x3d4] sm:$0xf]
  %v276 = vld [vmem:[%s1 + $0x3d8] sm:$0xf]
  %v277 = vld [vmem:[%s1 + $0x3dc] sm:$0xf]
  %v278 = vld [vmem:[%s1 + $0x3e0] sm:$0xf]
  %v279 = vld [vmem:[%s1 + $0x3e4] sm:$0xf]
  %v280 = vld [vmem:[%s1 + $0x3e8] sm:$0xf]
  %v281 = vld [vmem:[%s1 + $0x3ec] sm:$0xf]
  %v282 = vld [vmem:[%s1 + $0x3f0] sm:$0xf]
  %v283 = vld [vmem:[%s1 + $0x3f4] sm:$0xf]
  %v284 = vld [vmem:[%s1 + $0x3f8] sm:$0xf]
  %v285 = vld [vmem:[%s1 + $0x3fc] sm:$0xf]
  %v286 = vld [vmem:[%s1 + $0x400] sm:$0xf]
  %v287 = vld [vmem:[%s1 + $0x404] sm:$0xf]
  %v288 = vld [vmem:[%s1 + $0x408] sm:$0xf]
  %v289 = vld [vmem:[%s1 + $0x40c] sm:$0xf]
  %v290 = vld [vmem:[%s1 + $0x410] sm:$0xf]
  %v291 = vld [vmem:[%s1 + $0x414] sm:$0xf]
  %v292 = vld [vmem:[%s1 + $0x418] sm:$0xf]
  %v293 = vld [vmem:[%s1 + $0x41c] sm:$0xf]
  %v294 = vld [vmem:[%s1 + $0x420] sm:$0xf]
  %v295 = vld [vmem:[%s1 + $0x424] sm:$0xf]
  %v296 = vld [vmem:[%s1 + $0x428] sm:$0xf]
  %v297 = vld [vmem:[%s1 + $0x42c] sm:$0xf]
  %v298 = vld [vmem:[%s1 + $0x430] sm:$0xf]
  %v299 = vld [vmem:[%s1 + $0x434] sm:$0xf]
  %v300 = vld [vmem:[%s1 + $0x438] sm:$0xf]
  %v301 = vld [vmem:[%s1 + $0x43c] sm:$0xf]
  %v302 = vld [vmem:[%s1 + $0x440] sm:$0xf]
  %v303 = vld [vmem:[%s1 + $0x444] sm:$0xf]
  %v304 = vld [vmem:[%s1 + $0x448] sm:$0xf]
  %v305 = vld [vmem:[%s1 + $0x44c] sm:$0xf]
  %v306 = vld [vmem:[%s1 + $0x450] sm:$0xf]
  %v307 = vld [vmem:[%s1 + $0x454] sm:$0xf]
  %v308 = vld [vmem:[%s1 + $0x458] sm:$0xf]
  %v309 = vld [vmem:[%s1 + $0x45c] sm:$0xf]
  %v310 = vld [vmem:[%s1 + $0x460] sm:$0xf]
  %v311 = vld [vmem:[%s1 + $0x464] sm:$0xf]
  %v312 = vld [vmem:[%s1 + $0x468] sm:$0xf]
  %v313 = vld [vmem:[%s1 + $0x46c] sm:$0xf]
  %v314 = vld [vmem:[%s1 + $0x470] sm:$0xf]
  %v315 = vld [vmem:[%s1 + $0x474] sm:$0xf]
  %v316 = vld [vmem:[%s1 + $0x478] sm:$0xf]
  %v317 = vld [vmem:[%s1 + $0x47c] sm:$0xf]
  %v318 = vld [vmem:[%s1 + $0x480] sm:$0xf]
  %v319 = vld [vmem:[%s1 + $0x484] sm:$0xf]
  %v320 = vld [vmem:[%s1 + $0x488] sm:$0xf]
  %v321 = vld [vmem:[%s1 + $0x48c] sm:$0xf]
  %v322 = vld [vmem:[%s1 + $0x490] sm:$0xf]
  %v323 = vld [vmem:[%s1 + $0x494] sm:$0xf]
  %v324 = vld [vmem:[%s1 + $0x498] sm:$0xf]
  %v325 = vld [vmem:[%s1 + $0x49c] sm:$0xf]
  %v326 = vld [vmem:[%s1 + $0x4a0] sm:$0xf]
  %v327 = vld [vmem:[%s1 + $0x4a4] sm:$0xf]
  %v328 = vld [vmem:[%s1 + $0x4a8] sm:$0xf]
  %v329 = vld [vmem:[%s1 + $0x4ac] sm:$0xf]
  %v330 = vld [vmem:[%s1 + $0x4b0] sm:$0xf]
  %v331 = vld [vmem:[%s1 + $0x4b4] sm:$0xf]
  %v332 = vld [vmem:[%s1 + $0x4b8] sm:$0xf]
  %v333 = vld [vmem:[%s1 + $0x4bc] sm:$0xf]
  %v334 = vld [vmem:[%s1 + $0x4c0] sm:$0xf]
  %v335 = vld [vmem:[%s1 + $0x4c4] sm:$0xf]
  %v336 = vld [vmem:[%s1 + $0x4c8] sm:$0xf]
  %v337 = vld [vmem:[%s1 + $0x4cc] sm:$0xf]
  %v338 = vld [vmem:[%s1 + $0x4d0] sm:$0xf]
  %v339 = vld [vmem:[%s1 + $0x4d4] sm:$0xf]
  %v340 = vld [vmem:[%s1 + $0x4d8] sm:$0xf]
  %v341 = vld [vmem:[%s1 + $0x4dc] sm:$0xf]
  %v342 = vld [vmem:[%s1 + $0x4e0] sm:$0xf]
  %v343 = vld [vmem:[%s1 + $0x4e4] sm:$0xf]
  %v344 = vld [vmem:[%s1 + $0x4e8] sm:$0xf]
  %v345 = vld [vmem:[%s1 + $0x4ec] sm:$0xf]
  %v346 = vld [vmem:[%s1 + $0x4f0] sm:$0xf]
  %v347 = vld [vmem:[%s1 + $0x4f4] sm:$0xf]
  %v348 = vld [vmem:[%s1 + $0x4f8] sm:$0xf]
  %v349 = vld [vmem:[%s1 + $0x4fc] sm:$0xf]
  %v350 = vld [vmem:[%s1 + $0x500] sm:$0xf]
  %v351 = vld [vmem:[%s1 + $0x504] sm:$0xf]
  %v352 = vld [vmem:[%s1 + $0x508] sm:$0xf]
  %v353 = vld [vmem:[%s1 + $0x50c] sm:$0xf]
  %v354 = vld [vmem:[%s1 + $0x510] sm:$0xf]
  %v355 = vld [vmem:[%s1 + $0x514] sm:$0xf]
  %v356 = vld [vmem:[%s1 + $0x518] sm:$0xf]
  %v357 = vld [vmem:[%s1 + $0x51c] sm:$0xf]
  %v358 = vld [vmem:[%s1 + $0x520] sm:$0xf]
  %v359 = vld [vmem:[%s1 + $0x524] sm:$0xf]
  %v360 = vld [vmem:[%s1 + $0x528] sm:$0xf]
  %v361 = vld [vmem:[%s1 + $0x52c] sm:$0xf]
  %v362 = vld [vmem:[%s1 + $0x530] sm:$0xf]
  %v363 = vld [vmem:[%s1 + $0x534] sm:$0xf]
  %v364 = vld [vmem:[%s1 + $0x538] sm:$0xf]
  %v365 = vld [vmem:[%s1 + $0x53c] sm:$0xf]
  %v366 = vld [vmem:[%s1 + $0x540] sm:$0xf]
  %v367 = vld [vmem:[%s1 + $0x544] sm:$0xf]
  %v368 = vld [vmem:[%s1 + $0x548] sm:$0xf]
  %v369 = vld [vmem:[%s1 + $0x54c] sm:$0xf]
  %v370 = vld [vmem:[%s1 + $0x550] sm:$0xf]
  %v371 = vld [vmem:[%s1 + $0x554] sm:$0xf]
  %v372 = vld [vmem:[%s1 + $0x558] sm:$0xf]
  %v373 = vld [vmem:[%s1 + $0x55c] sm:$0xf]
  %v374 = vld [vmem:[%s1 + $0x560] sm:$0xf]
  %v375 = vld [vmem:[%s1 + $0x564] sm:$0xf]
  %v376 = vld [vmem:[%s1 + $0x568] sm:$0xf]
  %v377 = vld [vmem:[%s1 + $0x56c] sm:$0xf]
  %v378 = vld [vmem:[%s1 + $0x570] sm:$0xf]
  %v379 = vld [vmem:[%s1 + $0x574] sm:$0xf]
  %v380 = vld [vmem:[%s1 + $0x578] sm:$0xf]
  %v381 = vld [vmem:[%s1 + $0x57c] sm:$0xf]
  %v382 = vld [vmem:[%s1 + $0x580] sm:$0xf]
  %v383 = vld [vmem:[%s1 + $0x584] sm:$0xf]
  %v384 = vld [vmem:[%s1 + $0x588] sm:$0xf]
  %v385 = vld [vmem:[%s1 + $0x58c] sm:$0xf]
  %v386 = vld [vmem:[%s1 + $0x590] sm:$0xf]
  %v387 = vld [vmem:[%s1 + $0x594] sm:$0xf]
  %v388 = vld [vmem:[%s1 + $0x598] sm:$0xf]
  %v389 = vld [vmem:[%s1 + $0x59c] sm:$0xf]
  %v390 = vld [vmem:[%s1 + $0x5a0] sm:$0xf]
  %v391 = vld [vmem:[%s1 + $0x5a4] sm:$0xf]
  %v392 = vld [vmem:[%s1 + $0x5a8] sm:$0xf]
  %v393 = vld [vmem:[%s1 + $0x5ac] sm:$0xf]
  %v394 = vld [vmem:[%s1 + $0x5b0] sm:$0xf]
  %v395 = vld [vmem:[%s1 + $0x5b4] sm:$0xf]
  %v396 = vld [vmem:[%s1 + $0x5b8] sm:$0xf]
  %v397 = vld [vmem:[%s1 + $0x5bc] sm:$0xf]
  %v398 = vld [vmem:[%s1 + $0x5c0] sm:$0xf]
  %v399 = vld [vmem:[%s1 + $0x5c4] sm:$0xf]
  %v400 = vld [vmem:[%s1 + $0x5c8] sm:$0xf]
  %v401 = vld [vmem:[%s1 + $0x5cc] sm:$0xf]
  %v402 = vld [vmem:[%s1 + $0x5d0] sm:$0xf]
  %v403 = vld [vmem:[%s1 + $0x5d4] sm:$0xf]
  %v404 = vld [vmem:[%s1 + $0x5d8] sm:$0xf]
  %v405 = vld [vmem:[%s1 + $0x5dc] sm:$0xf]
  %v406 = vld [vmem:[%s1 + $0x5e0] sm:$0xf]
  %v407 = vld [vmem:[%s1 + $0x5e4] sm:$0xf]
  %v408 = vld [vmem:[%s1 + $0x5e8] sm:$0xf]
  %v409 = vld [vmem:[%s1 + $0x5ec] sm:$0xf]
  %v410 = vld [vmem:[%s1 + $0x5f0] sm:$0xf]
  %v411 = vld [vmem:[%s1 + $0x5f4] sm:$0xf]
  %v412 = vld [vmem:[%s1 + $0x5f8] sm:$0xf]
  %v413 = vld [vmem:[%s1 + $0x5fc] sm:$0xf]
  %v426 = vunpack.c.l.b16 %v18
  %v427 = vunpack.c.h.b16 %v18
  %v428 = vunpack.c.l.b16 %v19
  %v429 = vunpack.c.h.b16 %v19
  %v430 = vunpack.c.l.b16 %v20
  %v431 = vunpack.c.h.b16 %v20
  %v432 = vunpack.c.l.b16 %v21
  %v433 = vunpack.c.h.b16 %v21
  %v434 = vunpack.c.l.b16 %v22
  %v435 = vunpack.c.h.b16 %v22
  %v436 = vunpack.c.l.b16 %v23
  %v437 = vunpack.c.h.b16 %v23
  %v438 = vunpack.c.l.b16 %v24
  %v439 = vunpack.c.h.b16 %v24
  %v440 = vunpack.c.l.b16 %v25
  %v441 = vunpack.c.h.b16 %v25
  %v442 = vunpack.c.l.b16 %v26
  %v443 = vunpack.c.h.b16 %v26
  %v444 = vunpack.c.l.b16 %v27
  %v445 = vunpack.c.h.b16 %v27
  %v446 = vunpack.c.l.b16 %v28
  %v447 = vunpack.c.h.b16 %v28
  %v448 = vunpack.c.l.b16 %v29
  %v449 = vunpack.c.h.b16 %v29
  %v450 = vpack.c.b16 %v426, %v426
  %v451 = vpack.c.b16 %v427, %v427
  %v452 = vpack.c.b16 %v428, %v428
  %v453 = vpack.c.b16 %v429, %v429
  %v454 = vpack.c.b16 %v430, %v430
  %v455 = vpack.c.b16 %v431, %v431
  %v456 = vpack.c.b16 %v432, %v432
  %v457 = vpack.c.b16 %v433, %v433
  %v458 = vpack.c.b16 %v434, %v434
  %v459 = vpack.c.b16 %v435, %v435
  %v460 = vpack.c.b16 %v436, %v436
  %v461 = vpack.c.b16 %v437, %v437
  %v462 = vpack.c.b16 %v438, %v438
  %v463 = vpack.c.b16 %v439, %v439
  %v464 = vpack.c.b16 %v440, %v440
  %v465 = vpack.c.b16 %v441, %v441
  %v466 = vpack.c.b16 %v442, %v442
  %v467 = vpack.c.b16 %v443, %v443
  %v468 = vpack.c.b16 %v444, %v444
  %v469 = vpack.c.b16 %v445, %v445
  %v470 = vpack.c.b16 %v446, %v446
  %v471 = vpack.c.b16 %v447, %v447
  %v472 = vpack.c.b16 %v448, %v448
  %v473 = vpack.c.b16 %v449, %v449
  %v882 = vunpack.c.l.b16 %v30
  %v883 = vunpack.c.l.b16 %v31
  %v884 = vunpack.c.l.b16 %v32
  %v885 = vunpack.c.l.b16 %v33
  %v886 = vunpack.c.l.b16 %v34
  %v887 = vunpack.c.l.b16 %v35
  %v888 = vunpack.c.l.b16 %v36
  %v889 = vunpack.c.l.b16 %v37
  %v890 = vunpack.c.l.b16 %v38
  %v891 = vunpack.c.l.b16 %v39
  %v892 = vunpack.c.l.b16 %v40
  %v893 = vunpack.c.l.b16 %v41
  %v894 = vunpack.c.l.b16 %v42
  %v895 = vunpack.c.l.b16 %v43
  %v896 = vunpack.c.l.b16 %v44
  %v897 = vunpack.c.l.b16 %v45
  %v898 = vunpack.c.l.b16 %v46
  %v899 = vunpack.c.l.b16 %v47
  %v900 = vunpack.c.l.b16 %v48
  %v901 = vunpack.c.l.b16 %v49
  %v902 = vunpack.c.l.b16 %v50
  %v903 = vunpack.c.l.b16 %v51
  %v904 = vunpack.c.l.b16 %v52
  %v905 = vunpack.c.l.b16 %v53
  %v906 = vunpack.c.l.b16 %v54
  %v907 = vunpack.c.l.b16 %v55
  %v908 = vunpack.c.l.b16 %v56
  %v909 = vunpack.c.l.b16 %v57
  %v910 = vunpack.c.l.b16 %v58
  %v911 = vunpack.c.l.b16 %v59
  %v912 = vunpack.c.l.b16 %v60
  %v913 = vunpack.c.l.b16 %v61
  %v914 = vunpack.c.l.b16 %v62
  %v915 = vunpack.c.l.b16 %v63
  %v916 = vunpack.c.l.b16 %v64
  %v917 = vunpack.c.l.b16 %v65
  %v918 = vunpack.c.l.b16 %v66
  %v919 = vunpack.c.l.b16 %v67
  %v920 = vunpack.c.l.b16 %v68
  %v921 = vunpack.c.l.b16 %v69
  %v922 = vunpack.c.l.b16 %v70
  %v923 = vunpack.c.l.b16 %v71
  %v924 = vunpack.c.l.b16 %v72
  %v925 = vunpack.c.l.b16 %v73
  %v926 = vunpack.c.l.b16 %v74
  %v927 = vunpack.c.l.b16 %v75
  %v928 = vunpack.c.l.b16 %v76
  %v929 = vunpack.c.l.b16 %v77
  %v930 = vunpack.c.l.b16 %v78
  %v931 = vunpack.c.l.b16 %v79
  %v932 = vunpack.c.l.b16 %v80
  %v933 = vunpack.c.l.b16 %v81
  %v934 = vunpack.c.l.b16 %v82
  %v935 = vunpack.c.l.b16 %v83
  %v936 = vunpack.c.l.b16 %v84
  %v937 = vunpack.c.l.b16 %v85
  %v938 = vunpack.c.l.b16 %v86
  %v939 = vunpack.c.l.b16 %v87
  %v940 = vunpack.c.l.b16 %v88
  %v941 = vunpack.c.l.b16 %v89
  %v942 = vunpack.c.l.b16 %v90
  %v943 = vunpack.c.l.b16 %v91
  %v944 = vunpack.c.l.b16 %v92
  %v945 = vunpack.c.l.b16 %v93
  %v946 = vunpack.c.l.b16 %v94
  %v947 = vunpack.c.l.b16 %v95
  %v948 = vunpack.c.l.b16 %v96
  %v949 = vunpack.c.l.b16 %v97
  %v950 = vunpack.c.l.b16 %v98
  %v951 = vunpack.c.l.b16 %v99
  %v952 = vunpack.c.l.b16 %v100
  %v953 = vunpack.c.l.b16 %v101
  %v954 = vunpack.c.l.b16 %v102
  %v955 = vunpack.c.l.b16 %v103
  %v956 = vunpack.c.l.b16 %v104
  %v957 = vunpack.c.l.b16 %v105
  %v958 = vunpack.c.l.b16 %v106
  %v959 = vunpack.c.l.b16 %v107
  %v960 = vunpack.c.l.b16 %v108
  %v961 = vunpack.c.l.b16 %v109
  %v962 = vunpack.c.l.b16 %v110
  %v963 = vunpack.c.l.b16 %v111
  %v964 = vunpack.c.l.b16 %v112
  %v965 = vunpack.c.l.b16 %v113
  %v966 = vunpack.c.l.b16 %v114
  %v967 = vunpack.c.l.b16 %v115
  %v968 = vunpack.c.l.b16 %v116
  %v969 = vunpack.c.l.b16 %v117
  %v970 = vunpack.c.l.b16 %v118
  %v971 = vunpack.c.l.b16 %v119
  %v972 = vunpack.c.l.b16 %v120
  %v973 = vunpack.c.l.b16 %v121
  %v974 = vunpack.c.l.b16 %v122
  %v975 = vunpack.c.l.b16 %v123
  %v976 = vunpack.c.l.b16 %v124
  %v977 = vunpack.c.l.b16 %v125
  %v978 = vunpack.c.l.b16 %v126
  %v979 = vunpack.c.l.b16 %v127
  %v980 = vunpack.c.l.b16 %v128
  %v981 = vunpack.c.l.b16 %v129
  %v982 = vunpack.c.l.b16 %v130
  %v983 = vunpack.c.l.b16 %v131
  %v984 = vunpack.c.l.b16 %v132
  %v985 = vunpack.c.l.b16 %v133
  %v986 = vunpack.c.l.b16 %v134
  %v987 = vunpack.c.l.b16 %v135
  %v988 = vunpack.c.l.b16 %v136
  %v989 = vunpack.c.l.b16 %v137
  %v990 = vunpack.c.l.b16 %v138
  %v991 = vunpack.c.l.b16 %v139
  %v992 = vunpack.c.l.b16 %v140
  %v993 = vunpack.c.l.b16 %v141
  %v994 = vunpack.c.l.b16 %v142
  %v995 = vunpack.c.l.b16 %v143
  %v996 = vunpack.c.l.b16 %v144
  %v997 = vunpack.c.l.b16 %v145
  %v998 = vunpack.c.l.b16 %v146
  %v999 = vunpack.c.l.b16 %v147
  %v1000 = vunpack.c.l.b16 %v148
  %v1001 = vunpack.c.l.b16 %v149
  %v1002 = vunpack.c.l.b16 %v150
  %v1003 = vunpack.c.l.b16 %v151
  %v1004 = vunpack.c.l.b16 %v152
  %v1005 = vunpack.c.l.b16 %v153
  %v1006 = vunpack.c.l.b16 %v154
  %v1007 = vunpack.c.l.b16 %v155
  %v1008 = vunpack.c.l.b16 %v156
  %v1009 = vunpack.c.l.b16 %v157
  %v1010 = vunpack.c.l.b16 %v158
  %v1011 = vunpack.c.l.b16 %v159
  %v1012 = vunpack.c.l.b16 %v160
  %v1013 = vunpack.c.l.b16 %v161
  %v1014 = vunpack.c.l.b16 %v162
  %v1015 = vunpack.c.l.b16 %v163
  %v1016 = vunpack.c.l.b16 %v164
  %v1017 = vunpack.c.l.b16 %v165
  %v1018 = vunpack.c.l.b16 %v166
  %v1019 = vunpack.c.l.b16 %v167
  %v1020 = vunpack.c.l.b16 %v168
  %v1021 = vunpack.c.l.b16 %v169
  %v1022 = vunpack.c.l.b16 %v170
  %v1023 = vunpack.c.l.b16 %v171
  %v1024 = vunpack.c.l.b16 %v172
  %v1025 = vunpack.c.l.b16 %v173
  %v1026 = vunpack.c.l.b16 %v174
  %v1027 = vunpack.c.l.b16 %v175
  %v1028 = vunpack.c.l.b16 %v176
  %v1029 = vunpack.c.l.b16 %v177
  %v1030 = vunpack.c.l.b16 %v178
  %v1031 = vunpack.c.l.b16 %v179
  %v1032 = vunpack.c.l.b16 %v180
  %v1033 = vunpack.c.l.b16 %v181
  %v1034 = vunpack.c.l.b16 %v182
  %v1035 = vunpack.c.l.b16 %v183
  %v1036 = vunpack.c.l.b16 %v184
  %v1037 = vunpack.c.l.b16 %v185
  %v1038 = vunpack.c.l.b16 %v186
  %v1039 = vunpack.c.l.b16 %v187
  %v1040 = vunpack.c.l.b16 %v188
  %v1041 = vunpack.c.l.b16 %v189
  %v1042 = vunpack.c.l.b16 %v190
  %v1043 = vunpack.c.l.b16 %v191
  %v1044 = vunpack.c.l.b16 %v192
  %v1045 = vunpack.c.l.b16 %v193
  %v1046 = vunpack.c.l.b16 %v194
  %v1047 = vunpack.c.l.b16 %v195
  %v1048 = vunpack.c.l.b16 %v196
  %v1049 = vunpack.c.l.b16 %v197
  %v1050 = vunpack.c.l.b16 %v198
  %v1051 = vunpack.c.l.b16 %v199
  %v1052 = vunpack.c.l.b16 %v200
  %v1053 = vunpack.c.l.b16 %v201
  %v1054 = vunpack.c.l.b16 %v202
  %v1055 = vunpack.c.l.b16 %v203
  %v1056 = vunpack.c.l.b16 %v204
  %v1057 = vunpack.c.l.b16 %v205
  %v1058 = vunpack.c.l.b16 %v206
  %v1059 = vunpack.c.l.b16 %v207
  %v1060 = vunpack.c.l.b16 %v208
  %v1061 = vunpack.c.l.b16 %v209
  %v1062 = vunpack.c.l.b16 %v210
  %v1063 = vunpack.c.l.b16 %v211
  %v1064 = vunpack.c.l.b16 %v212
  %v1065 = vunpack.c.l.b16 %v213
  %v1066 = vunpack.c.l.b16 %v214
  %v1067 = vunpack.c.l.b16 %v215
  %v1068 = vunpack.c.l.b16 %v216
  %v1069 = vunpack.c.l.b16 %v217
  %v1070 = vunpack.c.l.b16 %v218
  %v1071 = vunpack.c.l.b16 %v219
  %v1072 = vunpack.c.l.b16 %v220
  %v1073 = vunpack.c.l.b16 %v221
  %v1074 = vunpack.c.l.b16 %v222
  %v1075 = vunpack.c.l.b16 %v223
  %v1076 = vunpack.c.l.b16 %v224
  %v1077 = vunpack.c.l.b16 %v225
  %v1078 = vunpack.c.l.b16 %v226
  %v1079 = vunpack.c.l.b16 %v227
  %v1080 = vunpack.c.l.b16 %v228
  %v1081 = vunpack.c.l.b16 %v229
  %v1082 = vunpack.c.l.b16 %v230
  %v1083 = vunpack.c.l.b16 %v231
  %v1084 = vunpack.c.l.b16 %v232
  %v1085 = vunpack.c.l.b16 %v233
  %v1086 = vunpack.c.l.b16 %v234
  %v1087 = vunpack.c.l.b16 %v235
  %v1088 = vunpack.c.l.b16 %v236
  %v1089 = vunpack.c.l.b16 %v237
  %v1090 = vunpack.c.l.b16 %v238
  %v1091 = vunpack.c.l.b16 %v239
  %v1092 = vunpack.c.l.b16 %v240
  %v1093 = vunpack.c.l.b16 %v241
  %v1094 = vunpack.c.l.b16 %v242
  %v1095 = vunpack.c.l.b16 %v243
  %v1096 = vunpack.c.l.b16 %v244
  %v1097 = vunpack.c.l.b16 %v245
  %v1098 = vunpack.c.l.b16 %v246
  %v1099 = vunpack.c.l.b16 %v247
  %v1100 = vunpack.c.l.b16 %v248
  %v1101 = vunpack.c.l.b16 %v249
  %v1102 = vunpack.c.l.b16 %v250
  %v1103 = vunpack.c.l.b16 %v251
  %v1104 = vunpack.c.l.b16 %v252
  %v1105 = vunpack.c.l.b16 %v253
  %v1106 = vunpack.c.l.b16 %v254
  %v1107 = vunpack.c.l.b16 %v255
  %v1108 = vunpack.c.l.b16 %v256
  %v1109 = vunpack.c.l.b16 %v257
  %v1110 = vunpack.c.l.b16 %v258
  %v1111 = vunpack.c.l.b16 %v259
  %v1112 = vunpack.c.l.b16 %v260
  %v1113 = vunpack.c.l.b16 %v261
  %v1114 = vunpack.c.l.b16 %v262
  %v1115 = vunpack.c.l.b16 %v263
  %v1116 = vunpack.c.l.b16 %v264
  %v1117 = vunpack.c.l.b16 %v265
  %v1118 = vunpack.c.l.b16 %v266
  %v1119 = vunpack.c.l.b16 %v267
  %v1120 = vunpack.c.l.b16 %v268
  %v1121 = vunpack.c.l.b16 %v269
  %v1122 = vunpack.c.l.b16 %v270
  %v1123 = vunpack.c.l.b16 %v271
  %v1124 = vunpack.c.l.b16 %v272
  %v1125 = vunpack.c.l.b16 %v273
  %v1126 = vunpack.c.l.b16 %v274
  %v1127 = vunpack.c.l.b16 %v275
  %v1128 = vunpack.c.l.b16 %v276
  %v1129 = vunpack.c.l.b16 %v277
  %v1130 = vunpack.c.l.b16 %v278
  %v1131 = vunpack.c.l.b16 %v279
  %v1132 = vunpack.c.l.b16 %v280
  %v1133 = vunpack.c.l.b16 %v281
  %v1134 = vunpack.c.l.b16 %v282
  %v1135 = vunpack.c.l.b16 %v283
  %v1136 = vunpack.c.l.b16 %v284
  %v1137 = vunpack.c.l.b16 %v285
  %v1138 = vunpack.c.l.b16 %v286
  %v1139 = vunpack.c.l.b16 %v287
  %v1140 = vunpack.c.l.b16 %v288
  %v1141 = vunpack.c.l.b16 %v289
  %v1142 = vunpack.c.l.b16 %v290
  %v1143 = vunpack.c.l.b16 %v291
  %v1144 = vunpack.c.l.b16 %v292
  %v1145 = vunpack.c.l.b16 %v293
  %v1146 = vunpack.c.l.b16 %v294
  %v1147 = vunpack.c.l.b16 %v295
  %v1148 = vunpack.c.l.b16 %v296
  %v1149 = vunpack.c.l.b16 %v297
  %v1150 = vunpack.c.l.b16 %v298
  %v1151 = vunpack.c.l.b16 %v299
  %v1152 = vunpack.c.l.b16 %v300
  %v1153 = vunpack.c.l.b16 %v301
  %v1154 = vunpack.c.l.b16 %v302
  %v1155 = vunpack.c.l.b16 %v303
  %v1156 = vunpack.c.l.b16 %v304
  %v1157 = vunpack.c.l.b16 %v305
  %v1158 = vunpack.c.l.b16 %v306
  %v1159 = vunpack.c.l.b16 %v307
  %v1160 = vunpack.c.l.b16 %v308
  %v1161 = vunpack.c.l.b16 %v309
  %v1162 = vunpack.c.l.b16 %v310
  %v1163 = vunpack.c.l.b16 %v311
  %v1164 = vunpack.c.l.b16 %v312
  %v1165 = vunpack.c.l.b16 %v313
  %v1166 = vunpack.c.l.b16 %v314
  %v1167 = vunpack.c.l.b16 %v315
  %v1168 = vunpack.c.l.b16 %v316
  %v1169 = vunpack.c.l.b16 %v317
  %v1170 = vunpack.c.l.b16 %v318
  %v1171 = vunpack.c.l.b16 %v319
  %v1172 = vunpack.c.l.b16 %v320
  %v1173 = vunpack.c.l.b16 %v321
  %v1174 = vunpack.c.l.b16 %v322
  %v1175 = vunpack.c.l.b16 %v323
  %v1176 = vunpack.c.l.b16 %v324
  %v1177 = vunpack.c.l.b16 %v325
  %v1178 = vunpack.c.l.b16 %v326
  %v1179 = vunpack.c.l.b16 %v327
  %v1180 = vunpack.c.l.b16 %v328
  %v1181 = vunpack.c.l.b16 %v329
  %v1182 = vunpack.c.l.b16 %v330
  %v1183 = vunpack.c.l.b16 %v331
  %v1184 = vunpack.c.l.b16 %v332
  %v1185 = vunpack.c.l.b16 %v333
  %v1186 = vunpack.c.l.b16 %v334
  %v1187 = vunpack.c.l.b16 %v335
  %v1188 = vunpack.c.l.b16 %v336
  %v1189 = vunpack.c.l.b16 %v337
  %v1190 = vunpack.c.l.b16 %v338
  %v1191 = vunpack.c.l.b16 %v339
  %v1192 = vunpack.c.l.b16 %v340
  %v1193 = vunpack.c.l.b16 %v341
  %v1194 = vunpack.c.l.b16 %v342
  %v1195 = vunpack.c.l.b16 %v343
  %v1196 = vunpack.c.l.b16 %v344
  %v1197 = vunpack.c.l.b16 %v345
  %v1198 = vunpack.c.l.b16 %v346
  %v1199 = vunpack.c.l.b16 %v347
  %v1200 = vunpack.c.l.b16 %v348
  %v1201 = vunpack.c.l.b16 %v349
  %v1202 = vunpack.c.l.b16 %v350
  %v1203 = vunpack.c.l.b16 %v351
  %v1204 = vunpack.c.l.b16 %v352
  %v1205 = vunpack.c.l.b16 %v353
  %v1206 = vunpack.c.l.b16 %v354
  %v1207 = vunpack.c.l.b16 %v355
  %v1208 = vunpack.c.l.b16 %v356
  %v1209 = vunpack.c.l.b16 %v357
  %v1210 = vunpack.c.l.b16 %v358
  %v1211 = vunpack.c.l.b16 %v359
  %v1212 = vunpack.c.l.b16 %v360
  %v1213 = vunpack.c.l.b16 %v361
  %v1214 = vunpack.c.l.b16 %v362
  %v1215 = vunpack.c.l.b16 %v363
  %v1216 = vunpack.c.l.b16 %v364
  %v1217 = vunpack.c.l.b16 %v365
  %v1218 = vunpack.c.l.b16 %v366
  %v1219 = vunpack.c.l.b16 %v367
  %v1220 = vunpack.c.l.b16 %v368
  %v1221 = vunpack.c.l.b16 %v369
  %v1222 = vunpack.c.l.b16 %v370
  %v1223 = vunpack.c.l.b16 %v371
  %v1224 = vunpack.c.l.b16 %v372
  %v1225 = vunpack.c.l.b16 %v373
  %v1226 = vunpack.c.l.b16 %v374
  %v1227 = vunpack.c.l.b16 %v375
  %v1228 = vunpack.c.l.b16 %v376
  %v1229 = vunpack.c.l.b16 %v377
  %v1230 = vunpack.c.l.b16 %v378
  %v1231 = vunpack.c.l.b16 %v379
  %v1232 = vunpack.c.l.b16 %v380
  %v1233 = vunpack.c.l.b16 %v381
  %v1234 = vunpack.c.l.b16 %v382
  %v1235 = vunpack.c.l.b16 %v383
  %v1236 = vunpack.c.l.b16 %v384
  %v1237 = vunpack.c.l.b16 %v385
  %v1238 = vunpack.c.l.b16 %v386
  %v1239 = vunpack.c.l.b16 %v387
  %v1240 = vunpack.c.l.b16 %v388
  %v1241 = vunpack.c.l.b16 %v389
  %v1242 = vunpack.c.l.b16 %v390
  %v1243 = vunpack.c.l.b16 %v391
  %v1244 = vunpack.c.l.b16 %v392
  %v1245 = vunpack.c.l.b16 %v393
  %v1246 = vunpack.c.l.b16 %v394
  %v1247 = vunpack.c.l.b16 %v395
  %v1248 = vunpack.c.l.b16 %v396
  %v1249 = vunpack.c.l.b16 %v397
  %v1250 = vunpack.c.l.b16 %v398
  %v1251 = vunpack.c.l.b16 %v399
  %v1252 = vunpack.c.l.b16 %v400
  %v1253 = vunpack.c.l.b16 %v401
  %v1254 = vunpack.c.l.b16 %v402
  %v1255 = vunpack.c.l.b16 %v403
  %v1256 = vunpack.c.l.b16 %v404
  %v1257 = vunpack.c.l.b16 %v405
  %v1258 = vunpack.c.l.b16 %v406
  %v1259 = vunpack.c.l.b16 %v407
  %v1260 = vunpack.c.l.b16 %v408
  %v1261 = vunpack.c.l.b16 %v409
  %v1262 = vunpack.c.l.b16 %v410
  %v1263 = vunpack.c.l.b16 %v411
  %v1264 = vunpack.c.l.b16 %v412
  %v1265 = vunpack.c.l.b16 %v413
  %v1266 = vpack.c.b16 %v883, %v882
  %v1267 = vpack.c.b16 %v885, %v884
  %v1268 = vpack.c.b16 %v887, %v886
  %v1269 = vpack.c.b16 %v889, %v888
  %v1270 = vpack.c.b16 %v891, %v890
  %v1271 = vpack.c.b16 %v893, %v892
  %v1272 = vpack.c.b16 %v895, %v894
  %v1273 = vpack.c.b16 %v897, %v896
  %v1274 = vpack.c.b16 %v899, %v898
  %v1275 = vpack.c.b16 %v901, %v900
  %v1276 = vpack.c.b16 %v903, %v902
  %v1277 = vpack.c.b16 %v905, %v904
  %v1278 = vpack.c.b16 %v907, %v906
  %v1279 = vpack.c.b16 %v909, %v908
  %v1280 = vpack.c.b16 %v911, %v910
  %v1281 = vpack.c.b16 %v913, %v912
  %v1282 = vpack.c.b16 %v915, %v914
  %v1283 = vpack.c.b16 %v917, %v916
  %v1284 = vpack.c.b16 %v919, %v918
  %v1285 = vpack.c.b16 %v921, %v920
  %v1286 = vpack.c.b16 %v923, %v922
  %v1287 = vpack.c.b16 %v925, %v924
  %v1288 = vpack.c.b16 %v927, %v926
  %v1289 = vpack.c.b16 %v929, %v928
  %v1290 = vpack.c.b16 %v931, %v930
  %v1291 = vpack.c.b16 %v933, %v932
  %v1292 = vpack.c.b16 %v935, %v934
  %v1293 = vpack.c.b16 %v937, %v936
  %v1294 = vpack.c.b16 %v939, %v938
  %v1295 = vpack.c.b16 %v941, %v940
  %v1296 = vpack.c.b16 %v943, %v942
  %v1297 = vpack.c.b16 %v945, %v944
  %v1298 = vpack.c.b16 %v947, %v946
  %v1299 = vpack.c.b16 %v949, %v948
  %v1300 = vpack.c.b16 %v951, %v950
  %v1301 = vpack.c.b16 %v953, %v952
  %v1302 = vpack.c.b16 %v955, %v954
  %v1303 = vpack.c.b16 %v957, %v956
  %v1304 = vpack.c.b16 %v959, %v958
  %v1305 = vpack.c.b16 %v961, %v960
  %v1306 = vpack.c.b16 %v963, %v962
  %v1307 = vpack.c.b16 %v965, %v964
  %v1308 = vpack.c.b16 %v967, %v966
  %v1309 = vpack.c.b16 %v969, %v968
  %v1310 = vpack.c.b16 %v971, %v970
  %v1311 = vpack.c.b16 %v973, %v972
  %v1312 = vpack.c.b16 %v975, %v974
  %v1313 = vpack.c.b16 %v977, %v976
  %v1314 = vpack.c.b16 %v979, %v978
  %v1315 = vpack.c.b16 %v981, %v980
  %v1316 = vpack.c.b16 %v983, %v982
  %v1317 = vpack.c.b16 %v985, %v984
  %v1318 = vpack.c.b16 %v987, %v986
  %v1319 = vpack.c.b16 %v989, %v988
  %v1320 = vpack.c.b16 %v991, %v990
  %v1321 = vpack.c.b16 %v993, %v992
  %v1322 = vpack.c.b16 %v995, %v994
  %v1323 = vpack.c.b16 %v997, %v996
  %v1324 = vpack.c.b16 %v999, %v998
  %v1325 = vpack.c.b16 %v1001, %v1000
  %v1326 = vpack.c.b16 %v1003, %v1002
  %v1327 = vpack.c.b16 %v1005, %v1004
  %v1328 = vpack.c.b16 %v1007, %v1006
  %v1329 = vpack.c.b16 %v1009, %v1008
  %v1330 = vpack.c.b16 %v1011, %v1010
  %v1331 = vpack.c.b16 %v1013, %v1012
  %v1332 = vpack.c.b16 %v1015, %v1014
  %v1333 = vpack.c.b16 %v1017, %v1016
  %v1334 = vpack.c.b16 %v1019, %v1018
  %v1335 = vpack.c.b16 %v1021, %v1020
  %v1336 = vpack.c.b16 %v1023, %v1022
  %v1337 = vpack.c.b16 %v1025, %v1024
  %v1338 = vpack.c.b16 %v1027, %v1026
  %v1339 = vpack.c.b16 %v1029, %v1028
  %v1340 = vpack.c.b16 %v1031, %v1030
  %v1341 = vpack.c.b16 %v1033, %v1032
  %v1342 = vpack.c.b16 %v1035, %v1034
  %v1343 = vpack.c.b16 %v1037, %v1036
  %v1344 = vpack.c.b16 %v1039, %v1038
  %v1345 = vpack.c.b16 %v1041, %v1040
  %v1346 = vpack.c.b16 %v1043, %v1042
  %v1347 = vpack.c.b16 %v1045, %v1044
  %v1348 = vpack.c.b16 %v1047, %v1046
  %v1349 = vpack.c.b16 %v1049, %v1048
  %v1350 = vpack.c.b16 %v1051, %v1050
  %v1351 = vpack.c.b16 %v1053, %v1052
  %v1352 = vpack.c.b16 %v1055, %v1054
  %v1353 = vpack.c.b16 %v1057, %v1056
  %v1354 = vpack.c.b16 %v1059, %v1058
  %v1355 = vpack.c.b16 %v1061, %v1060
  %v1356 = vpack.c.b16 %v1063, %v1062
  %v1357 = vpack.c.b16 %v1065, %v1064
  %v1358 = vpack.c.b16 %v1067, %v1066
  %v1359 = vpack.c.b16 %v1069, %v1068
  %v1360 = vpack.c.b16 %v1071, %v1070
  %v1361 = vpack.c.b16 %v1073, %v1072
  %v1362 = vpack.c.b16 %v1075, %v1074
  %v1363 = vpack.c.b16 %v1077, %v1076
  %v1364 = vpack.c.b16 %v1079, %v1078
  %v1365 = vpack.c.b16 %v1081, %v1080
  %v1366 = vpack.c.b16 %v1083, %v1082
  %v1367 = vpack.c.b16 %v1085, %v1084
  %v1368 = vpack.c.b16 %v1087, %v1086
  %v1369 = vpack.c.b16 %v1089, %v1088
  %v1370 = vpack.c.b16 %v1091, %v1090
  %v1371 = vpack.c.b16 %v1093, %v1092
  %v1372 = vpack.c.b16 %v1095, %v1094
  %v1373 = vpack.c.b16 %v1097, %v1096
  %v1374 = vpack.c.b16 %v1099, %v1098
  %v1375 = vpack.c.b16 %v1101, %v1100
  %v1376 = vpack.c.b16 %v1103, %v1102
  %v1377 = vpack.c.b16 %v1105, %v1104
  %v1378 = vpack.c.b16 %v1107, %v1106
  %v1379 = vpack.c.b16 %v1109, %v1108
  %v1380 = vpack.c.b16 %v1111, %v1110
  %v1381 = vpack.c.b16 %v1113, %v1112
  %v1382 = vpack.c.b16 %v1115, %v1114
  %v1383 = vpack.c.b16 %v1117, %v1116
  %v1384 = vpack.c.b16 %v1119, %v1118
  %v1385 = vpack.c.b16 %v1121, %v1120
  %v1386 = vpack.c.b16 %v1123, %v1122
  %v1387 = vpack.c.b16 %v1125, %v1124
  %v1388 = vpack.c.b16 %v1127, %v1126
  %v1389 = vpack.c.b16 %v1129, %v1128
  %v1390 = vpack.c.b16 %v1131, %v1130
  %v1391 = vpack.c.b16 %v1133, %v1132
  %v1392 = vpack.c.b16 %v1135, %v1134
  %v1393 = vpack.c.b16 %v1137, %v1136
  %v1394 = vpack.c.b16 %v1139, %v1138
  %v1395 = vpack.c.b16 %v1141, %v1140
  %v1396 = vpack.c.b16 %v1143, %v1142
  %v1397 = vpack.c.b16 %v1145, %v1144
  %v1398 = vpack.c.b16 %v1147, %v1146
  %v1399 = vpack.c.b16 %v1149, %v1148
  %v1400 = vpack.c.b16 %v1151, %v1150
  %v1401 = vpack.c.b16 %v1153, %v1152
  %v1402 = vpack.c.b16 %v1155, %v1154
  %v1403 = vpack.c.b16 %v1157, %v1156
  %v1404 = vpack.c.b16 %v1159, %v1158
  %v1405 = vpack.c.b16 %v1161, %v1160
  %v1406 = vpack.c.b16 %v1163, %v1162
  %v1407 = vpack.c.b16 %v1165, %v1164
  %v1408 = vpack.c.b16 %v1167, %v1166
  %v1409 = vpack.c.b16 %v1169, %v1168
  %v1410 = vpack.c.b16 %v1171, %v1170
  %v1411 = vpack.c.b16 %v1173, %v1172
  %v1412 = vpack.c.b16 %v1175, %v1174
  %v1413 = vpack.c.b16 %v1177, %v1176
  %v1414 = vpack.c.b16 %v1179, %v1178
  %v1415 = vpack.c.b16 %v1181, %v1180
  %v1416 = vpack.c.b16 %v1183, %v1182
  %v1417 = vpack.c.b16 %v1185, %v1184
  %v1418 = vpack.c.b16 %v1187, %v1186
  %v1419 = vpack.c.b16 %v1189, %v1188
  %v1420 = vpack.c.b16 %v1191, %v1190
  %v1421 = vpack.c.b16 %v1193, %v1192
  %v1422 = vpack.c.b16 %v1195, %v1194
  %v1423 = vpack.c.b16 %v1197, %v1196
  %v1424 = vpack.c.b16 %v1199, %v1198
  %v1425 = vpack.c.b16 %v1201, %v1200
  %v1426 = vpack.c.b16 %v1203, %v1202
  %v1427 = vpack.c.b16 %v1205, %v1204
  %v1428 = vpack.c.b16 %v1207, %v1206
  %v1429 = vpack.c.b16 %v1209, %v1208
  %v1430 = vpack.c.b16 %v1211, %v1210
  %v1431 = vpack.c.b16 %v1213, %v1212
  %v1432 = vpack.c.b16 %v1215, %v1214
  %v1433 = vpack.c.b16 %v1217, %v1216
  %v1434 = vpack.c.b16 %v1219, %v1218
  %v1435 = vpack.c.b16 %v1221, %v1220
  %v1436 = vpack.c.b16 %v1223, %v1222
  %v1437 = vpack.c.b16 %v1225, %v1224
  %v1438 = vpack.c.b16 %v1227, %v1226
  %v1439 = vpack.c.b16 %v1229, %v1228
  %v1440 = vpack.c.b16 %v1231, %v1230
  %v1441 = vpack.c.b16 %v1233, %v1232
  %v1442 = vpack.c.b16 %v1235, %v1234
  %v1443 = vpack.c.b16 %v1237, %v1236
  %v1444 = vpack.c.b16 %v1239, %v1238
  %v1445 = vpack.c.b16 %v1241, %v1240
  %v1446 = vpack.c.b16 %v1243, %v1242
  %v1447 = vpack.c.b16 %v1245, %v1244
  %v1448 = vpack.c.b16 %v1247, %v1246
  %v1449 = vpack.c.b16 %v1249, %v1248
  %v1450 = vpack.c.b16 %v1251, %v1250
  %v1451 = vpack.c.b16 %v1253, %v1252
  %v1452 = vpack.c.b16 %v1255, %v1254
  %v1453 = vpack.c.b16 %v1257, %v1256
  %v1454 = vpack.c.b16 %v1259, %v1258
  %v1455 = vpack.c.b16 %v1261, %v1260
  %v1456 = vpack.c.b16 %v1263, %v1262
  %v1457 = vpack.c.b16 %v1265, %v1264
  %1650 = vmatprep.subr.bf16.mxu0 0
  %1651 = vmatpush1.bf16.msra.mxu0 %v1266
  %1652 = vmatprep.subr.bf16.mxu0 0
  %1653 = vmatpush1.bf16.msra.mxu0 %v1267
  %1654 = vmatprep.subr.bf16.mxu0 0
  %1655 = vmatpush1.bf16.msra.mxu0 %v1268
  %1656 = vmatprep.subr.bf16.mxu0 0
  %1657 = vmatpush1.bf16.msra.mxu0 %v1269
  %1658 = vmatprep.subr.bf16.mxu0 0
  %1659 = vmatpush1.bf16.msra.mxu0 %v1270
  %1660 = vmatprep.subr.bf16.mxu0 0
  %1661 = vmatpush1.bf16.msra.mxu0 %v1271
  %1662 = vmatprep.subr.bf16.mxu0 0
  %1663 = vmatpush1.bf16.msra.mxu0 %v1272
  %1664 = vmatprep.subr.bf16.mxu0 0
  %1665 = vmatpush1.bf16.msra.mxu0 %v1273
  %1666 = vmatprep.subr.bf16.mxu0 0
  %1667 = vmatpush1.bf16.msra.mxu0 %v1274
  %1668 = vmatprep.subr.bf16.mxu0 0
  %1669 = vmatpush1.bf16.msra.mxu0 %v1275
  %1670 = vmatprep.subr.bf16.mxu0 0
  %1671 = vmatpush1.bf16.msra.mxu0 %v1276
  %1672 = vmatprep.subr.bf16.mxu0 0
  %1673 = vmatpush1.bf16.msra.mxu0 %v1277
  %1674 = vmatprep.subr.bf16.mxu0 0
  %1675 = vmatpush1.bf16.msra.mxu0 %v1278
  %1676 = vmatprep.subr.bf16.mxu0 0
  %1677 = vmatpush1.bf16.msra.mxu0 %v1279
  %1678 = vmatprep.subr.bf16.mxu0 0
  %1679 = vmatpush1.bf16.msra.mxu0 %v1280
  %1680 = vmatprep.subr.bf16.mxu0 0
  %1681 = vmatpush1.bf16.msra.mxu0 %v1281
  %1682 = vmatprep.mubr.bf16.mxu0 %v451
  %1683 = vmatmul.mubr.bf16.gmra.mrb[0].mxu0 %v450
  %v1684 = vpop.f32.mrb[0].mxu0
  %v1685 = vadd.f32 0.0, %v1684
  %v1686 = vpop.f32.mrb[0].mxu0
  %v1687 = vpop.f32.mrb[0].mxu0
  %v1688 = vpop.f32.mrb[0].mxu0
  %1689 = vdwg.mxu0
  %1690 = vmatprep.subr.bf16.mxu0 0
  %1691 = vmatpush1.bf16.msra.mxu0 %v1282
  %1692 = vmatprep.subr.bf16.mxu0 0
  %1693 = vmatpush1.bf16.msra.mxu0 %v1283
  %1694 = vmatprep.subr.bf16.mxu0 0
  %1695 = vmatpush1.bf16.msra.mxu0 %v1284
  %1696 = vmatprep.subr.bf16.mxu0 0
  %1697 = vmatpush1.bf16.msra.mxu0 %v1285
  %1698 = vmatprep.subr.bf16.mxu0 0
  %1699 = vmatpush1.bf16.msra.mxu0 %v1286
  %1700 = vmatprep.subr.bf16.mxu0 0
  %1701 = vmatpush1.bf16.msra.mxu0 %v1287
  %1702 = vmatprep.subr.bf16.mxu0 0
  %1703 = vmatpush1.bf16.msra.mxu0 %v1288
  %1704 = vmatprep.subr.bf16.mxu0 0
  %1705 = vmatpush1.bf16.msra.mxu0 %v1289
  %1706 = vmatprep.subr.bf16.mxu0 0
  %1707 = vmatpush1.bf16.msra.mxu0 %v1290
  %1708 = vmatprep.subr.bf16.mxu0 0
  %1709 = vmatpush1.bf16.msra.mxu0 %v1291
  %1710 = vmatprep.subr.bf16.mxu0 0
  %1711 = vmatpush1.bf16.msra.mxu0 %v1292
  %1712 = vmatprep.subr.bf16.mxu0 0
  %1713 = vmatpush1.bf16.msra.mxu0 %v1293
  %1714 = vmatprep.subr.bf16.mxu0 0
  %1715 = vmatpush1.bf16.msra.mxu0 %v1294
  %1716 = vmatprep.subr.bf16.mxu0 0
  %1717 = vmatpush1.bf16.msra.mxu0 %v1295
  %1718 = vmatprep.subr.bf16.mxu0 0
  %1719 = vmatpush1.bf16.msra.mxu0 %v1296
  %1720 = vmatprep.subr.bf16.mxu0 0
  %1721 = vmatpush1.bf16.msra.mxu0 %v1297
  %1722 = vmatprep.mubr.bf16.mxu0 %v453
  %1723 = vmatmul.mubr.bf16.gmra.mrb[0].mxu0 %v452
  %v1724 = vpop.f32.mrb[0].mxu0
  %v1725 = vadd.f32 %v1685, %v1724
  %v1726 = vpop.f32.mrb[0].mxu0
  %v1727 = vpop.f32.mrb[0].mxu0
  %v1728 = vpop.f32.mrb[0].mxu0
  %1729 = vdwg.mxu0
  %1730 = vmatprep.subr.bf16.mxu0 0
  %1731 = vmatpush1.bf16.msra.mxu0 %v1298
  %1732 = vmatprep.subr.bf16.mxu0 0
  %1733 = vmatpush1.bf16.msra.mxu0 %v1299
  %1734 = vmatprep.subr.bf16.mxu0 0
  %1735 = vmatpush1.bf16.msra.mxu0 %v1300
  %1736 = vmatprep.subr.bf16.mxu0 0
  %1737 = vmatpush1.bf16.msra.mxu0 %v1301
  %1738 = vmatprep.subr.bf16.mxu0 0
  %1739 = vmatpush1.bf16.msra.mxu0 %v1302
  %1740 = vmatprep.subr.bf16.mxu0 0
  %1741 = vmatpush1.bf16.msra.mxu0 %v1303
  %1742 = vmatprep.subr.bf16.mxu0 0
  %1743 = vmatpush1.bf16.msra.mxu0 %v1304
  %1744 = vmatprep.subr.bf16.mxu0 0
  %1745 = vmatpush1.bf16.msra.mxu0 %v1305
  %1746 = vmatprep.subr.bf16.mxu0 0
  %1747 = vmatpush1.bf16.msra.mxu0 %v1306
  %1748 = vmatprep.subr.bf16.mxu0 0
  %1749 = vmatpush1.bf16.msra.mxu0 %v1307
  %1750 = vmatprep.subr.bf16.mxu0 0
  %1751 = vmatpush1.bf16.msra.mxu0 %v1308
  %1752 = vmatprep.subr.bf16.mxu0 0
  %1753 = vmatpush1.bf16.msra.mxu0 %v1309
  %1754 = vmatprep.subr.bf16.mxu0 0
  %1755 = vmatpush1.bf16.msra.mxu0 %v1310
  %1756 = vmatprep.subr.bf16.mxu0 0
  %1757 = vmatpush1.bf16.msra.mxu0 %v1311
  %1758 = vmatprep.subr.bf16.mxu0 0
  %1759 = vmatpush1.bf16.msra.mxu0 %v1312
  %1760 = vmatprep.subr.bf16.mxu0 0
  %1761 = vmatpush1.bf16.msra.mxu0 %v1313
  %1762 = vmatprep.mubr.bf16.mxu0 %v455
  %1763 = vmatmul.mubr.bf16.gmra.mrb[0].mxu0 %v454
  %v1764 = vpop.f32.mrb[0].mxu0
  %v1765 = vadd.f32 %v1725, %v1764
  %v1766 = vpop.f32.mrb[0].mxu0
  %v1767 = vpop.f32.mrb[0].mxu0
  %v1768 = vpop.f32.mrb[0].mxu0
  %1769 = vdwg.mxu0
  %1770 = vmatprep.subr.bf16.mxu0 0
  %1771 = vmatpush1.bf16.msra.mxu0 %v1314
  %1772 = vmatprep.subr.bf16.mxu0 0
  %1773 = vmatpush1.bf16.msra.mxu0 %v1315
  %1774 = vmatprep.subr.bf16.mxu0 0
  %1775 = vmatpush1.bf16.msra.mxu0 %v1316
  %1776 = vmatprep.subr.bf16.mxu0 0
  %1777 = vmatpush1.bf16.msra.mxu0 %v1317
  %1778 = vmatprep.subr.bf16.mxu0 0
  %1779 = vmatpush1.bf16.msra.mxu0 %v1318
  %1780 = vmatprep.subr.bf16.mxu0 0
  %1781 = vmatpush1.bf16.msra.mxu0 %v1319
  %1782 = vmatprep.subr.bf16.mxu0 0
  %1783 = vmatpush1.bf16.msra.mxu0 %v1320
  %1784 = vmatprep.subr.bf16.mxu0 0
  %1785 = vmatpush1.bf16.msra.mxu0 %v1321
  %1786 = vmatprep.subr.bf16.mxu0 0
  %1787 = vmatpush1.bf16.msra.mxu0 %v1322
  %1788 = vmatprep.subr.bf16.mxu0 0
  %1789 = vmatpush1.bf16.msra.mxu0 %v1323
  %1790 = vmatprep.subr.bf16.mxu0 0
  %1791 = vmatpush1.bf16.msra.mxu0 %v1324
  %1792 = vmatprep.subr.bf16.mxu0 0
  %1793 = vmatpush1.bf16.msra.mxu0 %v1325
  %1794 = vmatprep.subr.bf16.mxu0 0
  %1795 = vmatpush1.bf16.msra.mxu0 %v1326
  %1796 = vmatprep.subr.bf16.mxu0 0
  %1797 = vmatpush1.bf16.msra.mxu0 %v1327
  %1798 = vmatprep.subr.bf16.mxu0 0
  %1799 = vmatpush1.bf16.msra.mxu0 %v1328
  %1800 = vmatprep.subr.bf16.mxu0 0
  %1801 = vmatpush1.bf16.msra.mxu0 %v1329
  %1802 = vmatprep.mubr.bf16.mxu0 %v457
  %1803 = vmatmul.mubr.bf16.gmra.mrb[0].mxu0 %v456
  %v1804 = vpop.f32.mrb[0].mxu0
  %v1805 = vadd.f32 %v1765, %v1804
  %v1806 = vpop.f32.mrb[0].mxu0
  %v1807 = vpop.f32.mrb[0].mxu0
  %v1808 = vpop.f32.mrb[0].mxu0
  %1809 = vdwg.mxu0
  %1810 = vmatprep.subr.bf16.mxu0 0
  %1811 = vmatpush1.bf16.msra.mxu0 %v1330
  %1812 = vmatprep.subr.bf16.mxu0 0
  %1813 = vmatpush1.bf16.msra.mxu0 %v1331
  %1814 = vmatprep.subr.bf16.mxu0 0
  %1815 = vmatpush1.bf16.msra.mxu0 %v1332
  %1816 = vmatprep.subr.bf16.mxu0 0
  %1817 = vmatpush1.bf16.msra.mxu0 %v1333
  %1818 = vmatprep.subr.bf16.mxu0 0
  %1819 = vmatpush1.bf16.msra.mxu0 %v1334
  %1820 = vmatprep.subr.bf16.mxu0 0
  %1821 = vmatpush1.bf16.msra.mxu0 %v1335
  %1822 = vmatprep.subr.bf16.mxu0 0
  %1823 = vmatpush1.bf16.msra.mxu0 %v1336
  %1824 = vmatprep.subr.bf16.mxu0 0
  %1825 = vmatpush1.bf16.msra.mxu0 %v1337
  %1826 = vmatprep.subr.bf16.mxu0 0
  %1827 = vmatpush1.bf16.msra.mxu0 %v1338
  %1828 = vmatprep.subr.bf16.mxu0 0
  %1829 = vmatpush1.bf16.msra.mxu0 %v1339
  %1830 = vmatprep.subr.bf16.mxu0 0
  %1831 = vmatpush1.bf16.msra.mxu0 %v1340
  %1832 = vmatprep.subr.bf16.mxu0 0
  %1833 = vmatpush1.bf16.msra.mxu0 %v1341
  %1834 = vmatprep.subr.bf16.mxu0 0
  %1835 = vmatpush1.bf16.msra.mxu0 %v1342
  %1836 = vmatprep.subr.bf16.mxu0 0
  %1837 = vmatpush1.bf16.msra.mxu0 %v1343
  %1838 = vmatprep.subr.bf16.mxu0 0
  %1839 = vmatpush1.bf16.msra.mxu0 %v1344
  %1840 = vmatprep.subr.bf16.mxu0 0
  %1841 = vmatpush1.bf16.msra.mxu0 %v1345
  %1842 = vmatprep.mubr.bf16.mxu0 %v459
  %1843 = vmatmul.mubr.bf16.gmra.mrb[0].mxu0 %v458
  %v1844 = vpop.f32.mrb[0].mxu0
  %v1845 = vadd.f32 %v1805, %v1844
  %v1846 = vpop.f32.mrb[0].mxu0
  %v1847 = vpop.f32.mrb[0].mxu0
  %v1848 = vpop.f32.mrb[0].mxu0
  %1849 = vdwg.mxu0
  %1850 = vmatprep.subr.bf16.mxu0 0
  %1851 = vmatpush1.bf16.msra.mxu0 %v1346
  %1852 = vmatprep.subr.bf16.mxu0 0
  %1853 = vmatpush1.bf16.msra.mxu0 %v1347
  %1854 = vmatprep.subr.bf16.mxu0 0
  %1855 = vmatpush1.bf16.msra.mxu0 %v1348
  %1856 = vmatprep.subr.bf16.mxu0 0
  %1857 = vmatpush1.bf16.msra.mxu0 %v1349
  %1858 = vmatprep.subr.bf16.mxu0 0
  %1859 = vmatpush1.bf16.msra.mxu0 %v1350
  %1860 = vmatprep.subr.bf16.mxu0 0
  %1861 = vmatpush1.bf16.msra.mxu0 %v1351
  %1862 = vmatprep.subr.bf16.mxu0 0
  %1863 = vmatpush1.bf16.msra.mxu0 %v1352
  %1864 = vmatprep.subr.bf16.mxu0 0
  %1865 = vmatpush1.bf16.msra.mxu0 %v1353
  %1866 = vmatprep.subr.bf16.mxu0 0
  %1867 = vmatpush1.bf16.msra.mxu0 %v1354
  %1868 = vmatprep.subr.bf16.mxu0 0
  %1869 = vmatpush1.bf16.msra.mxu0 %v1355
  %1870 = vmatprep.subr.bf16.mxu0 0
  %1871 = vmatpush1.bf16.msra.mxu0 %v1356
  %1872 = vmatprep.subr.bf16.mxu0 0
  %1873 = vmatpush1.bf16.msra.mxu0 %v1357
  %1874 = vmatprep.subr.bf16.mxu0 0
  %1875 = vmatpush1.bf16.msra.mxu0 %v1358
  %1876 = vmatprep.subr.bf16.mxu0 0
  %1877 = vmatpush1.bf16.msra.mxu0 %v1359
  %1878 = vmatprep.subr.bf16.mxu0 0
  %1879 = vmatpush1.bf16.msra.mxu0 %v1360
  %1880 = vmatprep.subr.bf16.mxu0 0
  %1881 = vmatpush1.bf16.msra.mxu0 %v1361
  %1882 = vmatprep.mubr.bf16.mxu0 %v461
  %1883 = vmatmul.mubr.bf16.gmra.mrb[0].mxu0 %v460
  %v1884 = vpop.f32.mrb[0].mxu0
  %v1885 = vadd.f32 %v1845, %v1884
  %v1886 = vpop.f32.mrb[0].mxu0
  %v1887 = vpop.f32.mrb[0].mxu0
  %v1888 = vpop.f32.mrb[0].mxu0
  %1889 = vdwg.mxu0
  %1890 = vmatprep.subr.bf16.mxu0 0
  %1891 = vmatpush1.bf16.msra.mxu0 %v1362
  %1892 = vmatprep.subr.bf16.mxu0 0
  %1893 = vmatpush1.bf16.msra.mxu0 %v1363
  %1894 = vmatprep.subr.bf16.mxu0 0
  %1895 = vmatpush1.bf16.msra.mxu0 %v1364
  %1896 = vmatprep.subr.bf16.mxu0 0
  %1897 = vmatpush1.bf16.msra.mxu0 %v1365
  %1898 = vmatprep.subr.bf16.mxu0 0
  %1899 = vmatpush1.bf16.msra.mxu0 %v1366
  %1900 = vmatprep.subr.bf16.mxu0 0
  %1901 = vmatpush1.bf16.msra.mxu0 %v1367
  %1902 = vmatprep.subr.bf16.mxu0 0
  %1903 = vmatpush1.bf16.msra.mxu0 %v1368
  %1904 = vmatprep.subr.bf16.mxu0 0
  %1905 = vmatpush1.bf16.msra.mxu0 %v1369
  %1906 = vmatprep.subr.bf16.mxu0 0
  %1907 = vmatpush1.bf16.msra.mxu0 %v1370
  %1908 = vmatprep.subr.bf16.mxu0 0
  %1909 = vmatpush1.bf16.msra.mxu0 %v1371
  %1910 = vmatprep.subr.bf16.mxu0 0
  %1911 = vmatpush1.bf16.msra.mxu0 %v1372
  %1912 = vmatprep.subr.bf16.mxu0 0
  %1913 = vmatpush1.bf16.msra.mxu0 %v1373
  %1914 = vmatprep.subr.bf16.mxu0 0
  %1915 = vmatpush1.bf16.msra.mxu0 %v1374
  %1916 = vmatprep.subr.bf16.mxu0 0
  %1917 = vmatpush1.bf16.msra.mxu0 %v1375
  %1918 = vmatprep.subr.bf16.mxu0 0
  %1919 = vmatpush1.bf16.msra.mxu0 %v1376
  %1920 = vmatprep.subr.bf16.mxu0 0
  %1921 = vmatpush1.bf16.msra.mxu0 %v1377
  %1922 = vmatprep.mubr.bf16.mxu0 %v463
  %1923 = vmatmul.mubr.bf16.gmra.mrb[0].mxu0 %v462
  %v1924 = vpop.f32.mrb[0].mxu0
  %v1925 = vadd.f32 %v1885, %v1924
  %v1926 = vpop.f32.mrb[0].mxu0
  %v1927 = vpop.f32.mrb[0].mxu0
  %v1928 = vpop.f32.mrb[0].mxu0
  %1929 = vdwg.mxu0
  %1930 = vmatprep.subr.bf16.mxu0 0
  %1931 = vmatpush1.bf16.msra.mxu0 %v1378
  %1932 = vmatprep.subr.bf16.mxu0 0
  %1933 = vmatpush1.bf16.msra.mxu0 %v1379
  %1934 = vmatprep.subr.bf16.mxu0 0
  %1935 = vmatpush1.bf16.msra.mxu0 %v1380
  %1936 = vmatprep.subr.bf16.mxu0 0
  %1937 = vmatpush1.bf16.msra.mxu0 %v1381
  %1938 = vmatprep.subr.bf16.mxu0 0
  %1939 = vmatpush1.bf16.msra.mxu0 %v1382
  %1940 = vmatprep.subr.bf16.mxu0 0
  %1941 = vmatpush1.bf16.msra.mxu0 %v1383
  %1942 = vmatprep.subr.bf16.mxu0 0
  %1943 = vmatpush1.bf16.msra.mxu0 %v1384
  %1944 = vmatprep.subr.bf16.mxu0 0
  %1945 = vmatpush1.bf16.msra.mxu0 %v1385
  %1946 = vmatprep.subr.bf16.mxu0 0
  %1947 = vmatpush1.bf16.msra.mxu0 %v1386
  %1948 = vmatprep.subr.bf16.mxu0 0
  %1949 = vmatpush1.bf16.msra.mxu0 %v1387
  %1950 = vmatprep.subr.bf16.mxu0 0
  %1951 = vmatpush1.bf16.msra.mxu0 %v1388
  %1952 = vmatprep.subr.bf16.mxu0 0
  %1953 = vmatpush1.bf16.msra.mxu0 %v1389
  %1954 = vmatprep.subr.bf16.mxu0 0
  %1955 = vmatpush1.bf16.msra.mxu0 %v1390
  %1956 = vmatprep.subr.bf16.mxu0 0
  %1957 = vmatpush1.bf16.msra.mxu0 %v1391
  %1958 = vmatprep.subr.bf16.mxu0 0
  %1959 = vmatpush1.bf16.msra.mxu0 %v1392
  %1960 = vmatprep.subr.bf16.mxu0 0
  %1961 = vmatpush1.bf16.msra.mxu0 %v1393
  %1962 = vmatprep.mubr.bf16.mxu0 %v465
  %1963 = vmatmul.mubr.bf16.gmra.mrb[0].mxu0 %v464
  %v1964 = vpop.f32.mrb[0].mxu0
  %v1965 = vadd.f32 %v1925, %v1964
  %v1966 = vpop.f32.mrb[0].mxu0
  %v1967 = vpop.f32.mrb[0].mxu0
  %v1968 = vpop.f32.mrb[0].mxu0
  %1969 = vdwg.mxu0
  %1970 = vmatprep.subr.bf16.mxu0 0
  %1971 = vmatpush1.bf16.msra.mxu0 %v1394
  %1972 = vmatprep.subr.bf16.mxu0 0
  %1973 = vmatpush1.bf16.msra.mxu0 %v1395
  %1974 = vmatprep.subr.bf16.mxu0 0
  %1975 = vmatpush1.bf16.msra.mxu0 %v1396
  %1976 = vmatprep.subr.bf16.mxu0 0
  %1977 = vmatpush1.bf16.msra.mxu0 %v1397
  %1978 = vmatprep.subr.bf16.mxu0 0
  %1979 = vmatpush1.bf16.msra.mxu0 %v1398
  %1980 = vmatprep.subr.bf16.mxu0 0
  %1981 = vmatpush1.bf16.msra.mxu0 %v1399
  %1982 = vmatprep.subr.bf16.mxu0 0
  %1983 = vmatpush1.bf16.msra.mxu0 %v1400
  %1984 = vmatprep.subr.bf16.mxu0 0
  %1985 = vmatpush1.bf16.msra.mxu0 %v1401
  %1986 = vmatprep.subr.bf16.mxu0 0
  %1987 = vmatpush1.bf16.msra.mxu0 %v1402
  %1988 = vmatprep.subr.bf16.mxu0 0
  %1989 = vmatpush1.bf16.msra.mxu0 %v1403
  %1990 = vmatprep.subr.bf16.mxu0 0
  %1991 = vmatpush1.bf16.msra.mxu0 %v1404
  %1992 = vmatprep.subr.bf16.mxu0 0
  %1993 = vmatpush1.bf16.msra.mxu0 %v1405
  %1994 = vmatprep.subr.bf16.mxu0 0
  %1995 = vmatpush1.bf16.msra.mxu0 %v1406
  %1996 = vmatprep.subr.bf16.mxu0 0
  %1997 = vmatpush1.bf16.msra.mxu0 %v1407
  %1998 = vmatprep.subr.bf16.mxu0 0
  %1999 = vmatpush1.bf16.msra.mxu0 %v1408
  %2000 = vmatprep.subr.bf16.mxu0 0
  %2001 = vmatpush1.bf16.msra.mxu0 %v1409
  %2002 = vmatprep.mubr.bf16.mxu0 %v467
  %2003 = vmatmul.mubr.bf16.gmra.mrb[0].mxu0 %v466
  %v2004 = vpop.f32.mrb[0].mxu0
  %v2005 = vadd.f32 %v1965, %v2004
  %v2006 = vpop.f32.mrb[0].mxu0
  %v2007 = vpop.f32.mrb[0].mxu0
  %v2008 = vpop.f32.mrb[0].mxu0
  %2009 = vdwg.mxu0
  %2010 = vmatprep.subr.bf16.mxu0 0
  %2011 = vmatpush1.bf16.msra.mxu0 %v1410
  %2012 = vmatprep.subr.bf16.mxu0 0
  %2013 = vmatpush1.bf16.msra.mxu0 %v1411
  %2014 = vmatprep.subr.bf16.mxu0 0
  %2015 = vmatpush1.bf16.msra.mxu0 %v1412
  %2016 = vmatprep.subr.bf16.mxu0 0
  %2017 = vmatpush1.bf16.msra.mxu0 %v1413
  %2018 = vmatprep.subr.bf16.mxu0 0
  %2019 = vmatpush1.bf16.msra.mxu0 %v1414
  %2020 = vmatprep.subr.bf16.mxu0 0
  %2021 = vmatpush1.bf16.msra.mxu0 %v1415
  %2022 = vmatprep.subr.bf16.mxu0 0
  %2023 = vmatpush1.bf16.msra.mxu0 %v1416
  %2024 = vmatprep.subr.bf16.mxu0 0
  %2025 = vmatpush1.bf16.msra.mxu0 %v1417
  %2026 = vmatprep.subr.bf16.mxu0 0
  %2027 = vmatpush1.bf16.msra.mxu0 %v1418
  %2028 = vmatprep.subr.bf16.mxu0 0
  %2029 = vmatpush1.bf16.msra.mxu0 %v1419
  %2030 = vmatprep.subr.bf16.mxu0 0
  %2031 = vmatpush1.bf16.msra.mxu0 %v1420
  %2032 = vmatprep.subr.bf16.mxu0 0
  %2033 = vmatpush1.bf16.msra.mxu0 %v1421
  %2034 = vmatprep.subr.bf16.mxu0 0
  %2035 = vmatpush1.bf16.msra.mxu0 %v1422
  %2036 = vmatprep.subr.bf16.mxu0 0
  %2037 = vmatpush1.bf16.msra.mxu0 %v1423
  %2038 = vmatprep.subr.bf16.mxu0 0
  %2039 = vmatpush1.bf16.msra.mxu0 %v1424
  %2040 = vmatprep.subr.bf16.mxu0 0
  %2041 = vmatpush1.bf16.msra.mxu0 %v1425
  %2042 = vmatprep.mubr.bf16.mxu0 %v469
  %2043 = vmatmul.mubr.bf16.gmra.mrb[0].mxu0 %v468
  %v2044 = vpop.f32.mrb[0].mxu0
  %v2045 = vadd.f32 %v2005, %v2044
  %v2046 = vpop.f32.mrb[0].mxu0
  %v2047 = vpop.f32.mrb[0].mxu0
  %v2048 = vpop.f32.mrb[0].mxu0
  %2049 = vdwg.mxu0
  %2050 = vmatprep.subr.bf16.mxu0 0
  %2051 = vmatpush1.bf16.msra.mxu0 %v1426
  %2052 = vmatprep.subr.bf16.mxu0 0
  %2053 = vmatpush1.bf16.msra.mxu0 %v1427
  %2054 = vmatprep.subr.bf16.mxu0 0
  %2055 = vmatpush1.bf16.msra.mxu0 %v1428
  %2056 = vmatprep.subr.bf16.mxu0 0
  %2057 = vmatpush1.bf16.msra.mxu0 %v1429
  %2058 = vmatprep.subr.bf16.mxu0 0
  %2059 = vmatpush1.bf16.msra.mxu0 %v1430
  %2060 = vmatprep.subr.bf16.mxu0 0
  %2061 = vmatpush1.bf16.msra.mxu0 %v1431
  %2062 = vmatprep.subr.bf16.mxu0 0
  %2063 = vmatpush1.bf16.msra.mxu0 %v1432
  %2064 = vmatprep.subr.bf16.mxu0 0
  %2065 = vmatpush1.bf16.msra.mxu0 %v1433
  %2066 = vmatprep.subr.bf16.mxu0 0
  %2067 = vmatpush1.bf16.msra.mxu0 %v1434
  %2068 = vmatprep.subr.bf16.mxu0 0
  %2069 = vmatpush1.bf16.msra.mxu0 %v1435
  %2070 = vmatprep.subr.bf16.mxu0 0
  %2071 = vmatpush1.bf16.msra.mxu0 %v1436
  %2072 = vmatprep.subr.bf16.mxu0 0
  %2073 = vmatpush1.bf16.msra.mxu0 %v1437
  %2074 = vmatprep.subr.bf16.mxu0 0
  %2075 = vmatpush1.bf16.msra.mxu0 %v1438
  %2076 = vmatprep.subr.bf16.mxu0 0
  %2077 = vmatpush1.bf16.msra.mxu0 %v1439
  %2078 = vmatprep.subr.bf16.mxu0 0
  %2079 = vmatpush1.bf16.msra.mxu0 %v1440
  %2080 = vmatprep.subr.bf16.mxu0 0
  %2081 = vmatpush1.bf16.msra.mxu0 %v1441
  %2082 = vmatprep.mubr.bf16.mxu0 %v471
  %2083 = vmatmul.mubr.bf16.gmra.mrb[0].mxu0 %v470
  %v2084 = vpop.f32.mrb[0].mxu0
  %v2085 = vadd.f32 %v2045, %v2084
  %v2086 = vpop.f32.mrb[0].mxu0
  %v2087 = vpop.f32.mrb[0].mxu0
  %v2088 = vpop.f32.mrb[0].mxu0
  %2089 = vdwg.mxu0
  %2090 = vmatprep.subr.bf16.mxu0 0
  %2091 = vmatpush1.bf16.msra.mxu0 %v1442
  %2092 = vmatprep.subr.bf16.mxu0 0
  %2093 = vmatpush1.bf16.msra.mxu0 %v1443
  %2094 = vmatprep.subr.bf16.mxu0 0
  %2095 = vmatpush1.bf16.msra.mxu0 %v1444
  %2096 = vmatprep.subr.bf16.mxu0 0
  %2097 = vmatpush1.bf16.msra.mxu0 %v1445
  %2098 = vmatprep.subr.bf16.mxu0 0
  %2099 = vmatpush1.bf16.msra.mxu0 %v1446
  %2100 = vmatprep.subr.bf16.mxu0 0
  %2101 = vmatpush1.bf16.msra.mxu0 %v1447
  %2102 = vmatprep.subr.bf16.mxu0 0
  %2103 = vmatpush1.bf16.msra.mxu0 %v1448
  %2104 = vmatprep.subr.bf16.mxu0 0
  %2105 = vmatpush1.bf16.msra.mxu0 %v1449
  %2106 = vmatprep.subr.bf16.mxu0 0
  %2107 = vmatpush1.bf16.msra.mxu0 %v1450
  %2108 = vmatprep.subr.bf16.mxu0 0
  %2109 = vmatpush1.bf16.msra.mxu0 %v1451
  %2110 = vmatprep.subr.bf16.mxu0 0
  %2111 = vmatpush1.bf16.msra.mxu0 %v1452
  %2112 = vmatprep.subr.bf16.mxu0 0
  %2113 = vmatpush1.bf16.msra.mxu0 %v1453
  %2114 = vmatprep.subr.bf16.mxu0 0
  %2115 = vmatpush1.bf16.msra.mxu0 %v1454
  %2116 = vmatprep.subr.bf16.mxu0 0
  %2117 = vmatpush1.bf16.msra.mxu0 %v1455
  %2118 = vmatprep.subr.bf16.mxu0 0
  %2119 = vmatpush1.bf16.msra.mxu0 %v1456
  %2120 = vmatprep.subr.bf16.mxu0 0
  %2121 = vmatpush1.bf16.msra.mxu0 %v1457
  %2122 = vmatprep.mubr.bf16.mxu0 %v473
  %2123 = vmatmul.mubr.bf16.gmra.mrb[0].mxu0 %v472
  %v2124 = vpop.f32.mrb[0].mxu0
  %v2125 = vadd.f32 %v2085, %v2124
  %v2126 = vpop.f32.mrb[0].mxu0
  %v2127 = vpop.f32.mrb[0].mxu0
  %v2128 = vpop.f32.mrb[0].mxu0
  %2129 = vdwg.mxu0
  %v2130 = vmax.f32 %v2125, 0.0
  %v2131 = vpack.c.bf16 %v2130, %v2130
  %v2132 = vld [vmem:[%s2] sm:$0xf]
  %v2133 = vld [vmem:[%s2 + $0x4] sm:$0xf]
  %v2134 = vld [vmem:[%s2 + $0x8] sm:$0xf]
  %v2135 = vld [vmem:[%s2 + $0xc] sm:$0xf]
  %v2136 = vld [vmem:[%s2 + $0x10] sm:$0xf]
  %v2137 = vld [vmem:[%s2 + $0x14] sm:$0xf]
  %v2138 = vld [vmem:[%s2 + $0x18] sm:$0xf]
  %v2139 = vld [vmem:[%s2 + $0x1c] sm:$0xf]
  %v2140 = vld [vmem:[%s2 + $0x20] sm:$0xf]
  %v2141 = vld [vmem:[%s2 + $0x24] sm:$0xf]
  %v2142 = vld [vmem:[%s2 + $0x28] sm:$0xf]
  %v2143 = vld [vmem:[%s2 + $0x2c] sm:$0xf]
  %v2144 = vld [vmem:[%s2 + $0x30] sm:$0xf]
  %v2145 = vld [vmem:[%s2 + $0x34] sm:$0xf]
  %v2146 = vld [vmem:[%s2 + $0x38] sm:$0xf]
  %v2147 = vld [vmem:[%s2 + $0x3c] sm:$0xf]
  %v2164 = vunpack.c.l.b16 %v2132
  %v2165 = vunpack.c.l.b16 %v2133
  %v2166 = vunpack.c.l.b16 %v2134
  %v2167 = vunpack.c.l.b16 %v2135
  %v2168 = vunpack.c.l.b16 %v2136
  %v2169 = vunpack.c.l.b16 %v2137
  %v2170 = vunpack.c.l.b16 %v2138
  %v2171 = vunpack.c.l.b16 %v2139
  %v2172 = vunpack.c.l.b16 %v2140
  %v2173 = vunpack.c.l.b16 %v2141
  %v2174 = vunpack.c.l.b16 %v2142
  %v2175 = vunpack.c.l.b16 %v2143
  %v2176 = vunpack.c.l.b16 %v2144
  %v2177 = vunpack.c.l.b16 %v2145
  %v2178 = vunpack.c.l.b16 %v2146
  %v2179 = vunpack.c.l.b16 %v2147
  %v2180 = vpack.c.b16 %v2165, %v2164
  %v2181 = vpack.c.b16 %v2167, %v2166
  %v2182 = vpack.c.b16 %v2169, %v2168
  %v2183 = vpack.c.b16 %v2171, %v2170
  %v2184 = vpack.c.b16 %v2173, %v2172
  %v2185 = vpack.c.b16 %v2175, %v2174
  %v2186 = vpack.c.b16 %v2177, %v2176
  %v2187 = vpack.c.b16 %v2179, %v2178
  %2196 = vmatprep.subr.bf16.mxu0 0
  %2197 = vmatpush1.bf16.msra.mxu0 %v2180
  %2198 = vmatprep.subr.bf16.mxu0 0
  %2199 = vmatpush1.bf16.msra.mxu0 %v2181
  %2200 = vmatprep.subr.bf16.mxu0 0
  %2201 = vmatpush1.bf16.msra.mxu0 %v2182
  %2202 = vmatprep.subr.bf16.mxu0 0
  %2203 = vmatpush1.bf16.msra.mxu0 %v2183
  %2204 = vmatprep.subr.bf16.mxu0 0
  %2205 = vmatpush1.bf16.msra.mxu0 %v2184
  %2206 = vmatprep.subr.bf16.mxu0 0
  %2207 = vmatpush1.bf16.msra.mxu0 %v2185
  %2208 = vmatprep.subr.bf16.mxu0 0
  %2209 = vmatpush1.bf16.msra.mxu0 %v2186
  %2210 = vmatprep.subr.bf16.mxu0 0
  %2211 = vmatpush1.bf16.msra.mxu0 %v2187
  %2212 = vmatprep.subr.bf16.mxu0 0
  %2213 = vmatpush1.bf16.msra.mxu0 0
  %2214 = vmatprep.subr.bf16.mxu0 0
  %2215 = vmatpush1.bf16.msra.mxu0 0
  %2216 = vmatprep.subr.bf16.mxu0 0
  %2217 = vmatpush1.bf16.msra.mxu0 0
  %2218 = vmatprep.subr.bf16.mxu0 0
  %2219 = vmatpush1.bf16.msra.mxu0 0
  %2220 = vmatprep.subr.bf16.mxu0 0
  %2221 = vmatpush1.bf16.msra.mxu0 0
  %2222 = vmatprep.subr.bf16.mxu0 0
  %2223 = vmatpush1.bf16.msra.mxu0 0
  %2224 = vmatprep.subr.bf16.mxu0 0
  %2225 = vmatpush1.bf16.msra.mxu0 0
  %2226 = vmatprep.subr.bf16.mxu0 0
  %2227 = vmatpush1.bf16.msra.mxu0 0
  %2228 = vmatprep.mubr.bf16.mxu0 0
  %2229 = vmatmul.mubr.bf16.gmra.mrb[0].mxu0 %v2131
  %v2230 = vpop.f32.mrb[0].mxu0
  %v2231 = vadd.f32 0.0, %v2230
  %v2232 = vpop.f32.mrb[0].mxu0
  %v2233 = vpop.f32.mrb[0].mxu0
  %v2234 = vpop.f32.mrb[0].mxu0
  %2235 = vdwg.mxu0
  %v2236 = vmax.f32 %v2231, 0.0
  %v2237 = vpack.c.bf16 %v2236, %v2236
  %v2238 = vld [vmem:[%s3] sm:$0xf]
  %v2239 = vld [vmem:[%s3 + $0x4] sm:$0xf]
  %v2240 = vld [vmem:[%s3 + $0x8] sm:$0xf]
  %v2241 = vld [vmem:[%s3 + $0xc] sm:$0xf]
  %v2242 = vld [vmem:[%s3 + $0x10] sm:$0xf]
  %v2243 = vld [vmem:[%s3 + $0x14] sm:$0xf]
  %v2244 = vld [vmem:[%s3 + $0x18] sm:$0xf]
  %v2245 = vld [vmem:[%s3 + $0x1c] sm:$0xf]
  %v2246 = vld [vmem:[%s3 + $0x20] sm:$0xf]
  %v2247 = vld [vmem:[%s3 + $0x24] sm:$0xf]
  %v2248 = vld [vmem:[%s3 + $0x28] sm:$0xf]
  %v2249 = vld [vmem:[%s3 + $0x2c] sm:$0xf]
  %v2250 = vld [vmem:[%s3 + $0x30] sm:$0xf]
  %v2251 = vld [vmem:[%s3 + $0x34] sm:$0xf]
  %v2252 = vld [vmem:[%s3 + $0x38] sm:$0xf]
  %v2253 = vld [vmem:[%s3 + $0x3c] sm:$0xf]
  %v2270 = vunpack.c.l.b16 %v2238
  %v2271 = vunpack.c.l.b16 %v2239
  %v2272 = vunpack.c.l.b16 %v2240
  %v2273 = vunpack.c.l.b16 %v2241
  %v2274 = vunpack.c.l.b16 %v2242
  %v2275 = vunpack.c.l.b16 %v2243
  %v2276 = vunpack.c.l.b16 %v2244
  %v2277 = vunpack.c.l.b16 %v2245
  %v2278 = vunpack.c.l.b16 %v2246
  %v2279 = vunpack.c.l.b16 %v2247
  %v2280 = vunpack.c.l.b16 %v2248
  %v2281 = vunpack.c.l.b16 %v2249
  %v2282 = vunpack.c.l.b16 %v2250
  %v2283 = vunpack.c.l.b16 %v2251
  %v2284 = vunpack.c.l.b16 %v2252
  %v2285 = vunpack.c.l.b16 %v2253
  %v2286 = vpack.c.b16 %v2271, %v2270
  %v2287 = vpack.c.b16 %v2273, %v2272
  %v2288 = vpack.c.b16 %v2275, %v2274
  %v2289 = vpack.c.b16 %v2277, %v2276
  %v2290 = vpack.c.b16 %v2279, %v2278
  %v2291 = vpack.c.b16 %v2281, %v2280
  %v2292 = vpack.c.b16 %v2283, %v2282
  %v2293 = vpack.c.b16 %v2285, %v2284
  %2302 = vmatprep.subr.bf16.mxu0 0
  %2303 = vmatpush1.bf16.msra.mxu0 %v2286
  %2304 = vmatprep.subr.bf16.mxu0 0
  %2305 = vmatpush1.bf16.msra.mxu0 %v2287
  %2306 = vmatprep.subr.bf16.mxu0 0
  %2307 = vmatpush1.bf16.msra.mxu0 %v2288
  %2308 = vmatprep.subr.bf16.mxu0 0
  %2309 = vmatpush1.bf16.msra.mxu0 %v2289
  %2310 = vmatprep.subr.bf16.mxu0 0
  %2311 = vmatpush1.bf16.msra.mxu0 %v2290
  %2312 = vmatprep.subr.bf16.mxu0 0
  %2313 = vmatpush1.bf16.msra.mxu0 %v2291
  %2314 = vmatprep.subr.bf16.mxu0 0
  %2315 = vmatpush1.bf16.msra.mxu0 %v2292
  %2316 = vmatprep.subr.bf16.mxu0 0
  %2317 = vmatpush1.bf16.msra.mxu0 %v2293
  %2318 = vmatprep.subr.bf16.mxu0 0
  %2319 = vmatpush1.bf16.msra.mxu0 0
  %2320 = vmatprep.subr.bf16.mxu0 0
  %2321 = vmatpush1.bf16.msra.mxu0 0
  %2322 = vmatprep.subr.bf16.mxu0 0
  %2323 = vmatpush1.bf16.msra.mxu0 0
  %2324 = vmatprep.subr.bf16.mxu0 0
  %2325 = vmatpush1.bf16.msra.mxu0 0
  %2326 = vmatprep.subr.bf16.mxu0 0
  %2327 = vmatpush1.bf16.msra.mxu0 0
  %2328 = vmatprep.subr.bf16.mxu0 0
  %2329 = vmatpush1.bf16.msra.mxu0 0
  %2330 = vmatprep.subr.bf16.mxu0 0
  %2331 = vmatpush1.bf16.msra.mxu0 0
  %2332 = vmatprep.subr.bf16.mxu0 0
  %2333 = vmatpush1.bf16.msra.mxu0 0
  %2334 = vmatprep.mubr.bf16.mxu0 0
  %2335 = vmatmul.mubr.bf16.gmra.mrb[0].mxu0 %v2237
  %v2336 = vpop.f32.mrb[0].mxu0
  %v2337 = vadd.f32 0.0, %v2336
  %v2338 = vpop.f32.mrb[0].mxu0
  %v2339 = vpop.f32.mrb[0].mxu0
  %v2340 = vpop.f32.mrb[0].mxu0
  %2341 = vdwg.mxu0
  %2342 = vst [vmem:[%s4] sm:$0xff] %v2337
  // Predicated region
  $region18: #{adaptive_conv_net.3} parent=0 // pred_check
    _
  $region19: #{adaptive_conv_net.3} parent=0 // pred_check_branch
    %2344 = sbr.rel (0) target = $region21
  $region20: #{adaptive_conv_net.3} parent=0 // pred_region
    _
  $region21: #{adaptive_conv_net.3} parent=0 // pred_fallthru
    _
  // Predicated region
  $region22: #{adaptive_conv_net.3} parent=0 // pred_check
    _
  $region23: #{adaptive_conv_net.3} parent=0 // pred_check_branch
    %2346 = sbr.rel (0) target = $region25
  $region24: #{adaptive_conv_net.3} parent=0 // pred_region
    _
  $region25: #{adaptive_conv_net.3} parent=0 // pred_fallthru
    _

// kernel: adaptive_conv_net.2
$region0: #{adaptive_conv_net.2}
  #allocation0 [shape = 'u32[]', space=smem, size = 0x4, offset = 0x4, fixed_abs, tag = 'smem constant byte address 0x4 - core index']
  #allocation1 [shape = 'u32[144,128]{1,0:T(1,128)}', space=vmem, size = 0x12000, scoped, tag = 'internal scratch']
  #allocation2 [shape = 'bf16[252,128]{1,0:T(8,128)(2,1)}', space=vmem, size = 0x10000, scoped, tag = 'scratch operand']
  %s0 = inlined_call_operand.vmem [shape: bf16[256,128], index: 0, kind: input, shape index: {}]
  %s1 = inlined_call_operand.hbm [shape: bf16[5,128,128], index: 1, kind: input, shape index: {}]
  %s2 = inlined_call_operand.hbm [shape: bf16[5,128,128], index: 2, kind: input, shape index: {}]
  %s3 = inlined_call_operand.vmem [shape: bf16[8,24,128], index: 3, kind: output, shape index: {}]
  %s4 = sld [smem:[#allocation0]]
  $region30: #{adaptive_conv_net.2} parent=0
    _
  %s6 = ssub.s32 1, %s4
  %s7 = scalar_select 0, %s6, %s4
  $region1: #{adaptive_conv_net.2} parent=0
    #allocation3 [shape = 'u8[163840]{0}', space=vmem, size = 0x28000, scoped, tag = 'input window, operand 1, single buffered']
    #allocation4 [shape = 's32[1]{0}', space=sflag, size = 0x4, scoped, tag = 'scoped memory for adaptive_conv_net.2']
    #allocation5 [shape = 'u8[163840]{0}', space=vmem, size = 0x28000, scoped, tag = 'input window, operand 2, single buffered']
    #allocation6 [shape = 's32[1]{0}', space=sflag, size = 0x4, scoped, tag = 'scoped memory for adaptive_conv_net.2']
    %8 = vsyncpa [#allocation4], 0
    %9 = vsyncpa [#allocation6], 0
    // Predicated region
    $region2: #{adaptive_conv_net.2} parent=1 // pred_check
      _
    $region3: #{adaptive_conv_net.2} parent=1 // pred_check_branch
      %11 = sbr.rel (0) target = $region5
    $region4: #{adaptive_conv_net.2} parent=1 // pred_region
      _
    $region5: #{adaptive_conv_net.2} parent=1 // pred_fallthru
      _
    // Predicated region
    $region6: #{adaptive_conv_net.2} parent=1 // pred_check
      _
    $region7: #{adaptive_conv_net.2} parent=1 // pred_check_branch
      %13 = sbr.rel (0) target = $region9
    $region8: #{adaptive_conv_net.2} parent=1 // pred_region
      %s15 = ssub.s32 5120, 5120
      %16 = vsyncadd [#allocation4], %s15
      %s17 = sshll.u32 [#allocation3], 4
      %s18 = int_to_ptr.vmem [resolvable:$true] %s17
      %23 = dma.hbm_to_vmem [thread:$0]  %s1, 5120, %s18, [#allocation4], 64, 64, 4
    $region9: #{adaptive_conv_net.2} parent=1 // pred_fallthru
      _
    // Predicated region
    $region10: #{adaptive_conv_net.2} parent=1 // pred_check
      _
    $region11: #{adaptive_conv_net.2} parent=1 // pred_check_branch
      %25 = sbr.rel (0) target = $region13
    $region12: #{adaptive_conv_net.2} parent=1 // pred_region
      %s27 = ssub.s32 5120, 5120
      %28 = vsyncadd [#allocation6], %s27
      %s29 = sshll.u32 [#allocation5], 4
      %s30 = int_to_ptr.vmem [resolvable:$true] %s29
      %35 = dma.hbm_to_vmem [thread:$0]  %s2, 5120, %s30, [#allocation6], 64, 64, 4
    $region13: #{adaptive_conv_net.2} parent=1 // pred_fallthru
      _
    // Predicated region
    $region14: #{adaptive_conv_net.2} parent=1 // pred_check
      _
    $region15: #{adaptive_conv_net.2} parent=1 // pred_check_branch
      %37 = sbr.rel (0) target = $region17
    $region16: #{adaptive_conv_net.2} parent=1 // pred_region
      %38 = dma.done [#allocation4], 5120
    $region17: #{adaptive_conv_net.2} parent=1 // pred_fallthru
      _
    // Predicated region
    $region18: #{adaptive_conv_net.2} parent=1 // pred_check
      _
    $region19: #{adaptive_conv_net.2} parent=1 // pred_check_branch
      %40 = sbr.rel (0) target = $region21
    $region20: #{adaptive_conv_net.2} parent=1 // pred_region
      %41 = dma.done [#allocation6], 5120
    $region21: #{adaptive_conv_net.2} parent=1 // pred_fallthru
      _
    %v43 = vld [vmem:[%s0] sm:$0xf]
    %v44 = vld [vmem:[%s0 + $0x4] sm:$0xf]
    %v45 = vld [vmem:[%s0 + $0x8] sm:$0xf]
    %v46 = vld [vmem:[%s0 + $0xc] sm:$0xf]
    %v47 = vld [vmem:[%s0 + $0x10] sm:$0xf]
    %v48 = vld [vmem:[%s0 + $0x14] sm:$0xf]
    %v49 = vld [vmem:[%s0 + $0x18] sm:$0xf]
    %v50 = vld [vmem:[%s0 + $0x1c] sm:$0xf]
    %v51 = vld [vmem:[%s0 + $0x20] sm:$0xf]
    %v52 = vld [vmem:[%s0 + $0x24] sm:$0xf]
    %v53 = vld [vmem:[%s0 + $0x28] sm:$0xf]
    %v54 = vld [vmem:[%s0 + $0x2c] sm:$0xf]
    %v55 = vld [vmem:[%s0 + $0x30] sm:$0xf]
    %v56 = vld [vmem:[%s0 + $0x34] sm:$0xf]
    %v57 = vld [vmem:[%s0 + $0x38] sm:$0xf]
    %v58 = vld [vmem:[%s0 + $0x3c] sm:$0xf]
    %v59 = vld [vmem:[%s0 + $0x40] sm:$0xf]
    %v60 = vld [vmem:[%s0 + $0x44] sm:$0xf]
    %v61 = vld [vmem:[%s0 + $0x48] sm:$0xf]
    %v62 = vld [vmem:[%s0 + $0x4c] sm:$0xf]
    %v63 = vld [vmem:[%s0 + $0x50] sm:$0xf]
    %v64 = vld [vmem:[%s0 + $0x54] sm:$0xf]
    %v65 = vld [vmem:[%s0 + $0x58] sm:$0xf]
    %v66 = vld [vmem:[%s0 + $0x5c] sm:$0xf]
    %v67 = vld [vmem:[%s0 + $0x60] sm:$0xf]
    %v68 = vld [vmem:[%s0 + $0x64] sm:$0xf]
    %v69 = vld [vmem:[%s0 + $0x68] sm:$0xf]
    %v70 = vld [vmem:[%s0 + $0x6c] sm:$0xf]
    %v71 = vld [vmem:[%s0 + $0x70] sm:$0xf]
    %v72 = vld [vmem:[%s0 + $0x74] sm:$0xf]
    %v73 = vld [vmem:[%s0 + $0x78] sm:$0xf]
    %v74 = vld [vmem:[%s0 + $0x7c] sm:$0x3]
    %v75 = vld [vmem:[#allocation3] sm:$0xf]
    %v76 = vld [vmem:[#allocation3 + $0x4] sm:$0xf]
    %v77 = vld [vmem:[#allocation3 + $0x8] sm:$0xf]
    %v78 = vld [vmem:[#allocation3 + $0xc] sm:$0xf]
    %v79 = vld [vmem:[#allocation3 + $0x10] sm:$0xf]
    %v80 = vld [vmem:[#allocation3 + $0x14] sm:$0xf]
    %v81 = vld [vmem:[#allocation3 + $0x18] sm:$0xf]
    %v82 = vld [vmem:[#allocation3 + $0x1c] sm:$0xf]
    %v83 = vld [vmem:[#allocation3 + $0x20] sm:$0xf]
    %v84 = vld [vmem:[#allocation3 + $0x24] sm:$0xf]
    %v85 = vld [vmem:[#allocation3 + $0x28] sm:$0xf]
    %v86 = vld [vmem:[#allocation3 + $0x2c] sm:$0xf]
    %v87 = vld [vmem:[#allocation3 + $0x30] sm:$0xf]
    %v88 = vld [vmem:[#allocation3 + $0x34] sm:$0xf]
    %v89 = vld [vmem:[#allocation3 + $0x38] sm:$0xf]
    %v90 = vld [vmem:[#allocation3 + $0x3c] sm:$0xf]
    %v91 = vld [vmem:[%s0 + $0x7c] sm:$0x7]
    %s92 = scalar_lea.vmem [#allocation3], 64
    %v93 = vld [vmem:[%s92] sm:$0xf]
    %v94 = vld [vmem:[%s92 + $0x4] sm:$0xf]
    %v95 = vld [vmem:[%s92 + $0x8] sm:$0xf]
    %v96 = vld [vmem:[%s92 + $0xc] sm:$0xf]
    %v97 = vld [vmem:[%s92 + $0x10] sm:$0xf]
    %v98 = vld [vmem:[%s92 + $0x14] sm:$0xf]
    %v99 = vld [vmem:[%s92 + $0x18] sm:$0xf]
    %v100 = vld [vmem:[%s92 + $0x1c] sm:$0xf]
    %v101 = vld [vmem:[%s92 + $0x20] sm:$0xf]
    %v102 = vld [vmem:[%s92 + $0x24] sm:$0xf]
    %v103 = vld [vmem:[%s92 + $0x28] sm:$0xf]
    %v104 = vld [vmem:[%s92 + $0x2c] sm:$0xf]
    %v105 = vld [vmem:[%s92 + $0x30] sm:$0xf]
    %v106 = vld [vmem:[%s92 + $0x34] sm:$0xf]
    %v107 = vld [vmem:[%s92 + $0x38] sm:$0xf]
    %v108 = vld [vmem:[%s92 + $0x3c] sm:$0xf]
    %v141 = vunpack.c.l.b16 %v43
    %v142 = vunpack.c.l.b16 %v44
    %v143 = vunpack.c.l.b16 %v45
    %v144 = vunpack.c.l.b16 %v46
    %v145 = vunpack.c.l.b16 %v47
    %v146 = vunpack.c.l.b16 %v48
    %v147 = vunpack.c.l.b16 %v49
    %v148 = vunpack.c.l.b16 %v50
    %v149 = vunpack.c.l.b16 %v51
    %v150 = vunpack.c.l.b16 %v52
    %v151 = vunpack.c.l.b16 %v53
    %v152 = vunpack.c.l.b16 %v54
    %v153 = vunpack.c.l.b16 %v55
    %v154 = vunpack.c.l.b16 %v56
    %v155 = vunpack.c.l.b16 %v57
    %v156 = vunpack.c.l.b16 %v58
    %v157 = vunpack.c.l.b16 %v59
    %v158 = vunpack.c.l.b16 %v60
    %v159 = vunpack.c.l.b16 %v61
    %v160 = vunpack.c.l.b16 %v62
    %v161 = vunpack.c.l.b16 %v63
    %v162 = vunpack.c.l.b16 %v64
    %v163 = vunpack.c.l.b16 %v65
    %v164 = vunpack.c.l.b16 %v66
    %v165 = vunpack.c.l.b16 %v67
    %v166 = vunpack.c.l.b16 %v68
    %v167 = vunpack.c.l.b16 %v69
    %v168 = vunpack.c.l.b16 %v70
    %v169 = vunpack.c.l.b16 %v71
    %v170 = vunpack.c.l.b16 %v72
    %v171 = vunpack.c.l.b16 %v73
    %v172 = vunpack.c.l.b16 %v91
    %v173 = vpack.c.b16 %v142, %v141
    %v174 = vpack.c.b16 %v144, %v143
    %v175 = vpack.c.b16 %v146, %v145
    %v176 = vpack.c.b16 %v148, %v147
    %v177 = vpack.c.b16 %v150, %v149
    %v178 = vpack.c.b16 %v152, %v151
    %v179 = vpack.c.b16 %v154, %v153
    %v180 = vpack.c.b16 %v156, %v155
    %v181 = vpack.c.b16 %v158, %v157
    %v182 = vpack.c.b16 %v160, %v159
    %v183 = vpack.c.b16 %v162, %v161
    %v184 = vpack.c.b16 %v164, %v163
    %v185 = vpack.c.b16 %v166, %v165
    %v186 = vpack.c.b16 %v168, %v167
    %v187 = vpack.c.b16 %v170, %v169
    %v188 = vpack.c.b16 %v172, %v171
    %vm189 = vsmask.f32 7424
    %v191 = vshrl.u32 %v173, 16
    %v193 = vshll.u32 %v173, 16
    %v195 = vrot.slane %v193, 1
    %v196 = vor.u32 %v191, %v195
    %v198 = vshll.u32 %v174, 16
    %v200 = vrot.slane %v198, 1
    %v201 = vsel %vm189, %v196, %v200
    %v202 = vshrl.u32 %v174, 16
    %v204 = vor.u32 %v202, %v200
    %v206 = vshll.u32 %v175, 16
    %v208 = vrot.slane %v206, 1
    %v209 = vsel %vm189, %v204, %v208
    %v210 = vshrl.u32 %v175, 16
    %v212 = vor.u32 %v210, %v208
    %v214 = vshll.u32 %v176, 16
    %v216 = vrot.slane %v214, 1
    %v217 = vsel %vm189, %v212, %v216
    %v218 = vshrl.u32 %v176, 16
    %v220 = vor.u32 %v218, %v216
    %v222 = vshll.u32 %v177, 16
    %v224 = vrot.slane %v222, 1
    %v225 = vsel %vm189, %v220, %v224
    %v226 = vshrl.u32 %v177, 16
    %v228 = vor.u32 %v226, %v224
    %v230 = vshll.u32 %v178, 16
    %v232 = vrot.slane %v230, 1
    %v233 = vsel %vm189, %v228, %v232
    %v234 = vshrl.u32 %v178, 16
    %v236 = vor.u32 %v234, %v232
    %v238 = vshll.u32 %v179, 16
    %v240 = vrot.slane %v238, 1
    %v241 = vsel %vm189, %v236, %v240
    %v242 = vshrl.u32 %v179, 16
    %v244 = vor.u32 %v242, %v240
    %v246 = vshll.u32 %v180, 16
    %v248 = vrot.slane %v246, 1
    %v249 = vsel %vm189, %v244, %v248
    %v250 = vshrl.u32 %v180, 16
    %v252 = vor.u32 %v250, %v248
    %v254 = vshll.u32 %v181, 16
    %v256 = vrot.slane %v254, 1
    %v257 = vsel %vm189, %v252, %v256
    %v258 = vshrl.u32 %v181, 16
    %v260 = vor.u32 %v258, %v256
    %v262 = vshll.u32 %v182, 16
    %v264 = vrot.slane %v262, 1
    %v265 = vsel %vm189, %v260, %v264
    %v266 = vshrl.u32 %v182, 16
    %v268 = vor.u32 %v266, %v264
    %v270 = vshll.u32 %v183, 16
    %v272 = vrot.slane %v270, 1
    %v273 = vsel %vm189, %v268, %v272
    %v274 = vshrl.u32 %v183, 16
    %v276 = vor.u32 %v274, %v272
    %v278 = vshll.u32 %v184, 16
    %v280 = vrot.slane %v278, 1
    %v281 = vsel %vm189, %v276, %v280
    %v282 = vshrl.u32 %v184, 16
    %v284 = vor.u32 %v282, %v280
    %v286 = vshll.u32 %v185, 16
    %v288 = vrot.slane %v286, 1
    %v289 = vsel %vm189, %v284, %v288
    %v290 = vshrl.u32 %v185, 16
    %v292 = vor.u32 %v290, %v288
    %v294 = vshll.u32 %v186, 16
    %v296 = vrot.slane %v294, 1
    %v297 = vsel %vm189, %v292, %v296
    %v298 = vshrl.u32 %v186, 16
    %v300 = vor.u32 %v298, %v296
    %v302 = vshll.u32 %v187, 16
    %v304 = vrot.slane %v302, 1
    %v305 = vsel %vm189, %v300, %v304
    %v306 = vshrl.u32 %v187, 16
    %v308 = vor.u32 %v306, %v304
    %v310 = vshll.u32 %v188, 16
    %v312 = vrot.slane %v310, 1
    %v313 = vsel %vm189, %v308, %v312
    %v314 = vshrl.u32 %v188, 16
    %v316 = vor.u32 %v314, %v312
    %v349 = vunpack.c.l.b16 %v93
    %v350 = vunpack.c.l.b16 %v94
    %v351 = vunpack.c.l.b16 %v95
    %v352 = vunpack.c.l.b16 %v96
    %v353 = vunpack.c.l.b16 %v97
    %v354 = vunpack.c.l.b16 %v98
    %v355 = vunpack.c.l.b16 %v99
    %v356 = vunpack.c.l.b16 %v100
    %v357 = vunpack.c.l.b16 %v101
    %v358 = vunpack.c.l.b16 %v102
    %v359 = vunpack.c.l.b16 %v103
    %v360 = vunpack.c.l.b16 %v104
    %v361 = vunpack.c.l.b16 %v105
    %v362 = vunpack.c.l.b16 %v106
    %v363 = vunpack.c.l.b16 %v107
    %v364 = vunpack.c.l.b16 %v108
    %v365 = vpack.c.b16 %v350, %v349
    %v366 = vpack.c.b16 %v352, %v351
    %v367 = vpack.c.b16 %v354, %v353
    %v368 = vpack.c.b16 %v356, %v355
    %v369 = vpack.c.b16 %v358, %v357
    %v370 = vpack.c.b16 %v360, %v359
    %v371 = vpack.c.b16 %v362, %v361
    %v372 = vpack.c.b16 %v364, %v363
    %381 = vmatprep.subr.bf16.mxu0 0
    %382 = vmatpush1.bf16.msra.mxu0 %v365
    %383 = vmatprep.subr.bf16.mxu0 0
    %384 = vmatpush1.bf16.msra.mxu0 %v366
    %385 = vmatprep.subr.bf16.mxu0 0
    %386 = vmatpush1.bf16.msra.mxu0 %v367
    %387 = vmatprep.subr.bf16.mxu0 0
    %388 = vmatpush1.bf16.msra.mxu0 %v368
    %389 = vmatprep.subr.bf16.mxu0 0
    %390 = vmatpush1.bf16.msra.mxu0 %v369
    %391 = vmatprep.subr.bf16.mxu0 0
    %392 = vmatpush1.bf16.msra.mxu0 %v370
    %393 = vmatprep.subr.bf16.mxu0 0
    %394 = vmatpush1.bf16.msra.mxu0 %v371
    %395 = vmatprep.subr.bf16.mxu0 0
    %396 = vmatpush1.bf16.msra.mxu0 %v372
    %397 = vmatprep.subr.bf16.mxu0 0
    %398 = vmatpush1.bf16.msra.mxu0 0
    %399 = vmatprep.subr.bf16.mxu0 0
    %400 = vmatpush1.bf16.msra.mxu0 0
    %401 = vmatprep.subr.bf16.mxu0 0
    %402 = vmatpush1.bf16.msra.mxu0 0
    %403 = vmatprep.subr.bf16.mxu0 0
    %404 = vmatpush1.bf16.msra.mxu0 0
    %405 = vmatprep.subr.bf16.mxu0 0
    %406 = vmatpush1.bf16.msra.mxu0 0
    %407 = vmatprep.subr.bf16.mxu0 0
    %408 = vmatpush1.bf16.msra.mxu0 0
    %409 = vmatprep.subr.bf16.mxu0 0
    %410 = vmatpush1.bf16.msra.mxu0 0
    %411 = vmatprep.subr.bf16.mxu0 0
    %412 = vmatpush1.bf16.msra.mxu0 0
    %413 = vmatprep.mubr.bf16.mxu0 0
    %414 = vmatmul.mubr.bf16.gmra.mrb[0].mxu0 %v201
    %v415 = vpop.f32.mrb[0].mxu0
    %v416 = vadd.f32 0.0, %v415
    %v417 = vpop.f32.mrb[0].mxu0
    %v418 = vpop.f32.mrb[0].mxu0
    %v419 = vadd.f32 0.0, %v418
    %v420 = vpop.f32.mrb[0].mxu0
    %421 = vmatprep.mubr.bf16.mxu0 0
    %422 = vmatmul.mubr.bf16.gmra.mrb[0].mxu0 %v209
    %v423 = vpop.f32.mrb[0].mxu0
    %v424 = vadd.f32 0.0, %v423
    %v425 = vpop.f32.mrb[0].mxu0
    %v426 = vpop.f32.mrb[0].mxu0
    %v427 = vadd.f32 0.0, %v426
    %v428 = vpop.f32.mrb[0].mxu0
    %429 = vmatprep.mubr.bf16.mxu0 0
    %430 = vmatmul.mubr.bf16.gmra.mrb[0].mxu0 %v217
    %v431 = vpop.f32.mrb[0].mxu0
    %v432 = vadd.f32 0.0, %v431
    %v433 = vpop.f32.mrb[0].mxu0
    %v434 = vpop.f32.mrb[0].mxu0
    %v435 = vadd.f32 0.0, %v434
    %v436 = vpop.f32.mrb[0].mxu0
    %437 = vmatprep.mubr.bf16.mxu0 0
    %438 = vmatmul.mubr.bf16.gmra.mrb[0].mxu0 %v225
    %v439 = vpop.f32.mrb[0].mxu0
    %v440 = vadd.f32 0.0, %v439
    %v441 = vpop.f32.mrb[0].mxu0
    %v442 = vpop.f32.mrb[0].mxu0
    %v443 = vadd.f32 0.0, %v442
    %v444 = vpop.f32.mrb[0].mxu0
    %445 = vmatprep.mubr.bf16.mxu0 0
    %446 = vmatmul.mubr.bf16.gmra.mrb[0].mxu0 %v233
    %v447 = vpop.f32.mrb[0].mxu0
    %v448 = vadd.f32 0.0, %v447
    %v449 = vpop.f32.mrb[0].mxu0
    %v450 = vpop.f32.mrb[0].mxu0
    %v451 = vadd.f32 0.0, %v450
    %v452 = vpop.f32.mrb[0].mxu0
    %453 = vmatprep.mubr.bf16.mxu0 0
    %454 = vmatmul.mubr.bf16.gmra.mrb[0].mxu0 %v241
    %v455 = vpop.f32.mrb[0].mxu0
    %v456 = vadd.f32 0.0, %v455
    %v457 = vpop.f32.mrb[0].mxu0
    %v458 = vpop.f32.mrb[0].mxu0
    %v459 = vadd.f32 0.0, %v458
    %v460 = vpop.f32.mrb[0].mxu0
    %461 = vmatprep.mubr.bf16.mxu0 0
    %462 = vmatmul.mubr.bf16.gmra.mrb[0].mxu0 %v249
    %v463 = vpop.f32.mrb[0].mxu0
    %v464 = vadd.f32 0.0, %v463
    %v465 = vpop.f32.mrb[0].mxu0
    %v466 = vpop.f32.mrb[0].mxu0
    %v467 = vadd.f32 0.0, %v466
    %v468 = vpop.f32.mrb[0].mxu0
    %469 = vmatprep.mubr.bf16.mxu0 0
    %470 = vmatmul.mubr.bf16.gmra.mrb[0].mxu0 %v257
    %v471 = vpop.f32.mrb[0].mxu0
    %v472 = vadd.f32 0.0, %v471
    %v473 = vpop.f32.mrb[0].mxu0
    %v474 = vpop.f32.mrb[0].mxu0
    %v475 = vadd.f32 0.0, %v474
    %v476 = vpop.f32.mrb[0].mxu0
    %477 = vmatprep.mubr.bf16.mxu0 0
    %478 = vmatmul.mubr.bf16.gmra.mrb[0].mxu0 %v265
    %v479 = vpop.f32.mrb[0].mxu0
    %v480 = vadd.f32 0.0, %v479
    %v481 = vpop.f32.mrb[0].mxu0
    %v482 = vpop.f32.mrb[0].mxu0
    %v483 = vadd.f32 0.0, %v482
    %v484 = vpop.f32.mrb[0].mxu0
    %485 = vmatprep.mubr.bf16.mxu0 0
    %486 = vmatmul.mubr.bf16.gmra.mrb[0].mxu0 %v273
    %v487 = vpop.f32.mrb[0].mxu0
    %v488 = vadd.f32 0.0, %v487
    %v489 = vpop.f32.mrb[0].mxu0
    %v490 = vpop.f32.mrb[0].mxu0
    %v491 = vadd.f32 0.0, %v490
    %v492 = vpop.f32.mrb[0].mxu0
    %493 = vmatprep.mubr.bf16.mxu0 0
    %494 = vmatmul.mubr.bf16.gmra.mrb[0].mxu0 %v281
    %v495 = vpop.f32.mrb[0].mxu0
    %v496 = vadd.f32 0.0, %v495
    %v497 = vpop.f32.mrb[0].mxu0
    %v498 = vpop.f32.mrb[0].mxu0
    %v499 = vadd.f32 0.0, %v498
    %v500 = vpop.f32.mrb[0].mxu0
    %501 = vmatprep.mubr.bf16.mxu0 0
    %502 = vmatmul.mubr.bf16.gmra.mrb[0].mxu0 %v289
    %v503 = vpop.f32.mrb[0].mxu0
    %v504 = vadd.f32 0.0, %v503
    %v505 = vpop.f32.mrb[0].mxu0
    %v506 = vpop.f32.mrb[0].mxu0
    %v507 = vadd.f32 0.0, %v506
    %v508 = vpop.f32.mrb[0].mxu0
    %509 = vmatprep.mubr.bf16.mxu0 0
    %510 = vmatmul.mubr.bf16.gmra.mrb[0].mxu0 %v297
    %v511 = vpop.f32.mrb[0].mxu0
    %v512 = vadd.f32 0.0, %v511
    %v513 = vpop.f32.mrb[0].mxu0
    %v514 = vpop.f32.mrb[0].mxu0
    %v515 = vadd.f32 0.0, %v514
    %v516 = vpop.f32.mrb[0].mxu0
    %517 = vmatprep.mubr.bf16.mxu0 0
    %518 = vmatmul.mubr.bf16.gmra.mrb[0].mxu0 %v305
    %v519 = vpop.f32.mrb[0].mxu0
    %v520 = vadd.f32 0.0, %v519
    %v521 = vpop.f32.mrb[0].mxu0
    %v522 = vpop.f32.mrb[0].mxu0
    %v523 = vadd.f32 0.0, %v522
    %v524 = vpop.f32.mrb[0].mxu0
    %525 = vmatprep.mubr.bf16.mxu0 0
    %526 = vmatmul.mubr.bf16.gmra.mrb[0].mxu0 %v313
    %v527 = vpop.f32.mrb[0].mxu0
    %v528 = vadd.f32 0.0, %v527
    %v529 = vpop.f32.mrb[0].mxu0
    %v530 = vpop.f32.mrb[0].mxu0
    %v531 = vadd.f32 0.0, %v530
    %v532 = vpop.f32.mrb[0].mxu0
    %533 = vmatprep.mubr.bf16.mxu0 0
    %534 = vmatmul.mubr.bf16.gmra.mrb[0].mxu0 %v316
    %v535 = vpop.f32.mrb[0].mxu0
    %v536 = vadd.f32 0.0, %v535
    %v537 = vpop.f32.mrb[0].mxu0
    %v538 = vpop.f32.mrb[0].mxu0
    %v539 = vadd.f32 0.0, %v538
    %v540 = vpop.f32.mrb[0].mxu0
    %541 = vdwg.mxu0
    %v543 = vunpack.c.l.b16 %v74
    %v544 = vpack.c.b16 %v543, %v171
    %v577 = vunpack.c.l.b16 %v75
    %v578 = vunpack.c.l.b16 %v76
    %v579 = vunpack.c.l.b16 %v77
    %v580 = vunpack.c.l.b16 %v78
    %v581 = vunpack.c.l.b16 %v79
    %v582 = vunpack.c.l.b16 %v80
    %v583 = vunpack.c.l.b16 %v81
    %v584 = vunpack.c.l.b16 %v82
    %v585 = vunpack.c.l.b16 %v83
    %v586 = vunpack.c.l.b16 %v84
    %v587 = vunpack.c.l.b16 %v85
    %v588 = vunpack.c.l.b16 %v86
    %v589 = vunpack.c.l.b16 %v87
    %v590 = vunpack.c.l.b16 %v88
    %v591 = vunpack.c.l.b16 %v89
    %v592 = vunpack.c.l.b16 %v90
    %v593 = vpack.c.b16 %v578, %v577
    %v594 = vpack.c.b16 %v580, %v579
    %v595 = vpack.c.b16 %v582, %v581
    %v596 = vpack.c.b16 %v584, %v583
    %v597 = vpack.c.b16 %v586, %v585
    %v598 = vpack.c.b16 %v588, %v587
    %v599 = vpack.c.b16 %v590, %v589
    %v600 = vpack.c.b16 %v592, %v591
    %609 = vmatprep.subr.bf16.mxu0 0
    %610 = vmatpush1.bf16.msra.mxu0 %v593
    %611 = vmatprep.subr.bf16.mxu0 0
    %612 = vmatpush1.bf16.msra.mxu0 %v594
    %613 = vmatprep.subr.bf16.mxu0 0
    %614 = vmatpush1.bf16.msra.mxu0 %v595
    %615 = vmatprep.subr.bf16.mxu0 0
    %616 = vmatpush1.bf16.msra.mxu0 %v596
    %617 = vmatprep.subr.bf16.mxu0 0
    %618 = vmatpush1.bf16.msra.mxu0 %v597
    %619 = vmatprep.subr.bf16.mxu0 0
    %620 = vmatpush1.bf16.msra.mxu0 %v598
    %621 = vmatprep.subr.bf16.mxu0 0
    %622 = vmatpush1.bf16.msra.mxu0 %v599
    %623 = vmatprep.subr.bf16.mxu0 0
    %624 = vmatpush1.bf16.msra.mxu0 %v600
    %625 = vmatprep.subr.bf16.mxu0 0
    %626 = vmatpush1.bf16.msra.mxu0 0
    %627 = vmatprep.subr.bf16.mxu0 0
    %628 = vmatpush1.bf16.msra.mxu0 0
    %629 = vmatprep.subr.bf16.mxu0 0
    %630 = vmatpush1.bf16.msra.mxu0 0
    %631 = vmatprep.subr.bf16.mxu0 0
    %632 = vmatpush1.bf16.msra.mxu0 0
    %633 = vmatprep.subr.bf16.mxu0 0
    %634 = vmatpush1.bf16.msra.mxu0 0
    %635 = vmatprep.subr.bf16.mxu0 0
    %636 = vmatpush1.bf16.msra.mxu0 0
    %637 = vmatprep.subr.bf16.mxu0 0
    %638 = vmatpush1.bf16.msra.mxu0 0
    %639 = vmatprep.subr.bf16.mxu0 0
    %640 = vmatpush1.bf16.msra.mxu0 0
    %641 = vmatprep.mubr.bf16.mxu0 0
    %642 = vmatmul.mubr.bf16.gmra.mrb[0].mxu0 %v173
    %v643 = vpop.f32.mrb[0].mxu0
    %v644 = vadd.f32 %v416, %v643
    %v645 = vpop.f32.mrb[0].mxu0
    %v646 = vpop.f32.mrb[0].mxu0
    %v647 = vadd.f32 %v419, %v646
    %v648 = vpop.f32.mrb[0].mxu0
    %649 = vmatprep.mubr.bf16.mxu0 0
    %650 = vmatmul.mubr.bf16.gmra.mrb[0].mxu0 %v174
    %v651 = vpop.f32.mrb[0].mxu0
    %v652 = vadd.f32 %v424, %v651
    %v653 = vpop.f32.mrb[0].mxu0
    %v654 = vpop.f32.mrb[0].mxu0
    %v655 = vadd.f32 %v427, %v654
    %v656 = vpop.f32.mrb[0].mxu0
    %657 = vmatprep.mubr.bf16.mxu0 0
    %658 = vmatmul.mubr.bf16.gmra.mrb[0].mxu0 %v175
    %v659 = vpop.f32.mrb[0].mxu0
    %v660 = vadd.f32 %v432, %v659
    %v661 = vpop.f32.mrb[0].mxu0
    %v662 = vpop.f32.mrb[0].mxu0
    %v663 = vadd.f32 %v435, %v662
    %v664 = vpop.f32.mrb[0].mxu0
    %665 = vmatprep.mubr.bf16.mxu0 0
    %666 = vmatmul.mubr.bf16.gmra.mrb[0].mxu0 %v176
    %v667 = vpop.f32.mrb[0].mxu0
    %v668 = vadd.f32 %v440, %v667
    %v669 = vpop.f32.mrb[0].mxu0
    %v670 = vpop.f32.mrb[0].mxu0
    %v671 = vadd.f32 %v443, %v670
    %v672 = vpop.f32.mrb[0].mxu0
    %673 = vmatprep.mubr.bf16.mxu0 0
    %674 = vmatmul.mubr.bf16.gmra.mrb[0].mxu0 %v177
    %v675 = vpop.f32.mrb[0].mxu0
    %v676 = vadd.f32 %v448, %v675
    %v677 = vpop.f32.mrb[0].mxu0
    %v678 = vpop.f32.mrb[0].mxu0
    %v679 = vadd.f32 %v451, %v678
    %v680 = vpop.f32.mrb[0].mxu0
    %681 = vmatprep.mubr.bf16.mxu0 0
    %682 = vmatmul.mubr.bf16.gmra.mrb[0].mxu0 %v178
    %v683 = vpop.f32.mrb[0].mxu0
    %v684 = vadd.f32 %v456, %v683
    %v685 = vpop.f32.mrb[0].mxu0
    %v686 = vpop.f32.mrb[0].mxu0
    %v687 = vadd.f32 %v459, %v686
    %v688 = vpop.f32.mrb[0].mxu0
    %689 = vmatprep.mubr.bf16.mxu0 0
    %690 = vmatmul.mubr.bf16.gmra.mrb[0].mxu0 %v179
    %v691 = vpop.f32.mrb[0].mxu0
    %v692 = vadd.f32 %v464, %v691
    %v693 = vpop.f32.mrb[0].mxu0
    %v694 = vpop.f32.mrb[0].mxu0
    %v695 = vadd.f32 %v467, %v694
    %v696 = vpop.f32.mrb[0].mxu0
    %697 = vmatprep.mubr.bf16.mxu0 0
    %698 = vmatmul.mubr.bf16.gmra.mrb[0].mxu0 %v180
    %v699 = vpop.f32.mrb[0].mxu0
    %v700 = vadd.f32 %v472, %v699
    %v701 = vpop.f32.mrb[0].mxu0
    %v702 = vpop.f32.mrb[0].mxu0
    %v703 = vadd.f32 %v475, %v702
    %v704 = vpop.f32.mrb[0].mxu0
    %705 = vmatprep.mubr.bf16.mxu0 0
    %706 = vmatmul.mubr.bf16.gmra.mrb[0].mxu0 %v181
    %v707 = vpop.f32.mrb[0].mxu0
    %v708 = vadd.f32 %v480, %v707
    %v709 = vpop.f32.mrb[0].mxu0
    %v710 = vpop.f32.mrb[0].mxu0
    %v711 = vadd.f32 %v483, %v710
    %v712 = vpop.f32.mrb[0].mxu0
    %713 = vmatprep.mubr.bf16.mxu0 0
    %714 = vmatmul.mubr.bf16.gmra.mrb[0].mxu0 %v182
    %v715 = vpop.f32.mrb[0].mxu0
    %v716 = vadd.f32 %v488, %v715
    %v717 = vpop.f32.mrb[0].mxu0
    %v718 = vpop.f32.mrb[0].mxu0
    %v719 = vadd.f32 %v491, %v718
    %v720 = vpop.f32.mrb[0].mxu0
    %721 = vmatprep.mubr.bf16.mxu0 0
    %722 = vmatmul.mubr.bf16.gmra.mrb[0].mxu0 %v183
    %v723 = vpop.f32.mrb[0].mxu0
    %v724 = vadd.f32 %v496, %v723
    %v725 = vpop.f32.mrb[0].mxu0
    %v726 = vpop.f32.mrb[0].mxu0
    %v727 = vadd.f32 %v499, %v726
    %v728 = vpop.f32.mrb[0].mxu0
    %729 = vmatprep.mubr.bf16.mxu0 0
    %730 = vmatmul.mubr.bf16.gmra.mrb[0].mxu0 %v184
    %v731 = vpop.f32.mrb[0].mxu0
    %v732 = vadd.f32 %v504, %v731
    %v733 = vpop.f32.mrb[0].mxu0
    %v734 = vpop.f32.mrb[0].mxu0
    %v735 = vadd.f32 %v507, %v734
    %v736 = vpop.f32.mrb[0].mxu0
    %737 = vmatprep.mubr.bf16.mxu0 0
    %738 = vmatmul.mubr.bf16.gmra.mrb[0].mxu0 %v185
    %v739 = vpop.f32.mrb[0].mxu0
    %v740 = vadd.f32 %v512, %v739
    %v741 = vpop.f32.mrb[0].mxu0
    %v742 = vpop.f32.mrb[0].mxu0
    %v743 = vadd.f32 %v515, %v742
    %v744 = vpop.f32.mrb[0].mxu0
    %745 = vmatprep.mubr.bf16.mxu0 0
    %746 = vmatmul.mubr.bf16.gmra.mrb[0].mxu0 %v186
    %v747 = vpop.f32.mrb[0].mxu0
    %v748 = vadd.f32 %v520, %v747
    %v749 = vpop.f32.mrb[0].mxu0
    %v750 = vpop.f32.mrb[0].mxu0
    %v751 = vadd.f32 %v523, %v750
    %v752 = vpop.f32.mrb[0].mxu0
    %753 = vmatprep.mubr.bf16.mxu0 0
    %754 = vmatmul.mubr.bf16.gmra.mrb[0].mxu0 %v187
    %v755 = vpop.f32.mrb[0].mxu0
    %v756 = vadd.f32 %v528, %v755
    %v757 = vpop.f32.mrb[0].mxu0
    %v758 = vpop.f32.mrb[0].mxu0
    %v759 = vadd.f32 %v531, %v758
    %v760 = vpop.f32.mrb[0].mxu0
    %761 = vmatprep.mubr.bf16.mxu0 0
    %762 = vmatmul.mubr.bf16.gmra.mrb[0].mxu0 %v544
    %v763 = vpop.f32.mrb[0].mxu0
    %v764 = vadd.f32 %v536, %v763
    %v765 = vpop.f32.mrb[0].mxu0
    %v766 = vpop.f32.mrb[0].mxu0
    %v767 = vadd.f32 %v539, %v766
    %v768 = vpop.f32.mrb[0].mxu0
    %769 = vdwg.mxu0
    %v770 = vld [vmem:[%s0] sm:$0xe]
    %s771 = scalar_lea.vmem [#allocation3], 128
    %v772 = vld [vmem:[%s771] sm:$0xf]
    %v773 = vld [vmem:[%s771 + $0x4] sm:$0xf]
    %v774 = vld [vmem:[%s771 + $0x8] sm:$0xf]
    %v775 = vld [vmem:[%s771 + $0xc] sm:$0xf]
    %v776 = vld [vmem:[%s771 + $0x10] sm:$0xf]
    %v777 = vld [vmem:[%s771 + $0x14] sm:$0xf]
    %v778 = vld [vmem:[%s771 + $0x18] sm:$0xf]
    %v779 = vld [vmem:[%s771 + $0x1c] sm:$0xf]
    %v780 = vld [vmem:[%s771 + $0x20] sm:$0xf]
    %v781 = vld [vmem:[%s771 + $0x24] sm:$0xf]
    %v782 = vld [vmem:[%s771 + $0x28] sm:$0xf]
    %v783 = vld [vmem:[%s771 + $0x2c] sm:$0xf]
    %v784 = vld [vmem:[%s771 + $0x30] sm:$0xf]
    %v785 = vld [vmem:[%s771 + $0x34] sm:$0xf]
    %v786 = vld [vmem:[%s771 + $0x38] sm:$0xf]
    %v787 = vld [vmem:[%s771 + $0x3c] sm:$0xf]
    %v789 = vunpack.c.l.b16 %v770
    %v790 = vpack.c.b16 %v142, %v789
    %vm791 = vcmask 1046528
    %v792 = vrot.slane %v790, 1
    %v793 = vrot.slane %v174, 1
    %v794 = vsel %vm791, %v792, %v793
    %v795 = vrot.slane %v175, 1
    %v796 = vsel %vm791, %v793, %v795
    %v797 = vrot.slane %v176, 1
    %v798 = vsel %vm791, %v795, %v797
    %v799 = vrot.slane %v177, 1
    %v800 = vsel %vm791, %v797, %v799
    %v801 = vrot.slane %v178, 1
    %v802 = vsel %vm791, %v799, %v801
    %v803 = vrot.slane %v179, 1
    %v804 = vsel %vm791, %v801, %v803
    %v805 = vrot.slane %v180, 1
    %v806 = vsel %vm791, %v803, %v805
    %v807 = vrot.slane %v181, 1
    %v808 = vsel %vm791, %v805, %v807
    %v809 = vrot.slane %v182, 1
    %v810 = vsel %vm791, %v807, %v809
    %v811 = vrot.slane %v183, 1
    %v812 = vsel %vm791, %v809, %v811
    %v813 = vrot.slane %v184, 1
    %v814 = vsel %vm791, %v811, %v813
    %v815 = vrot.slane %v185, 1
    %v816 = vsel %vm791, %v813, %v815
    %v817 = vrot.slane %v186, 1
    %v818 = vsel %vm791, %v815, %v817
    %v819 = vrot.slane %v187, 1
    %v820 = vsel %vm791, %v817, %v819
    %v821 = vrot.slane %v188, 1
    %v822 = vsel %vm791, %v819, %v821
    %v855 = vunpack.c.l.b16 %v772
    %v856 = vunpack.c.l.b16 %v773
    %v857 = vunpack.c.l.b16 %v774
    %v858 = vunpack.c.l.b16 %v775
    %v859 = vunpack.c.l.b16 %v776
    %v860 = vunpack.c.l.b16 %v777
    %v861 = vunpack.c.l.b16 %v778
    %v862 = vunpack.c.l.b16 %v779
    %v863 = vunpack.c.l.b16 %v780
    %v864 = vunpack.c.l.b16 %v781
    %v865 = vunpack.c.l.b16 %v782
    %v866 = vunpack.c.l.b16 %v783
    %v867 = vunpack.c.l.b16 %v784
    %v868 = vunpack.c.l.b16 %v785
    %v869 = vunpack.c.l.b16 %v786
    %v870 = vunpack.c.l.b16 %v787
    %v871 = vpack.c.b16 %v856, %v855
    %v872 = vpack.c.b16 %v858, %v857
    %v873 = vpack.c.b16 %v860, %v859
    %v874 = vpack.c.b16 %v862, %v861
    %v875 = vpack.c.b16 %v864, %v863
    %v876 = vpack.c.b16 %v866, %v865
    %v877 = vpack.c.b16 %v868, %v867
    %v878 = vpack.c.b16 %v870, %v869
    %887 = vmatprep.subr.bf16.mxu0 0
    %888 = vmatpush1.bf16.msra.mxu0 %v871
    %889 = vmatprep.subr.bf16.mxu0 0
    %890 = vmatpush1.bf16.msra.mxu0 %v872
    %891 = vmatprep.subr.bf16.mxu0 0
    %892 = vmatpush1.bf16.msra.mxu0 %v873
    %893 = vmatprep.subr.bf16.mxu0 0
    %894 = vmatpush1.bf16.msra.mxu0 %v874
    %895 = vmatprep.subr.bf16.mxu0 0
    %896 = vmatpush1.bf16.msra.mxu0 %v875
    %897 = vmatprep.subr.bf16.mxu0 0
    %898 = vmatpush1.bf16.msra.mxu0 %v876
    %899 = vmatprep.subr.bf16.mxu0 0
    %900 = vmatpush1.bf16.msra.mxu0 %v877
    %901 = vmatprep.subr.bf16.mxu0 0
    %902 = vmatpush1.bf16.msra.mxu0 %v878
    %903 = vmatprep.subr.bf16.mxu0 0
    %904 = vmatpush1.bf16.msra.mxu0 0
    %905 = vmatprep.subr.bf16.mxu0 0
    %906 = vmatpush1.bf16.msra.mxu0 0
    %907 = vmatprep.subr.bf16.mxu0 0
    %908 = vmatpush1.bf16.msra.mxu0 0
    %909 = vmatprep.subr.bf16.mxu0 0
    %910 = vmatpush1.bf16.msra.mxu0 0
    %911 = vmatprep.subr.bf16.mxu0 0
    %912 = vmatpush1.bf16.msra.mxu0 0
    %913 = vmatprep.subr.bf16.mxu0 0
    %914 = vmatpush1.bf16.msra.mxu0 0
    %915 = vmatprep.subr.bf16.mxu0 0
    %916 = vmatpush1.bf16.msra.mxu0 0
    %917 = vmatprep.subr.bf16.mxu0 0
    %918 = vmatpush1.bf16.msra.mxu0 0
    %919 = vmatprep.mubr.bf16.mxu0 0
    %920 = vmatmul.mubr.bf16.gmra.mrb[0].mxu0 %v794
    %v921 = vpop.f32.mrb[0].mxu0
    %v922 = vadd.f32 0.0, %v921
    %v923 = vpop.f32.mrb[0].mxu0
    %v924 = vpop.f32.mrb[0].mxu0
    %v925 = vadd.f32 0.0, %v924
    %v926 = vpop.f32.mrb[0].mxu0
    %927 = vmatprep.mubr.bf16.mxu0 0
    %928 = vmatmul.mubr.bf16.gmra.mrb[0].mxu0 %v796
    %v929 = vpop.f32.mrb[0].mxu0
    %v930 = vadd.f32 0.0, %v929
    %v931 = vpop.f32.mrb[0].mxu0
    %v932 = vpop.f32.mrb[0].mxu0
    %v933 = vadd.f32 0.0, %v932
    %v934 = vpop.f32.mrb[0].mxu0
    %935 = vmatprep.mubr.bf16.mxu0 0
    %936 = vmatmul.mubr.bf16.gmra.mrb[0].mxu0 %v798
    %v937 = vpop.f32.mrb[0].mxu0
    %v938 = vadd.f32 0.0, %v937
    %v939 = vpop.f32.mrb[0].mxu0
    %v940 = vpop.f32.mrb[0].mxu0
    %v941 = vadd.f32 0.0, %v940
    %v942 = vpop.f32.mrb[0].mxu0
    %943 = vmatprep.mubr.bf16.mxu0 0
    %944 = vmatmul.mubr.bf16.gmra.mrb[0].mxu0 %v800
    %v945 = vpop.f32.mrb[0].mxu0
    %v946 = vadd.f32 0.0, %v945
    %v947 = vpop.f32.mrb[0].mxu0
    %v948 = vpop.f32.mrb[0].mxu0
    %v949 = vadd.f32 0.0, %v948
    %v950 = vpop.f32.mrb[0].mxu0
    %951 = vmatprep.mubr.bf16.mxu0 0
    %952 = vmatmul.mubr.bf16.gmra.mrb[0].mxu0 %v802
    %v953 = vpop.f32.mrb[0].mxu0
    %v954 = vadd.f32 0.0, %v953
    %v955 = vpop.f32.mrb[0].mxu0
    %v956 = vpop.f32.mrb[0].mxu0
    %v957 = vadd.f32 0.0, %v956
    %v958 = vpop.f32.mrb[0].mxu0
    %959 = vmatprep.mubr.bf16.mxu0 0
    %960 = vmatmul.mubr.bf16.gmra.mrb[0].mxu0 %v804
    %v961 = vpop.f32.mrb[0].mxu0
    %v962 = vadd.f32 0.0, %v961
    %v963 = vpop.f32.mrb[0].mxu0
    %v964 = vpop.f32.mrb[0].mxu0
    %v965 = vadd.f32 0.0, %v964
    %v966 = vpop.f32.mrb[0].mxu0
    %967 = vmatprep.mubr.bf16.mxu0 0
    %968 = vmatmul.mubr.bf16.gmra.mrb[0].mxu0 %v806
    %v969 = vpop.f32.mrb[0].mxu0
    %v970 = vadd.f32 0.0, %v969
    %v971 = vpop.f32.mrb[0].mxu0
    %v972 = vpop.f32.mrb[0].mxu0
    %v973 = vadd.f32 0.0, %v972
    %v974 = vpop.f32.mrb[0].mxu0
    %975 = vmatprep.mubr.bf16.mxu0 0
    %976 = vmatmul.mubr.bf16.gmra.mrb[0].mxu0 %v808
    %v977 = vpop.f32.mrb[0].mxu0
    %v978 = vadd.f32 0.0, %v977
    %v979 = vpop.f32.mrb[0].mxu0
    %v980 = vpop.f32.mrb[0].mxu0
    %v981 = vadd.f32 0.0, %v980
    %v982 = vpop.f32.mrb[0].mxu0
    %983 = vmatprep.mubr.bf16.mxu0 0
    %984 = vmatmul.mubr.bf16.gmra.mrb[0].mxu0 %v810
    %v985 = vpop.f32.mrb[0].mxu0
    %v986 = vadd.f32 0.0, %v985
    %v987 = vpop.f32.mrb[0].mxu0
    %v988 = vpop.f32.mrb[0].mxu0
    %v989 = vadd.f32 0.0, %v988
    %v990 = vpop.f32.mrb[0].mxu0
    %991 = vmatprep.mubr.bf16.mxu0 0
    %992 = vmatmul.mubr.bf16.gmra.mrb[0].mxu0 %v812
    %v993 = vpop.f32.mrb[0].mxu0
    %v994 = vadd.f32 0.0, %v993
    %v995 = vpop.f32.mrb[0].mxu0
    %v996 = vpop.f32.mrb[0].mxu0
    %v997 = vadd.f32 0.0, %v996
    %v998 = vpop.f32.mrb[0].mxu0
    %999 = vmatprep.mubr.bf16.mxu0 0
    %1000 = vmatmul.mubr.bf16.gmra.mrb[0].mxu0 %v814
    %v1001 = vpop.f32.mrb[0].mxu0
    %v1002 = vadd.f32 0.0, %v1001
    %v1003 = vpop.f32.mrb[0].mxu0
    %v1004 = vpop.f32.mrb[0].mxu0
    %v1005 = vadd.f32 0.0, %v1004
    %v1006 = vpop.f32.mrb[0].mxu0
    %1007 = vmatprep.mubr.bf16.mxu0 0
    %1008 = vmatmul.mubr.bf16.gmra.mrb[0].mxu0 %v816
    %v1009 = vpop.f32.mrb[0].mxu0
    %v1010 = vadd.f32 0.0, %v1009
    %v1011 = vpop.f32.mrb[0].mxu0
    %v1012 = vpop.f32.mrb[0].mxu0
    %v1013 = vadd.f32 0.0, %v1012
    %v1014 = vpop.f32.mrb[0].mxu0
    %1015 = vmatprep.mubr.bf16.mxu0 0
    %1016 = vmatmul.mubr.bf16.gmra.mrb[0].mxu0 %v818
    %v1017 = vpop.f32.mrb[0].mxu0
    %v1018 = vadd.f32 0.0, %v1017
    %v1019 = vpop.f32.mrb[0].mxu0
    %v1020 = vpop.f32.mrb[0].mxu0
    %v1021 = vadd.f32 0.0, %v1020
    %v1022 = vpop.f32.mrb[0].mxu0
    %1023 = vmatprep.mubr.bf16.mxu0 0
    %1024 = vmatmul.mubr.bf16.gmra.mrb[0].mxu0 %v820
    %v1025 = vpop.f32.mrb[0].mxu0
    %v1026 = vadd.f32 0.0, %v1025
    %v1027 = vpop.f32.mrb[0].mxu0
    %v1028 = vpop.f32.mrb[0].mxu0
    %v1029 = vadd.f32 0.0, %v1028
    %v1030 = vpop.f32.mrb[0].mxu0
    %1031 = vmatprep.mubr.bf16.mxu0 0
    %1032 = vmatmul.mubr.bf16.gmra.mrb[0].mxu0 %v822
    %v1033 = vpop.f32.mrb[0].mxu0
    %v1034 = vadd.f32 0.0, %v1033
    %v1035 = vpop.f32.mrb[0].mxu0
    %v1036 = vpop.f32.mrb[0].mxu0
    %v1037 = vadd.f32 0.0, %v1036
    %v1038 = vpop.f32.mrb[0].mxu0
    %1039 = vmatprep.mubr.bf16.mxu0 0
    %1040 = vmatmul.mubr.bf16.gmra.mrb[0].mxu0 %v821
    %v1041 = vpop.f32.mrb[0].mxu0
    %v1042 = vadd.f32 0.0, %v1041
    %v1043 = vpop.f32.mrb[0].mxu0
    %v1044 = vpop.f32.mrb[0].mxu0
    %v1045 = vadd.f32 0.0, %v1044
    %v1046 = vpop.f32.mrb[0].mxu0
    %1047 = vdwg.mxu0
    %v1048 = vadd.f32 %v644, %v922
    %v1049 = vadd.f32 %v647, %v925
    %v1050 = vadd.f32 %v652, %v930
    %v1051 = vadd.f32 %v655, %v933
    %v1052 = vadd.f32 %v660, %v938
    %v1053 = vadd.f32 %v663, %v941
    %v1054 = vadd.f32 %v668, %v946
    %v1055 = vadd.f32 %v671, %v949
    %v1056 = vadd.f32 %v676, %v954
    %v1057 = vadd.f32 %v679, %v957
    %v1058 = vadd.f32 %v684, %v962
    %v1059 = vadd.f32 %v687, %v965
    %v1060 = vadd.f32 %v692, %v970
    %v1061 = vadd.f32 %v695, %v973
    %v1062 = vadd.f32 %v700, %v978
    %v1063 = vadd.f32 %v703, %v981
    %v1064 = vadd.f32 %v708, %v986
    %v1065 = vadd.f32 %v711, %v989
    %v1066 = vadd.f32 %v716, %v994
    %v1067 = vadd.f32 %v719, %v997
    %v1068 = vadd.f32 %v724, %v1002
    %v1069 = vadd.f32 %v727, %v1005
    %v1070 = vadd.f32 %v732, %v1010
    %v1071 = vadd.f32 %v735, %v1013
    %v1072 = vadd.f32 %v740, %v1018
    %v1073 = vadd.f32 %v743, %v1021
    %v1074 = vadd.f32 %v748, %v1026
    %v1075 = vadd.f32 %v751, %v1029
    %v1076 = vadd.f32 %v756, %v1034
    %v1077 = vadd.f32 %v759, %v1037
    %v1078 = vadd.f32 %v764, %v1042
    %v1079 = vadd.f32 %v767, %v1045
    %v1080 = vld [vmem:[%s0 + $0x7c] sm:$0xf]
    %s1081 = scalar_lea.vmem [#allocation3], 192
    %v1082 = vld [vmem:[%s1081] sm:$0xf]
    %v1083 = vld [vmem:[%s1081 + $0x4] sm:$0xf]
    %v1084 = vld [vmem:[%s1081 + $0x8] sm:$0xf]
    %v1085 = vld [vmem:[%s1081 + $0xc] sm:$0xf]
    %v1086 = vld [vmem:[%s1081 + $0x10] sm:$0xf]
    %v1087 = vld [vmem:[%s1081 + $0x14] sm:$0xf]
    %v1088 = vld [vmem:[%s1081 + $0x18] sm:$0xf]
    %v1089 = vld [vmem:[%s1081 + $0x1c] sm:$0xf]
    %v1090 = vld [vmem:[%s1081 + $0x20] sm:$0xf]
    %v1091 = vld [vmem:[%s1081 + $0x24] sm:$0xf]
    %v1092 = vld [vmem:[%s1081 + $0x28] sm:$0xf]
    %v1093 = vld [vmem:[%s1081 + $0x2c] sm:$0xf]
    %v1094 = vld [vmem:[%s1081 + $0x30] sm:$0xf]
    %v1095 = vld [vmem:[%s1081 + $0x34] sm:$0xf]
    %v1096 = vld [vmem:[%s1081 + $0x38] sm:$0xf]
    %v1097 = vld [vmem:[%s1081 + $0x3c] sm:$0xf]
    %v1099 = vunpack.c.l.b16 %v1080
    %v1100 = vpack.c.b16 %v1099, %v171
    %vm1101 = vsmask.f32 6400
    %v1103 = vshrl.u32 %v790, 16
    %v1105 = vrot.slane %v1103, 1
    %v1106 = vshll.u32 %v790, 16
    %v1108 = vrot.slane %v1106, 2
    %v1109 = vor.u32 %v1105, %v1108
    %v1110 = vrot.slane %v202, 1
    %v1111 = vrot.slane %v198, 2
    %v1112 = vor.u32 %v1110, %v1111
    %v1113 = vsel %vm1101, %v1109, %v1112
    %v1114 = vrot.slane %v210, 1
    %v1115 = vrot.slane %v206, 2
    %v1116 = vor.u32 %v1114, %v1115
    %v1117 = vsel %vm1101, %v1112, %v1116
    %v1118 = vrot.slane %v218, 1
    %v1119 = vrot.slane %v214, 2
    %v1120 = vor.u32 %v1118, %v1119
    %v1121 = vsel %vm1101, %v1116, %v1120
    %v1122 = vrot.slane %v226, 1
    %v1123 = vrot.slane %v222, 2
    %v1124 = vor.u32 %v1122, %v1123
    %v1125 = vsel %vm1101, %v1120, %v1124
    %v1126 = vrot.slane %v234, 1
    %v1127 = vrot.slane %v230, 2
    %v1128 = vor.u32 %v1126, %v1127
    %v1129 = vsel %vm1101, %v1124, %v1128
    %v1130 = vrot.slane %v242, 1
    %v1131 = vrot.slane %v238, 2
    %v1132 = vor.u32 %v1130, %v1131
    %v1133 = vsel %vm1101, %v1128, %v1132
    %v1134 = vrot.slane %v250, 1
    %v1135 = vrot.slane %v246, 2
    %v1136 = vor.u32 %v1134, %v1135
    %v1137 = vsel %vm1101, %v1132, %v1136
    %v1138 = vrot.slane %v258, 1
    %v1139 = vrot.slane %v254, 2
    %v1140 = vor.u32 %v1138, %v1139
    %v1141 = vsel %vm1101, %v1136, %v1140
    %v1142 = vrot.slane %v266, 1
    %v1143 = vrot.slane %v262, 2
    %v1144 = vor.u32 %v1142, %v1143
    %v1145 = vsel %vm1101, %v1140, %v1144
    %v1146 = vrot.slane %v274, 1
    %v1147 = vrot.slane %v270, 2
    %v1148 = vor.u32 %v1146, %v1147
    %v1149 = vsel %vm1101, %v1144, %v1148
    %v1150 = vrot.slane %v282, 1
    %v1151 = vrot.slane %v278, 2
    %v1152 = vor.u32 %v1150, %v1151
    %v1153 = vsel %vm1101, %v1148, %v1152
    %v1154 = vrot.slane %v290, 1
    %v1155 = vrot.slane %v286, 2
    %v1156 = vor.u32 %v1154, %v1155
    %v1157 = vsel %vm1101, %v1152, %v1156
    %v1158 = vrot.slane %v298, 1
    %v1159 = vrot.slane %v294, 2
    %v1160 = vor.u32 %v1158, %v1159
    %v1161 = vsel %vm1101, %v1156, %v1160
    %v1162 = vrot.slane %v306, 1
    %v1163 = vrot.slane %v302, 2
    %v1164 = vor.u32 %v1162, %v1163
    %v1165 = vsel %vm1101, %v1160, %v1164
    %v1167 = vshrl.u32 %v1100, 16
    %v1169 = vrot.slane %v1167, 1
    %v1170 = vshll.u32 %v1100, 16
    %v1172 = vrot.slane %v1170, 2
    %v1173 = vor.u32 %v1169, %v1172
    %v1174 = vsel %vm1101, %v1164, %v1173
    %v1207 = vunpack.c.l.b16 %v1082
    %v1208 = vunpack.c.l.b16 %v1083
    %v1209 = vunpack.c.l.b16 %v1084
    %v1210 = vunpack.c.l.b16 %v1085
    %v1211 = vunpack.c.l.b16 %v1086
    %v1212 = vunpack.c.l.b16 %v1087
    %v1213 = vunpack.c.l.b16 %v1088
    %v1214 = vunpack.c.l.b16 %v1089
    %v1215 = vunpack.c.l.b16 %v1090
    %v1216 = vunpack.c.l.b16 %v1091
    %v1217 = vunpack.c.l.b16 %v1092
    %v1218 = vunpack.c.l.b16 %v1093
    %v1219 = vunpack.c.l.b16 %v1094
    %v1220 = vunpack.c.l.b16 %v1095
    %v1221 = vunpack.c.l.b16 %v1096
    %v1222 = vunpack.c.l.b16 %v1097
    %v1223 = vpack.c.b16 %v1208, %v1207
    %v1224 = vpack.c.b16 %v1210, %v1209
    %v1225 = vpack.c.b16 %v1212, %v1211
    %v1226 = vpack.c.b16 %v1214, %v1213
    %v1227 = vpack.c.b16 %v1216, %v1215
    %v1228 = vpack.c.b16 %v1218, %v1217
    %v1229 = vpack.c.b16 %v1220, %v1219
    %v1230 = vpack.c.b16 %v1222, %v1221
    %1239 = vmatprep.subr.bf16.mxu0 0
    %1240 = vmatpush1.bf16.msra.mxu0 %v1223
    %1241 = vmatprep.subr.bf16.mxu0 0
    %1242 = vmatpush1.bf16.msra.mxu0 %v1224
    %1243 = vmatprep.subr.bf16.mxu0 0
    %1244 = vmatpush1.bf16.msra.mxu0 %v1225
    %1245 = vmatprep.subr.bf16.mxu0 0
    %1246 = vmatpush1.bf16.msra.mxu0 %v1226
    %1247 = vmatprep.subr.bf16.mxu0 0
    %1248 = vmatpush1.bf16.msra.mxu0 %v1227
    %1249 = vmatprep.subr.bf16.mxu0 0
    %1250 = vmatpush1.bf16.msra.mxu0 %v1228
    %1251 = vmatprep.subr.bf16.mxu0 0
    %1252 = vmatpush1.bf16.msra.mxu0 %v1229
    %1253 = vmatprep.subr.bf16.mxu0 0
    %1254 = vmatpush1.bf16.msra.mxu0 %v1230
    %1255 = vmatprep.subr.bf16.mxu0 0
    %1256 = vmatpush1.bf16.msra.mxu0 0
    %1257 = vmatprep.subr.bf16.mxu0 0
    %1258 = vmatpush1.bf16.msra.mxu0 0
    %1259 = vmatprep.subr.bf16.mxu0 0
    %1260 = vmatpush1.bf16.msra.mxu0 0
    %1261 = vmatprep.subr.bf16.mxu0 0
    %1262 = vmatpush1.bf16.msra.mxu0 0
    %1263 = vmatprep.subr.bf16.mxu0 0
    %1264 = vmatpush1.bf16.msra.mxu0 0
    %1265 = vmatprep.subr.bf16.mxu0 0
    %1266 = vmatpush1.bf16.msra.mxu0 0
    %1267 = vmatprep.subr.bf16.mxu0 0
    %1268 = vmatpush1.bf16.msra.mxu0 0
    %1269 = vmatprep.subr.bf16.mxu0 0
    %1270 = vmatpush1.bf16.msra.mxu0 0
    %1271 = vmatprep.mubr.bf16.mxu0 0
    %1272 = vmatmul.mubr.bf16.gmra.mrb[0].mxu0 %v1113
    %v1273 = vpop.f32.mrb[0].mxu0
    %v1274 = vadd.f32 0.0, %v1273
    %v1275 = vpop.f32.mrb[0].mxu0
    %v1276 = vpop.f32.mrb[0].mxu0
    %v1277 = vadd.f32 0.0, %v1276
    %v1278 = vpop.f32.mrb[0].mxu0
    %1279 = vmatprep.mubr.bf16.mxu0 0
    %1280 = vmatmul.mubr.bf16.gmra.mrb[0].mxu0 %v1117
    %v1281 = vpop.f32.mrb[0].mxu0
    %v1282 = vadd.f32 0.0, %v1281
    %v1283 = vpop.f32.mrb[0].mxu0
    %v1284 = vpop.f32.mrb[0].mxu0
    %v1285 = vadd.f32 0.0, %v1284
    %v1286 = vpop.f32.mrb[0].mxu0
    %1287 = vmatprep.mubr.bf16.mxu0 0
    %1288 = vmatmul.mubr.bf16.gmra.mrb[0].mxu0 %v1121
    %v1289 = vpop.f32.mrb[0].mxu0
    %v1290 = vadd.f32 0.0, %v1289
    %v1291 = vpop.f32.mrb[0].mxu0
    %v1292 = vpop.f32.mrb[0].mxu0
    %v1293 = vadd.f32 0.0, %v1292
    %v1294 = vpop.f32.mrb[0].mxu0
    %1295 = vmatprep.mubr.bf16.mxu0 0
    %1296 = vmatmul.mubr.bf16.gmra.mrb[0].mxu0 %v1125
    %v1297 = vpop.f32.mrb[0].mxu0
    %v1298 = vadd.f32 0.0, %v1297
    %v1299 = vpop.f32.mrb[0].mxu0
    %v1300 = vpop.f32.mrb[0].mxu0
    %v1301 = vadd.f32 0.0, %v1300
    %v1302 = vpop.f32.mrb[0].mxu0
    %1303 = vmatprep.mubr.bf16.mxu0 0
    %1304 = vmatmul.mubr.bf16.gmra.mrb[0].mxu0 %v1129
    %v1305 = vpop.f32.mrb[0].mxu0
    %v1306 = vadd.f32 0.0, %v1305
    %v1307 = vpop.f32.mrb[0].mxu0
    %v1308 = vpop.f32.mrb[0].mxu0
    %v1309 = vadd.f32 0.0, %v1308
    %v1310 = vpop.f32.mrb[0].mxu0
    %1311 = vmatprep.mubr.bf16.mxu0 0
    %1312 = vmatmul.mubr.bf16.gmra.mrb[0].mxu0 %v1133
    %v1313 = vpop.f32.mrb[0].mxu0
    %v1314 = vadd.f32 0.0, %v1313
    %v1315 = vpop.f32.mrb[0].mxu0
    %v1316 = vpop.f32.mrb[0].mxu0
    %v1317 = vadd.f32 0.0, %v1316
    %v1318 = vpop.f32.mrb[0].mxu0
    %1319 = vmatprep.mubr.bf16.mxu0 0
    %1320 = vmatmul.mubr.bf16.gmra.mrb[0].mxu0 %v1137
    %v1321 = vpop.f32.mrb[0].mxu0
    %v1322 = vadd.f32 0.0, %v1321
    %v1323 = vpop.f32.mrb[0].mxu0
    %v1324 = vpop.f32.mrb[0].mxu0
    %v1325 = vadd.f32 0.0, %v1324
    %v1326 = vpop.f32.mrb[0].mxu0
    %1327 = vmatprep.mubr.bf16.mxu0 0
    %1328 = vmatmul.mubr.bf16.gmra.mrb[0].mxu0 %v1141
    %v1329 = vpop.f32.mrb[0].mxu0
    %v1330 = vadd.f32 0.0, %v1329
    %v1331 = vpop.f32.mrb[0].mxu0
    %v1332 = vpop.f32.mrb[0].mxu0
    %v1333 = vadd.f32 0.0, %v1332
    %v1334 = vpop.f32.mrb[0].mxu0
    %1335 = vmatprep.mubr.bf16.mxu0 0
    %1336 = vmatmul.mubr.bf16.gmra.mrb[0].mxu0 %v1145
    %v1337 = vpop.f32.mrb[0].mxu0
    %v1338 = vadd.f32 0.0, %v1337
    %v1339 = vpop.f32.mrb[0].mxu0
    %v1340 = vpop.f32.mrb[0].mxu0
    %v1341 = vadd.f32 0.0, %v1340
    %v1342 = vpop.f32.mrb[0].mxu0
    %1343 = vmatprep.mubr.bf16.mxu0 0
    %1344 = vmatmul.mubr.bf16.gmra.mrb[0].mxu0 %v1149
    %v1345 = vpop.f32.mrb[0].mxu0
    %v1346 = vadd.f32 0.0, %v1345
    %v1347 = vpop.f32.mrb[0].mxu0
    %v1348 = vpop.f32.mrb[0].mxu0
    %v1349 = vadd.f32 0.0, %v1348
    %v1350 = vpop.f32.mrb[0].mxu0
    %1351 = vmatprep.mubr.bf16.mxu0 0
    %1352 = vmatmul.mubr.bf16.gmra.mrb[0].mxu0 %v1153
    %v1353 = vpop.f32.mrb[0].mxu0
    %v1354 = vadd.f32 0.0, %v1353
    %v1355 = vpop.f32.mrb[0].mxu0
    %v1356 = vpop.f32.mrb[0].mxu0
    %v1357 = vadd.f32 0.0, %v1356
    %v1358 = vpop.f32.mrb[0].mxu0
    %1359 = vmatprep.mubr.bf16.mxu0 0
    %1360 = vmatmul.mubr.bf16.gmra.mrb[0].mxu0 %v1157
    %v1361 = vpop.f32.mrb[0].mxu0
    %v1362 = vadd.f32 0.0, %v1361
    %v1363 = vpop.f32.mrb[0].mxu0
    %v1364 = vpop.f32.mrb[0].mxu0
    %v1365 = vadd.f32 0.0, %v1364
    %v1366 = vpop.f32.mrb[0].mxu0
    %1367 = vmatprep.mubr.bf16.mxu0 0
    %1368 = vmatmul.mubr.bf16.gmra.mrb[0].mxu0 %v1161
    %v1369 = vpop.f32.mrb[0].mxu0
    %v1370 = vadd.f32 0.0, %v1369
    %v1371 = vpop.f32.mrb[0].mxu0
    %v1372 = vpop.f32.mrb[0].mxu0
    %v1373 = vadd.f32 0.0, %v1372
    %v1374 = vpop.f32.mrb[0].mxu0
    %1375 = vmatprep.mubr.bf16.mxu0 0
    %1376 = vmatmul.mubr.bf16.gmra.mrb[0].mxu0 %v1165
    %v1377 = vpop.f32.mrb[0].mxu0
    %v1378 = vadd.f32 0.0, %v1377
    %v1379 = vpop.f32.mrb[0].mxu0
    %v1380 = vpop.f32.mrb[0].mxu0
    %v1381 = vadd.f32 0.0, %v1380
    %v1382 = vpop.f32.mrb[0].mxu0
    %1383 = vmatprep.mubr.bf16.mxu0 0
    %1384 = vmatmul.mubr.bf16.gmra.mrb[0].mxu0 %v1174
    %v1385 = vpop.f32.mrb[0].mxu0
    %v1386 = vadd.f32 0.0, %v1385
    %v1387 = vpop.f32.mrb[0].mxu0
    %v1388 = vpop.f32.mrb[0].mxu0
    %v1389 = vadd.f32 0.0, %v1388
    %v1390 = vpop.f32.mrb[0].mxu0
    %1391 = vmatprep.mubr.bf16.mxu0 0
    %1392 = vmatmul.mubr.bf16.gmra.mrb[0].mxu0 %v1173
    %v1393 = vpop.f32.mrb[0].mxu0
    %v1394 = vadd.f32 0.0, %v1393
    %v1395 = vpop.f32.mrb[0].mxu0
    %v1396 = vpop.f32.mrb[0].mxu0
    %v1397 = vadd.f32 0.0, %v1396
    %v1398 = vpop.f32.mrb[0].mxu0
    %1399 = vdwg.mxu0
    %v1400 = vadd.f32 %v1048, %v1274
    %v1401 = vadd.f32 %v1049, %v1277
    %v1402 = vadd.f32 %v1050, %v1282
    %v1403 = vadd.f32 %v1051, %v1285
    %v1404 = vadd.f32 %v1052, %v1290
    %v1405 = vadd.f32 %v1053, %v1293
    %v1406 = vadd.f32 %v1054, %v1298
    %v1407 = vadd.f32 %v1055, %v1301
    %v1408 = vadd.f32 %v1056, %v1306
    %v1409 = vadd.f32 %v1057, %v1309
    %v1410 = vadd.f32 %v1058, %v1314
    %v1411 = vadd.f32 %v1059, %v1317
    %v1412 = vadd.f32 %v1060, %v1322
    %v1413 = vadd.f32 %v1061, %v1325
    %v1414 = vadd.f32 %v1062, %v1330
    %v1415 = vadd.f32 %v1063, %v1333
    %v1416 = vadd.f32 %v1064, %v1338
    %v1417 = vadd.f32 %v1065, %v1341
    %v1418 = vadd.f32 %v1066, %v1346
    %v1419 = vadd.f32 %v1067, %v1349
    %v1420 = vadd.f32 %v1068, %v1354
    %v1421 = vadd.f32 %v1069, %v1357
    %v1422 = vadd.f32 %v1070, %v1362
    %v1423 = vadd.f32 %v1071, %v1365
    %v1424 = vadd.f32 %v1072, %v1370
    %v1425 = vadd.f32 %v1073, %v1373
    %v1426 = vadd.f32 %v1074, %v1378
    %v1427 = vadd.f32 %v1075, %v1381
    %v1428 = vadd.f32 %v1076, %v1386
    %v1429 = vadd.f32 %v1077, %v1389
    %v1430 = vadd.f32 %v1078, %v1394
    %v1431 = vadd.f32 %v1079, %v1397
    %v1432 = vld [vmem:[%s0] sm:$0xc]
    %s1433 = scalar_lea.vmem [#allocation3], 256
    %v1434 = vld [vmem:[%s1433] sm:$0xf]
    %v1435 = vld [vmem:[%s1433 + $0x4] sm:$0xf]
    %v1436 = vld [vmem:[%s1433 + $0x8] sm:$0xf]
    %v1437 = vld [vmem:[%s1433 + $0xc] sm:$0xf]
    %v1438 = vld [vmem:[%s1433 + $0x10] sm:$0xf]
    %v1439 = vld [vmem:[%s1433 + $0x14] sm:$0xf]
    %v1440 = vld [vmem:[%s1433 + $0x18] sm:$0xf]
    %v1441 = vld [vmem:[%s1433 + $0x1c] sm:$0xf]
    %v1442 = vld [vmem:[%s1433 + $0x20] sm:$0xf]
    %v1443 = vld [vmem:[%s1433 + $0x24] sm:$0xf]
    %v1444 = vld [vmem:[%s1433 + $0x28] sm:$0xf]
    %v1445 = vld [vmem:[%s1433 + $0x2c] sm:$0xf]
    %v1446 = vld [vmem:[%s1433 + $0x30] sm:$0xf]
    %v1447 = vld [vmem:[%s1433 + $0x34] sm:$0xf]
    %v1448 = vld [vmem:[%s1433 + $0x38] sm:$0xf]
    %v1449 = vld [vmem:[%s1433 + $0x3c] sm:$0xf]
    %v1451 = vunpack.c.l.b16 %v1432
    %v1452 = vpack.c.b16 %v142, %v1451
    %vm1453 = vcmask 1045504
    %v1454 = vrot.slane %v1452, 2
    %v1455 = vrot.slane %v174, 2
    %v1456 = vsel %vm1453, %v1454, %v1455
    %v1457 = vrot.slane %v175, 2
    %v1458 = vsel %vm1453, %v1455, %v1457
    %v1459 = vrot.slane %v176, 2
    %v1460 = vsel %vm1453, %v1457, %v1459
    %v1461 = vrot.slane %v177, 2
    %v1462 = vsel %vm1453, %v1459, %v1461
    %v1463 = vrot.slane %v178, 2
    %v1464 = vsel %vm1453, %v1461, %v1463
    %v1465 = vrot.slane %v179, 2
    %v1466 = vsel %vm1453, %v1463, %v1465
    %v1467 = vrot.slane %v180, 2
    %v1468 = vsel %vm1453, %v1465, %v1467
    %v1469 = vrot.slane %v181, 2
    %v1470 = vsel %vm1453, %v1467, %v1469
    %v1471 = vrot.slane %v182, 2
    %v1472 = vsel %vm1453, %v1469, %v1471
    %v1473 = vrot.slane %v183, 2
    %v1474 = vsel %vm1453, %v1471, %v1473
    %v1475 = vrot.slane %v184, 2
    %v1476 = vsel %vm1453, %v1473, %v1475
    %v1477 = vrot.slane %v185, 2
    %v1478 = vsel %vm1453, %v1475, %v1477
    %v1479 = vrot.slane %v186, 2
    %v1480 = vsel %vm1453, %v1477, %v1479
    %v1481 = vrot.slane %v187, 2
    %v1482 = vsel %vm1453, %v1479, %v1481
    %v1483 = vrot.slane %v1100, 2
    %v1484 = vsel %vm1453, %v1481, %v1483
    %v1517 = vunpack.c.l.b16 %v1434
    %v1518 = vunpack.c.l.b16 %v1435
    %v1519 = vunpack.c.l.b16 %v1436
    %v1520 = vunpack.c.l.b16 %v1437
    %v1521 = vunpack.c.l.b16 %v1438
    %v1522 = vunpack.c.l.b16 %v1439
    %v1523 = vunpack.c.l.b16 %v1440
    %v1524 = vunpack.c.l.b16 %v1441
    %v1525 = vunpack.c.l.b16 %v1442
    %v1526 = vunpack.c.l.b16 %v1443
    %v1527 = vunpack.c.l.b16 %v1444
    %v1528 = vunpack.c.l.b16 %v1445
    %v1529 = vunpack.c.l.b16 %v1446
    %v1530 = vunpack.c.l.b16 %v1447
    %v1531 = vunpack.c.l.b16 %v1448
    %v1532 = vunpack.c.l.b16 %v1449
    %v1533 = vpack.c.b16 %v1518, %v1517
    %v1534 = vpack.c.b16 %v1520, %v1519
    %v1535 = vpack.c.b16 %v1522, %v1521
    %v1536 = vpack.c.b16 %v1524, %v1523
    %v1537 = vpack.c.b16 %v1526, %v1525
    %v1538 = vpack.c.b16 %v1528, %v1527
    %v1539 = vpack.c.b16 %v1530, %v1529
    %v1540 = vpack.c.b16 %v1532, %v1531
    %1549 = vmatprep.subr.bf16.mxu0 0
    %1550 = vmatpush1.bf16.msra.mxu0 %v1533
    %1551 = vmatprep.subr.bf16.mxu0 0
    %1552 = vmatpush1.bf16.msra.mxu0 %v1534
    %1553 = vmatprep.subr.bf16.mxu0 0
    %1554 = vmatpush1.bf16.msra.mxu0 %v1535
    %1555 = vmatprep.subr.bf16.mxu0 0
    %1556 = vmatpush1.bf16.msra.mxu0 %v1536
    %1557 = vmatprep.subr.bf16.mxu0 0
    %1558 = vmatpush1.bf16.msra.mxu0 %v1537
    %1559 = vmatprep.subr.bf16.mxu0 0
    %1560 = vmatpush1.bf16.msra.mxu0 %v1538
    %1561 = vmatprep.subr.bf16.mxu0 0
    %1562 = vmatpush1.bf16.msra.mxu0 %v1539
    %1563 = vmatprep.subr.bf16.mxu0 0
    %1564 = vmatpush1.bf16.msra.mxu0 %v1540
    %1565 = vmatprep.subr.bf16.mxu0 0
    %1566 = vmatpush1.bf16.msra.mxu0 0
    %1567 = vmatprep.subr.bf16.mxu0 0
    %1568 = vmatpush1.bf16.msra.mxu0 0
    %1569 = vmatprep.subr.bf16.mxu0 0
    %1570 = vmatpush1.bf16.msra.mxu0 0
    %1571 = vmatprep.subr.bf16.mxu0 0
    %1572 = vmatpush1.bf16.msra.mxu0 0
    %1573 = vmatprep.subr.bf16.mxu0 0
    %1574 = vmatpush1.bf16.msra.mxu0 0
    %1575 = vmatprep.subr.bf16.mxu0 0
    %1576 = vmatpush1.bf16.msra.mxu0 0
    %1577 = vmatprep.subr.bf16.mxu0 0
    %1578 = vmatpush1.bf16.msra.mxu0 0
    %1579 = vmatprep.subr.bf16.mxu0 0
    %1580 = vmatpush1.bf16.msra.mxu0 0
    %1581 = vmatprep.mubr.bf16.mxu0 0
    %1582 = vmatmul.mubr.bf16.gmra.mrb[0].mxu0 %v1456
    %v1583 = vpop.f32.mrb[0].mxu0
    %v1584 = vadd.f32 0.0, %v1583
    %v1585 = vpop.f32.mrb[0].mxu0
    %v1586 = vpop.f32.mrb[0].mxu0
    %v1587 = vadd.f32 0.0, %v1586
    %v1588 = vpop.f32.mrb[0].mxu0
    %1589 = vmatprep.mubr.bf16.mxu0 0
    %1590 = vmatmul.mubr.bf16.gmra.mrb[0].mxu0 %v1458
    %v1591 = vpop.f32.mrb[0].mxu0
    %v1592 = vadd.f32 0.0, %v1591
    %v1593 = vpop.f32.mrb[0].mxu0
    %v1594 = vpop.f32.mrb[0].mxu0
    %v1595 = vadd.f32 0.0, %v1594
    %v1596 = vpop.f32.mrb[0].mxu0
    %1597 = vmatprep.mubr.bf16.mxu0 0
    %1598 = vmatmul.mubr.bf16.gmra.mrb[0].mxu0 %v1460
    %v1599 = vpop.f32.mrb[0].mxu0
    %v1600 = vadd.f32 0.0, %v1599
    %v1601 = vpop.f32.mrb[0].mxu0
    %v1602 = vpop.f32.mrb[0].mxu0
    %v1603 = vadd.f32 0.0, %v1602
    %v1604 = vpop.f32.mrb[0].mxu0
    %1605 = vmatprep.mubr.bf16.mxu0 0
    %1606 = vmatmul.mubr.bf16.gmra.mrb[0].mxu0 %v1462
    %v1607 = vpop.f32.mrb[0].mxu0
    %v1608 = vadd.f32 0.0, %v1607
    %v1609 = vpop.f32.mrb[0].mxu0
    %v1610 = vpop.f32.mrb[0].mxu0
    %v1611 = vadd.f32 0.0, %v1610
    %v1612 = vpop.f32.mrb[0].mxu0
    %1613 = vmatprep.mubr.bf16.mxu0 0
    %1614 = vmatmul.mubr.bf16.gmra.mrb[0].mxu0 %v1464
    %v1615 = vpop.f32.mrb[0].mxu0
    %v1616 = vadd.f32 0.0, %v1615
    %v1617 = vpop.f32.mrb[0].mxu0
    %v1618 = vpop.f32.mrb[0].mxu0
    %v1619 = vadd.f32 0.0, %v1618
    %v1620 = vpop.f32.mrb[0].mxu0
    %1621 = vmatprep.mubr.bf16.mxu0 0
    %1622 = vmatmul.mubr.bf16.gmra.mrb[0].mxu0 %v1466
    %v1623 = vpop.f32.mrb[0].mxu0
    %v1624 = vadd.f32 0.0, %v1623
    %v1625 = vpop.f32.mrb[0].mxu0
    %v1626 = vpop.f32.mrb[0].mxu0
    %v1627 = vadd.f32 0.0, %v1626
    %v1628 = vpop.f32.mrb[0].mxu0
    %1629 = vmatprep.mubr.bf16.mxu0 0
    %1630 = vmatmul.mubr.bf16.gmra.mrb[0].mxu0 %v1468
    %v1631 = vpop.f32.mrb[0].mxu0
    %v1632 = vadd.f32 0.0, %v1631
    %v1633 = vpop.f32.mrb[0].mxu0
    %v1634 = vpop.f32.mrb[0].mxu0
    %v1635 = vadd.f32 0.0, %v1634
    %v1636 = vpop.f32.mrb[0].mxu0
    %1637 = vmatprep.mubr.bf16.mxu0 0
    %1638 = vmatmul.mubr.bf16.gmra.mrb[0].mxu0 %v1470
    %v1639 = vpop.f32.mrb[0].mxu0
    %v1640 = vadd.f32 0.0, %v1639
    %v1641 = vpop.f32.mrb[0].mxu0
    %v1642 = vpop.f32.mrb[0].mxu0
    %v1643 = vadd.f32 0.0, %v1642
    %v1644 = vpop.f32.mrb[0].mxu0
    %1645 = vmatprep.mubr.bf16.mxu0 0
    %1646 = vmatmul.mubr.bf16.gmra.mrb[0].mxu0 %v1472
    %v1647 = vpop.f32.mrb[0].mxu0
    %v1648 = vadd.f32 0.0, %v1647
    %v1649 = vpop.f32.mrb[0].mxu0
    %v1650 = vpop.f32.mrb[0].mxu0
    %v1651 = vadd.f32 0.0, %v1650
    %v1652 = vpop.f32.mrb[0].mxu0
    %1653 = vmatprep.mubr.bf16.mxu0 0
    %1654 = vmatmul.mubr.bf16.gmra.mrb[0].mxu0 %v1474
    %v1655 = vpop.f32.mrb[0].mxu0
    %v1656 = vadd.f32 0.0, %v1655
    %v1657 = vpop.f32.mrb[0].mxu0
    %v1658 = vpop.f32.mrb[0].mxu0
    %v1659 = vadd.f32 0.0, %v1658
    %v1660 = vpop.f32.mrb[0].mxu0
    %1661 = vmatprep.mubr.bf16.mxu0 0
    %1662 = vmatmul.mubr.bf16.gmra.mrb[0].mxu0 %v1476
    %v1663 = vpop.f32.mrb[0].mxu0
    %v1664 = vadd.f32 0.0, %v1663
    %v1665 = vpop.f32.mrb[0].mxu0
    %v1666 = vpop.f32.mrb[0].mxu0
    %v1667 = vadd.f32 0.0, %v1666
    %v1668 = vpop.f32.mrb[0].mxu0
    %1669 = vmatprep.mubr.bf16.mxu0 0
    %1670 = vmatmul.mubr.bf16.gmra.mrb[0].mxu0 %v1478
    %v1671 = vpop.f32.mrb[0].mxu0
    %v1672 = vadd.f32 0.0, %v1671
    %v1673 = vpop.f32.mrb[0].mxu0
    %v1674 = vpop.f32.mrb[0].mxu0
    %v1675 = vadd.f32 0.0, %v1674
    %v1676 = vpop.f32.mrb[0].mxu0
    %1677 = vmatprep.mubr.bf16.mxu0 0
    %1678 = vmatmul.mubr.bf16.gmra.mrb[0].mxu0 %v1480
    %v1679 = vpop.f32.mrb[0].mxu0
    %v1680 = vadd.f32 0.0, %v1679
    %v1681 = vpop.f32.mrb[0].mxu0
    %v1682 = vpop.f32.mrb[0].mxu0
    %v1683 = vadd.f32 0.0, %v1682
    %v1684 = vpop.f32.mrb[0].mxu0
    %1685 = vmatprep.mubr.bf16.mxu0 0
    %1686 = vmatmul.mubr.bf16.gmra.mrb[0].mxu0 %v1482
    %v1687 = vpop.f32.mrb[0].mxu0
    %v1688 = vadd.f32 0.0, %v1687
    %v1689 = vpop.f32.mrb[0].mxu0
    %v1690 = vpop.f32.mrb[0].mxu0
    %v1691 = vadd.f32 0.0, %v1690
    %v1692 = vpop.f32.mrb[0].mxu0
    %1693 = vmatprep.mubr.bf16.mxu0 0
    %1694 = vmatmul.mubr.bf16.gmra.mrb[0].mxu0 %v1484
    %v1695 = vpop.f32.mrb[0].mxu0
    %v1696 = vadd.f32 0.0, %v1695
    %v1697 = vpop.f32.mrb[0].mxu0
    %v1698 = vpop.f32.mrb[0].mxu0
    %v1699 = vadd.f32 0.0, %v1698
    %v1700 = vpop.f32.mrb[0].mxu0
    %1701 = vmatprep.mubr.bf16.mxu0 0
    %1702 = vmatmul.mubr.bf16.gmra.mrb[0].mxu0 %v1483
    %v1703 = vpop.f32.mrb[0].mxu0
    %v1704 = vadd.f32 0.0, %v1703
    %v1705 = vpop.f32.mrb[0].mxu0
    %v1706 = vpop.f32.mrb[0].mxu0
    %v1707 = vadd.f32 0.0, %v1706
    %v1708 = vpop.f32.mrb[0].mxu0
    %1709 = vdwg.mxu0
    %v1710 = vadd.f32 %v1400, %v1584
    %v1711 = vadd.f32 %v1401, %v1587
    %v1712 = vadd.f32 %v1402, %v1592
    %v1713 = vadd.f32 %v1403, %v1595
    %v1714 = vadd.f32 %v1404, %v1600
    %v1715 = vadd.f32 %v1405, %v1603
    %v1716 = vadd.f32 %v1406, %v1608
    %v1717 = vadd.f32 %v1407, %v1611
    %v1718 = vadd.f32 %v1408, %v1616
    %v1719 = vadd.f32 %v1409, %v1619
    %v1720 = vadd.f32 %v1410, %v1624
    %v1721 = vadd.f32 %v1411, %v1627
    %v1722 = vadd.f32 %v1412, %v1632
    %v1723 = vadd.f32 %v1413, %v1635
    %v1724 = vadd.f32 %v1414, %v1640
    %v1725 = vadd.f32 %v1415, %v1643
    %v1726 = vadd.f32 %v1416, %v1648
    %v1727 = vadd.f32 %v1417, %v1651
    %v1728 = vadd.f32 %v1418, %v1656
    %v1729 = vadd.f32 %v1419, %v1659
    %v1730 = vadd.f32 %v1420, %v1664
    %v1731 = vadd.f32 %v1421, %v1667
    %v1732 = vadd.f32 %v1422, %v1672
    %v1733 = vadd.f32 %v1423, %v1675
    %v1734 = vadd.f32 %v1424, %v1680
    %v1735 = vadd.f32 %v1425, %v1683
    %v1736 = vadd.f32 %v1426, %v1688
    %v1737 = vadd.f32 %v1427, %v1691
    %v1738 = vadd.f32 %v1428, %v1696
    %v1739 = vadd.f32 %v1429, %v1699
    %v1740 = vadd.f32 %v1430, %v1704
    %v1741 = vadd.f32 %v1431, %v1707
    %v1742 = vmax.f32 %v1710, 0.0
    %v1743 = vmax.f32 %v1711, 0.0
    %v1744 = vmax.f32 %v1712, 0.0
    %v1745 = vmax.f32 %v1713, 0.0
    %v1746 = vmax.f32 %v1714, 0.0
    %v1747 = vmax.f32 %v1715, 0.0
    %v1748 = vmax.f32 %v1716, 0.0
    %v1749 = vmax.f32 %v1717, 0.0
    %v1750 = vmax.f32 %v1718, 0.0
    %v1751 = vmax.f32 %v1719, 0.0
    %v1752 = vmax.f32 %v1720, 0.0
    %v1753 = vmax.f32 %v1721, 0.0
    %v1754 = vmax.f32 %v1722, 0.0
    %v1755 = vmax.f32 %v1723, 0.0
    %v1756 = vmax.f32 %v1724, 0.0
    %v1757 = vmax.f32 %v1725, 0.0
    %v1758 = vmax.f32 %v1726, 0.0
    %v1759 = vmax.f32 %v1727, 0.0
    %v1760 = vmax.f32 %v1728, 0.0
    %v1761 = vmax.f32 %v1729, 0.0
    %v1762 = vmax.f32 %v1730, 0.0
    %v1763 = vmax.f32 %v1731, 0.0
    %v1764 = vmax.f32 %v1732, 0.0
    %v1765 = vmax.f32 %v1733, 0.0
    %v1766 = vmax.f32 %v1734, 0.0
    %v1767 = vmax.f32 %v1735, 0.0
    %v1768 = vmax.f32 %v1736, 0.0
    %v1769 = vmax.f32 %v1737, 0.0
    %v1770 = vmax.f32 %v1738, 0.0
    %v1771 = vmax.f32 %v1739, 0.0
    %v1772 = vmax.f32 %v1740, 0.0
    %v1773 = vmax.f32 %v1741, 0.0
    %v1774 = vpack.c.bf16 %v1743, %v1742
    %v1775 = vpack.c.bf16 %v1745, %v1744
    %v1776 = vpack.c.bf16 %v1747, %v1746
    %v1777 = vpack.c.bf16 %v1749, %v1748
    %v1778 = vpack.c.bf16 %v1751, %v1750
    %v1779 = vpack.c.bf16 %v1753, %v1752
    %v1780 = vpack.c.bf16 %v1755, %v1754
    %v1781 = vpack.c.bf16 %v1757, %v1756
    %v1782 = vpack.c.bf16 %v1759, %v1758
    %v1783 = vpack.c.bf16 %v1761, %v1760
    %v1784 = vpack.c.bf16 %v1763, %v1762
    %v1785 = vpack.c.bf16 %v1765, %v1764
    %v1786 = vpack.c.bf16 %v1767, %v1766
    %v1787 = vpack.c.bf16 %v1769, %v1768
    %v1788 = vpack.c.bf16 %v1771, %v1770
    %v1789 = vpack.c.bf16 %v1773, %v1772
    %v1806 = vunpack.c.l.b16 %v1774
    %v1807 = vunpack.c.h.b16 %v1774
    %v1808 = vunpack.c.l.b16 %v1775
    %v1809 = vunpack.c.h.b16 %v1775
    %v1810 = vunpack.c.l.b16 %v1776
    %v1811 = vunpack.c.h.b16 %v1776
    %v1812 = vunpack.c.l.b16 %v1777
    %v1813 = vunpack.c.h.b16 %v1777
    %v1814 = vunpack.c.l.b16 %v1778
    %v1815 = vunpack.c.h.b16 %v1778
    %v1816 = vunpack.c.l.b16 %v1779
    %v1817 = vunpack.c.h.b16 %v1779
    %v1818 = vunpack.c.l.b16 %v1780
    %v1819 = vunpack.c.h.b16 %v1780
    %v1820 = vunpack.c.l.b16 %v1781
    %v1821 = vunpack.c.h.b16 %v1781
    %v1822 = vunpack.c.l.b16 %v1782
    %v1823 = vunpack.c.h.b16 %v1782
    %v1824 = vunpack.c.l.b16 %v1783
    %v1825 = vunpack.c.h.b16 %v1783
    %v1826 = vunpack.c.l.b16 %v1784
    %v1827 = vunpack.c.h.b16 %v1784
    %v1828 = vunpack.c.l.b16 %v1785
    %v1829 = vunpack.c.h.b16 %v1785
    %v1830 = vunpack.c.l.b16 %v1786
    %v1831 = vunpack.c.h.b16 %v1786
    %v1832 = vunpack.c.l.b16 %v1787
    %v1833 = vunpack.c.h.b16 %v1787
    %v1834 = vunpack.c.l.b16 %v1788
    %v1835 = vunpack.c.h.b16 %v1788
    %v1836 = vunpack.c.l.b16 %v1789
    %v1837 = vunpack.c.h.b16 %v1789
    %v1838 = vpack.c.b16 %v1806, %v1806
    %v1839 = vpack.c.b16 %v1807, %v1807
    %v1840 = vpack.c.b16 %v1808, %v1808
    %v1841 = vpack.c.b16 %v1809, %v1809
    %v1842 = vpack.c.b16 %v1810, %v1810
    %v1843 = vpack.c.b16 %v1811, %v1811
    %v1844 = vpack.c.b16 %v1812, %v1812
    %v1845 = vpack.c.b16 %v1813, %v1813
    %v1846 = vpack.c.b16 %v1814, %v1814
    %v1847 = vpack.c.b16 %v1815, %v1815
    %v1848 = vpack.c.b16 %v1816, %v1816
    %v1849 = vpack.c.b16 %v1817, %v1817
    %v1850 = vpack.c.b16 %v1818, %v1818
    %v1851 = vpack.c.b16 %v1819, %v1819
    %v1852 = vpack.c.b16 %v1820, %v1820
    %v1853 = vpack.c.b16 %v1821, %v1821
    %v1854 = vpack.c.b16 %v1822, %v1822
    %v1855 = vpack.c.b16 %v1823, %v1823
    %v1856 = vpack.c.b16 %v1824, %v1824
    %v1857 = vpack.c.b16 %v1825, %v1825
    %v1858 = vpack.c.b16 %v1826, %v1826
    %v1859 = vpack.c.b16 %v1827, %v1827
    %v1860 = vpack.c.b16 %v1828, %v1828
    %v1861 = vpack.c.b16 %v1829, %v1829
    %v1862 = vpack.c.b16 %v1830, %v1830
    %v1863 = vpack.c.b16 %v1831, %v1831
    %v1864 = vpack.c.b16 %v1832, %v1832
    %v1865 = vpack.c.b16 %v1833, %v1833
    %v1866 = vpack.c.b16 %v1834, %v1834
    %v1867 = vpack.c.b16 %v1835, %v1835
    %v1868 = vpack.c.b16 %v1836, %v1836
    %v1869 = vpack.c.b16 %v1837, %v1837
    %1902 = vst [vmem:[#allocation2] sm:$0xf] %v1838
    %1903 = vst [vmem:[#allocation2 + $0x4] sm:$0xf] %v1839
    %1904 = vst [vmem:[#allocation2 + $0x8] sm:$0xf] %v1840
    %1905 = vst [vmem:[#allocation2 + $0xc] sm:$0xf] %v1841
    %1906 = vst [vmem:[#allocation2 + $0x10] sm:$0xf] %v1842
    %1907 = vst [vmem:[#allocation2 + $0x14] sm:$0xf] %v1843
    %1908 = vst [vmem:[#allocation2 + $0x18] sm:$0xf] %v1844
    %1909 = vst [vmem:[#allocation2 + $0x1c] sm:$0xf] %v1845
    %1910 = vst [vmem:[#allocation2 + $0x20] sm:$0xf] %v1846
    %1911 = vst [vmem:[#allocation2 + $0x24] sm:$0xf] %v1847
    %1912 = vst [vmem:[#allocation2 + $0x28] sm:$0xf] %v1848
    %1913 = vst [vmem:[#allocation2 + $0x2c] sm:$0xf] %v1849
    %1914 = vst [vmem:[#allocation2 + $0x30] sm:$0xf] %v1850
    %1915 = vst [vmem:[#allocation2 + $0x34] sm:$0xf] %v1851
    %1916 = vst [vmem:[#allocation2 + $0x38] sm:$0xf] %v1852
    %1917 = vst [vmem:[#allocation2 + $0x3c] sm:$0xf] %v1853
    %1918 = vst [vmem:[#allocation2 + $0x40] sm:$0xf] %v1854
    %1919 = vst [vmem:[#allocation2 + $0x44] sm:$0xf] %v1855
    %1920 = vst [vmem:[#allocation2 + $0x48] sm:$0xf] %v1856
    %1921 = vst [vmem:[#allocation2 + $0x4c] sm:$0xf] %v1857
    %1922 = vst [vmem:[#allocation2 + $0x50] sm:$0xf] %v1858
    %1923 = vst [vmem:[#allocation2 + $0x54] sm:$0xf] %v1859
    %1924 = vst [vmem:[#allocation2 + $0x58] sm:$0xf] %v1860
    %1925 = vst [vmem:[#allocation2 + $0x5c] sm:$0xf] %v1861
    %1926 = vst [vmem:[#allocation2 + $0x60] sm:$0xf] %v1862
    %1927 = vst [vmem:[#allocation2 + $0x64] sm:$0xf] %v1863
    %1928 = vst [vmem:[#allocation2 + $0x68] sm:$0xf] %v1864
    %1929 = vst [vmem:[#allocation2 + $0x6c] sm:$0xf] %v1865
    %1930 = vst [vmem:[#allocation2 + $0x70] sm:$0xf] %v1866
    %1931 = vst [vmem:[#allocation2 + $0x74] sm:$0xf] %v1867
    %1932 = vst [vmem:[#allocation2 + $0x78] sm:$0xf] %v1868
    %1933 = vst [vmem:[#allocation2 + $0x7c] sm:$0x3] %v1869
    %v1934 = vld [vmem:[#allocation2] sm:$0xf]
    %v1935 = vld [vmem:[#allocation2 + $0x4] sm:$0xf]
    %v1936 = vld [vmem:[#allocation2 + $0x8] sm:$0xf]
    %v1937 = vld [vmem:[#allocation2 + $0xc] sm:$0xf]
    %v1938 = vld [vmem:[#allocation2 + $0x10] sm:$0xf]
    %v1939 = vld [vmem:[#allocation2 + $0x14] sm:$0xf]
    %v1940 = vld [vmem:[#allocation2 + $0x18] sm:$0xf]
    %v1941 = vld [vmem:[#allocation2 + $0x1c] sm:$0xf]
    %v1942 = vld [vmem:[#allocation2 + $0x20] sm:$0xf]
    %v1943 = vld [vmem:[#allocation2 + $0x24] sm:$0xf]
    %v1944 = vld [vmem:[#allocation2 + $0x28] sm:$0xf]
    %v1945 = vld [vmem:[#allocation2 + $0x2c] sm:$0xf]
    %v1946 = vld [vmem:[#allocation2 + $0x30] sm:$0xf]
    %v1947 = vld [vmem:[#allocation2 + $0x34] sm:$0xf]
    %v1948 = vld [vmem:[#allocation2 + $0x38] sm:$0xf]
    %v1949 = vld [vmem:[#allocation2 + $0x3c] sm:$0xf]
    %v1950 = vld [vmem:[#allocation2 + $0x40] sm:$0xf]
    %v1951 = vld [vmem:[#allocation2 + $0x44] sm:$0xf]
    %v1952 = vld [vmem:[#allocation2 + $0x48] sm:$0xf]
    %v1953 = vld [vmem:[#allocation2 + $0x4c] sm:$0xf]
    %v1954 = vld [vmem:[#allocation2 + $0x50] sm:$0xf]
    %v1955 = vld [vmem:[#allocation2 + $0x54] sm:$0xf]
    %v1956 = vld [vmem:[#allocation2 + $0x58] sm:$0xf]
    %v1957 = vld [vmem:[#allocation2 + $0x5c] sm:$0xf]
    %v1958 = vld [vmem:[#allocation2 + $0x60] sm:$0xf]
    %v1959 = vld [vmem:[#allocation2 + $0x64] sm:$0xf]
    %v1960 = vld [vmem:[#allocation2 + $0x68] sm:$0xf]
    %v1961 = vld [vmem:[#allocation2 + $0x6c] sm:$0xf]
    %v1962 = vld [vmem:[#allocation2 + $0x70] sm:$0xf]
    %v1963 = vld [vmem:[#allocation2 + $0x74] sm:$0xf]
    %v1964 = vld [vmem:[#allocation2 + $0x78] sm:$0xf]
    %v1965 = vld [vmem:[#allocation5] sm:$0xf]
    %v1966 = vld [vmem:[#allocation5 + $0x4] sm:$0xf]
    %v1967 = vld [vmem:[#allocation5 + $0x8] sm:$0xf]
    %v1968 = vld [vmem:[#allocation5 + $0xc] sm:$0xf]
    %v1969 = vld [vmem:[#allocation5 + $0x10] sm:$0xf]
    %v1970 = vld [vmem:[#allocation5 + $0x14] sm:$0xf]
    %v1971 = vld [vmem:[#allocation5 + $0x18] sm:$0xf]
    %v1972 = vld [vmem:[#allocation5 + $0x1c] sm:$0xf]
    %v1973 = vld [vmem:[#allocation5 + $0x20] sm:$0xf]
    %v1974 = vld [vmem:[#allocation5 + $0x24] sm:$0xf]
    %v1975 = vld [vmem:[#allocation5 + $0x28] sm:$0xf]
    %v1976 = vld [vmem:[#allocation5 + $0x2c] sm:$0xf]
    %v1977 = vld [vmem:[#allocation5 + $0x30] sm:$0xf]
    %v1978 = vld [vmem:[#allocation5 + $0x34] sm:$0xf]
    %v1979 = vld [vmem:[#allocation5 + $0x38] sm:$0xf]
    %v1980 = vld [vmem:[#allocation5 + $0x3c] sm:$0xf]
    %v1981 = vld [vmem:[#allocation2 + $0x7c] sm:$0x1]
    %s1982 = scalar_lea.vmem [#allocation5], 64
    %v1983 = vld [vmem:[%s1982] sm:$0xf]
    %v1984 = vld [vmem:[%s1982 + $0x4] sm:$0xf]
    %v1985 = vld [vmem:[%s1982 + $0x8] sm:$0xf]
    %v1986 = vld [vmem:[%s1982 + $0xc] sm:$0xf]
    %v1987 = vld [vmem:[%s1982 + $0x10] sm:$0xf]
    %v1988 = vld [vmem:[%s1982 + $0x14] sm:$0xf]
    %v1989 = vld [vmem:[%s1982 + $0x18] sm:$0xf]
    %v1990 = vld [vmem:[%s1982 + $0x1c] sm:$0xf]
    %v1991 = vld [vmem:[%s1982 + $0x20] sm:$0xf]
    %v1992 = vld [vmem:[%s1982 + $0x24] sm:$0xf]
    %v1993 = vld [vmem:[%s1982 + $0x28] sm:$0xf]
    %v1994 = vld [vmem:[%s1982 + $0x2c] sm:$0xf]
    %v1995 = vld [vmem:[%s1982 + $0x30] sm:$0xf]
    %v1996 = vld [vmem:[%s1982 + $0x34] sm:$0xf]
    %v1997 = vld [vmem:[%s1982 + $0x38] sm:$0xf]
    %v1998 = vld [vmem:[%s1982 + $0x3c] sm:$0xf]
    %v2031 = vunpack.c.l.b16 %v1934
    %v2032 = vunpack.c.l.b16 %v1935
    %v2033 = vunpack.c.l.b16 %v1936
    %v2034 = vunpack.c.l.b16 %v1937
    %v2035 = vunpack.c.l.b16 %v1938
    %v2036 = vunpack.c.l.b16 %v1939
    %v2037 = vunpack.c.l.b16 %v1940
    %v2038 = vunpack.c.l.b16 %v1941
    %v2039 = vunpack.c.l.b16 %v1942
    %v2040 = vunpack.c.l.b16 %v1943
    %v2041 = vunpack.c.l.b16 %v1944
    %v2042 = vunpack.c.l.b16 %v1945
    %v2043 = vunpack.c.l.b16 %v1946
    %v2044 = vunpack.c.l.b16 %v1947
    %v2045 = vunpack.c.l.b16 %v1948
    %v2046 = vunpack.c.l.b16 %v1949
    %v2047 = vunpack.c.l.b16 %v1950
    %v2048 = vunpack.c.l.b16 %v1951
    %v2049 = vunpack.c.l.b16 %v1952
    %v2050 = vunpack.c.l.b16 %v1953
    %v2051 = vunpack.c.l.b16 %v1954
    %v2052 = vunpack.c.l.b16 %v1955
    %v2053 = vunpack.c.l.b16 %v1956
    %v2054 = vunpack.c.l.b16 %v1957
    %v2055 = vunpack.c.l.b16 %v1958
    %v2056 = vunpack.c.l.b16 %v1959
    %v2057 = vunpack.c.l.b16 %v1960
    %v2058 = vunpack.c.l.b16 %v1961
    %v2059 = vunpack.c.l.b16 %v1962
    %v2060 = vunpack.c.l.b16 %v1963
    %v2061 = vunpack.c.l.b16 %v1964
    %v2062 = vunpack.c.l.b16 %v1981
    %v2063 = vpack.c.b16 %v2032, %v2031
    %v2064 = vpack.c.b16 %v2034, %v2033
    %v2065 = vpack.c.b16 %v2036, %v2035
    %v2066 = vpack.c.b16 %v2038, %v2037
    %v2067 = vpack.c.b16 %v2040, %v2039
    %v2068 = vpack.c.b16 %v2042, %v2041
    %v2069 = vpack.c.b16 %v2044, %v2043
    %v2070 = vpack.c.b16 %v2046, %v2045
    %v2071 = vpack.c.b16 %v2048, %v2047
    %v2072 = vpack.c.b16 %v2050, %v2049
    %v2073 = vpack.c.b16 %v2052, %v2051
    %v2074 = vpack.c.b16 %v2054, %v2053
    %v2075 = vpack.c.b16 %v2056, %v2055
    %v2076 = vpack.c.b16 %v2058, %v2057
    %v2077 = vpack.c.b16 %v2060, %v2059
    %v2078 = vpack.c.b16 %v2062, %v2061
    %v2080 = vshrl.u32 %v2063, 16
    %v2082 = vshll.u32 %v2063, 16
    %v2084 = vrot.slane %v2082, 1
    %v2085 = vor.u32 %v2080, %v2084
    %v2087 = vshll.u32 %v2064, 16
    %v2089 = vrot.slane %v2087, 1
    %v2090 = vsel %vm189, %v2085, %v2089
    %v2091 = vshrl.u32 %v2064, 16
    %v2093 = vor.u32 %v2091, %v2089
    %v2095 = vshll.u32 %v2065, 16
    %v2097 = vrot.slane %v2095, 1
    %v2098 = vsel %vm189, %v2093, %v2097
    %v2099 = vshrl.u32 %v2065, 16
    %v2101 = vor.u32 %v2099, %v2097
    %v2103 = vshll.u32 %v2066, 16
    %v2105 = vrot.slane %v2103, 1
    %v2106 = vsel %vm189, %v2101, %v2105
    %v2107 = vshrl.u32 %v2066, 16
    %v2109 = vor.u32 %v2107, %v2105
    %v2111 = vshll.u32 %v2067, 16
    %v2113 = vrot.slane %v2111, 1
    %v2114 = vsel %vm189, %v2109, %v2113
    %v2115 = vshrl.u32 %v2067, 16
    %v2117 = vor.u32 %v2115, %v2113
    %v2119 = vshll.u32 %v2068, 16
    %v2121 = vrot.slane %v2119, 1
    %v2122 = vsel %vm189, %v2117, %v2121
    %v2123 = vshrl.u32 %v2068, 16
    %v2125 = vor.u32 %v2123, %v2121
    %v2127 = vshll.u32 %v2069, 16
    %v2129 = vrot.slane %v2127, 1
    %v2130 = vsel %vm189, %v2125, %v2129
    %v2131 = vshrl.u32 %v2069, 16
    %v2133 = vor.u32 %v2131, %v2129
    %v2135 = vshll.u32 %v2070, 16
    %v2137 = vrot.slane %v2135, 1
    %v2138 = vsel %vm189, %v2133, %v2137
    %v2139 = vshrl.u32 %v2070, 16
    %v2141 = vor.u32 %v2139, %v2137
    %v2143 = vshll.u32 %v2071, 16
    %v2145 = vrot.slane %v2143, 1
    %v2146 = vsel %vm189, %v2141, %v2145
    %v2147 = vshrl.u32 %v2071, 16
    %v2149 = vor.u32 %v2147, %v2145
    %v2151 = vshll.u32 %v2072, 16
    %v2153 = vrot.slane %v2151, 1
    %v2154 = vsel %vm189, %v2149, %v2153
    %v2155 = vshrl.u32 %v2072, 16
    %v2157 = vor.u32 %v2155, %v2153
    %v2159 = vshll.u32 %v2073, 16
    %v2161 = vrot.slane %v2159, 1
    %v2162 = vsel %vm189, %v2157, %v2161
    %v2163 = vshrl.u32 %v2073, 16
    %v2165 = vor.u32 %v2163, %v2161
    %v2167 = vshll.u32 %v2074, 16
    %v2169 = vrot.slane %v2167, 1
    %v2170 = vsel %vm189, %v2165, %v2169
    %v2171 = vshrl.u32 %v2074, 16
    %v2173 = vor.u32 %v2171, %v2169
    %v2175 = vshll.u32 %v2075, 16
    %v2177 = vrot.slane %v2175, 1
    %v2178 = vsel %vm189, %v2173, %v2177
    %v2179 = vshrl.u32 %v2075, 16
    %v2181 = vor.u32 %v2179, %v2177
    %v2183 = vshll.u32 %v2076, 16
    %v2185 = vrot.slane %v2183, 1
    %v2186 = vsel %vm189, %v2181, %v2185
    %v2187 = vshrl.u32 %v2076, 16
    %v2189 = vor.u32 %v2187, %v2185
    %v2191 = vshll.u32 %v2077, 16
    %v2193 = vrot.slane %v2191, 1
    %v2194 = vsel %vm189, %v2189, %v2193
    %v2195 = vshrl.u32 %v2077, 16
    %v2197 = vor.u32 %v2195, %v2193
    %v2199 = vshll.u32 %v2078, 16
    %v2201 = vrot.slane %v2199, 1
    %v2202 = vsel %vm189, %v2197, %v2201
    %v2203 = vshrl.u32 %v2078, 16
    %v2205 = vor.u32 %v2203, %v2201
    %v2238 = vunpack.c.l.b16 %v1983
    %v2239 = vunpack.c.l.b16 %v1984
    %v2240 = vunpack.c.l.b16 %v1985
    %v2241 = vunpack.c.l.b16 %v1986
    %v2242 = vunpack.c.l.b16 %v1987
    %v2243 = vunpack.c.l.b16 %v1988
    %v2244 = vunpack.c.l.b16 %v1989
    %v2245 = vunpack.c.l.b16 %v1990
    %v2246 = vunpack.c.l.b16 %v1991
    %v2247 = vunpack.c.l.b16 %v1992
    %v2248 = vunpack.c.l.b16 %v1993
    %v2249 = vunpack.c.l.b16 %v1994
    %v2250 = vunpack.c.l.b16 %v1995
    %v2251 = vunpack.c.l.b16 %v1996
    %v2252 = vunpack.c.l.b16 %v1997
    %v2253 = vunpack.c.l.b16 %v1998
    %v2254 = vpack.c.b16 %v2239, %v2238
    %v2255 = vpack.c.b16 %v2241, %v2240
    %v2256 = vpack.c.b16 %v2243, %v2242
    %v2257 = vpack.c.b16 %v2245, %v2244
    %v2258 = vpack.c.b16 %v2247, %v2246
    %v2259 = vpack.c.b16 %v2249, %v2248
    %v2260 = vpack.c.b16 %v2251, %v2250
    %v2261 = vpack.c.b16 %v2253, %v2252
    %2270 = vmatprep.subr.bf16.mxu0 0
    %2271 = vmatpush1.bf16.msra.mxu0 %v2254
    %2272 = vmatprep.subr.bf16.mxu0 0
    %2273 = vmatpush1.bf16.msra.mxu0 %v2255
    %2274 = vmatprep.subr.bf16.mxu0 0
    %2275 = vmatpush1.bf16.msra.mxu0 %v2256
    %2276 = vmatprep.subr.bf16.mxu0 0
    %2277 = vmatpush1.bf16.msra.mxu0 %v2257
    %2278 = vmatprep.subr.bf16.mxu0 0
    %2279 = vmatpush1.bf16.msra.mxu0 %v2258
    %2280 = vmatprep.subr.bf16.mxu0 0
    %2281 = vmatpush1.bf16.msra.mxu0 %v2259
    %2282 = vmatprep.subr.bf16.mxu0 0
    %2283 = vmatpush1.bf16.msra.mxu0 %v2260
    %2284 = vmatprep.subr.bf16.mxu0 0
    %2285 = vmatpush1.bf16.msra.mxu0 %v2261
    %2286 = vmatprep.subr.bf16.mxu0 0
    %2287 = vmatpush1.bf16.msra.mxu0 0
    %2288 = vmatprep.subr.bf16.mxu0 0
    %2289 = vmatpush1.bf16.msra.mxu0 0
    %2290 = vmatprep.subr.bf16.mxu0 0
    %2291 = vmatpush1.bf16.msra.mxu0 0
    %2292 = vmatprep.subr.bf16.mxu0 0
    %2293 = vmatpush1.bf16.msra.mxu0 0
    %2294 = vmatprep.subr.bf16.mxu0 0
    %2295 = vmatpush1.bf16.msra.mxu0 0
    %2296 = vmatprep.subr.bf16.mxu0 0
    %2297 = vmatpush1.bf16.msra.mxu0 0
    %2298 = vmatprep.subr.bf16.mxu0 0
    %2299 = vmatpush1.bf16.msra.mxu0 0
    %2300 = vmatprep.subr.bf16.mxu0 0
    %2301 = vmatpush1.bf16.msra.mxu0 0
    %2302 = vmatprep.mubr.bf16.mxu0 0
    %2303 = vmatmul.mubr.bf16.gmra.mrb[0].mxu0 %v2090
    %v2304 = vpop.f32.mrb[0].mxu0
    %v2305 = vadd.f32 0.0, %v2304
    %v2306 = vpop.f32.mrb[0].mxu0
    %v2307 = vpop.f32.mrb[0].mxu0
    %v2308 = vadd.f32 0.0, %v2307
    %v2309 = vpop.f32.mrb[0].mxu0
    %2310 = vmatprep.mubr.bf16.mxu0 0
    %2311 = vmatmul.mubr.bf16.gmra.mrb[0].mxu0 %v2098
    %v2312 = vpop.f32.mrb[0].mxu0
    %v2313 = vadd.f32 0.0, %v2312
    %v2314 = vpop.f32.mrb[0].mxu0
    %v2315 = vpop.f32.mrb[0].mxu0
    %v2316 = vpop.f32.mrb[0].mxu0
    %2317 = vmatprep.mubr.bf16.mxu0 0
    %2318 = vmatmul.mubr.bf16.gmra.mrb[0].mxu0 %v2106
    %v2319 = vpop.f32.mrb[0].mxu0
    %v2320 = vadd.f32 0.0, %v2319
    %v2321 = vpop.f32.mrb[0].mxu0
    %v2322 = vpop.f32.mrb[0].mxu0
    %v2323 = vadd.f32 0.0, %v2322
    %v2324 = vpop.f32.mrb[0].mxu0
    %2325 = vmatprep.mubr.bf16.mxu0 0
    %2326 = vmatmul.mubr.bf16.gmra.mrb[0].mxu0 %v2114
    %v2327 = vpop.f32.mrb[0].mxu0
    %v2328 = vadd.f32 0.0, %v2327
    %v2329 = vpop.f32.mrb[0].mxu0
    %v2330 = vpop.f32.mrb[0].mxu0
    %v2331 = vpop.f32.mrb[0].mxu0
    %2332 = vmatprep.mubr.bf16.mxu0 0
    %2333 = vmatmul.mubr.bf16.gmra.mrb[0].mxu0 %v2122
    %v2334 = vpop.f32.mrb[0].mxu0
    %v2335 = vadd.f32 0.0, %v2334
    %v2336 = vpop.f32.mrb[0].mxu0
    %v2337 = vpop.f32.mrb[0].mxu0
    %v2338 = vadd.f32 0.0, %v2337
    %v2339 = vpop.f32.mrb[0].mxu0
    %2340 = vmatprep.mubr.bf16.mxu0 0
    %2341 = vmatmul.mubr.bf16.gmra.mrb[0].mxu0 %v2130
    %v2342 = vpop.f32.mrb[0].mxu0
    %v2343 = vadd.f32 0.0, %v2342
    %v2344 = vpop.f32.mrb[0].mxu0
    %v2345 = vpop.f32.mrb[0].mxu0
    %v2346 = vpop.f32.mrb[0].mxu0
    %2347 = vmatprep.mubr.bf16.mxu0 0
    %2348 = vmatmul.mubr.bf16.gmra.mrb[0].mxu0 %v2138
    %v2349 = vpop.f32.mrb[0].mxu0
    %v2350 = vadd.f32 0.0, %v2349
    %v2351 = vpop.f32.mrb[0].mxu0
    %v2352 = vpop.f32.mrb[0].mxu0
    %v2353 = vadd.f32 0.0, %v2352
    %v2354 = vpop.f32.mrb[0].mxu0
    %2355 = vmatprep.mubr.bf16.mxu0 0
    %2356 = vmatmul.mubr.bf16.gmra.mrb[0].mxu0 %v2146
    %v2357 = vpop.f32.mrb[0].mxu0
    %v2358 = vadd.f32 0.0, %v2357
    %v2359 = vpop.f32.mrb[0].mxu0
    %v2360 = vpop.f32.mrb[0].mxu0
    %v2361 = vpop.f32.mrb[0].mxu0
    %2362 = vmatprep.mubr.bf16.mxu0 0
    %2363 = vmatmul.mubr.bf16.gmra.mrb[0].mxu0 %v2154
    %v2364 = vpop.f32.mrb[0].mxu0
    %v2365 = vadd.f32 0.0, %v2364
    %v2366 = vpop.f32.mrb[0].mxu0
    %v2367 = vpop.f32.mrb[0].mxu0
    %v2368 = vadd.f32 0.0, %v2367
    %v2369 = vpop.f32.mrb[0].mxu0
    %2370 = vmatprep.mubr.bf16.mxu0 0
    %2371 = vmatmul.mubr.bf16.gmra.mrb[0].mxu0 %v2162
    %v2372 = vpop.f32.mrb[0].mxu0
    %v2373 = vadd.f32 0.0, %v2372
    %v2374 = vpop.f32.mrb[0].mxu0
    %v2375 = vpop.f32.mrb[0].mxu0
    %v2376 = vpop.f32.mrb[0].mxu0
    %2377 = vmatprep.mubr.bf16.mxu0 0
    %2378 = vmatmul.mubr.bf16.gmra.mrb[0].mxu0 %v2170
    %v2379 = vpop.f32.mrb[0].mxu0
    %v2380 = vadd.f32 0.0, %v2379
    %v2381 = vpop.f32.mrb[0].mxu0
    %v2382 = vpop.f32.mrb[0].mxu0
    %v2383 = vadd.f32 0.0, %v2382
    %v2384 = vpop.f32.mrb[0].mxu0
    %2385 = vmatprep.mubr.bf16.mxu0 0
    %2386 = vmatmul.mubr.bf16.gmra.mrb[0].mxu0 %v2178
    %v2387 = vpop.f32.mrb[0].mxu0
    %v2388 = vadd.f32 0.0, %v2387
    %v2389 = vpop.f32.mrb[0].mxu0
    %v2390 = vpop.f32.mrb[0].mxu0
    %v2391 = vpop.f32.mrb[0].mxu0
    %2392 = vmatprep.mubr.bf16.mxu0 0
    %2393 = vmatmul.mubr.bf16.gmra.mrb[0].mxu0 %v2186
    %v2394 = vpop.f32.mrb[0].mxu0
    %v2395 = vadd.f32 0.0, %v2394
    %v2396 = vpop.f32.mrb[0].mxu0
    %v2397 = vpop.f32.mrb[0].mxu0
    %v2398 = vadd.f32 0.0, %v2397
    %v2399 = vpop.f32.mrb[0].mxu0
    %2400 = vmatprep.mubr.bf16.mxu0 0
    %2401 = vmatmul.mubr.bf16.gmra.mrb[0].mxu0 %v2194
    %v2402 = vpop.f32.mrb[0].mxu0
    %v2403 = vadd.f32 0.0, %v2402
    %v2404 = vpop.f32.mrb[0].mxu0
    %v2405 = vpop.f32.mrb[0].mxu0
    %v2406 = vpop.f32.mrb[0].mxu0
    %2407 = vmatprep.mubr.bf16.mxu0 0
    %2408 = vmatmul.mubr.bf16.gmra.mrb[0].mxu0 %v2202
    %v2409 = vpop.f32.mrb[0].mxu0
    %v2410 = vadd.f32 0.0, %v2409
    %v2411 = vpop.f32.mrb[0].mxu0
    %v2412 = vpop.f32.mrb[0].mxu0
    %v2413 = vadd.f32 0.0, %v2412
    %v2414 = vpop.f32.mrb[0].mxu0
    %2415 = vmatprep.mubr.bf16.mxu0 0
    %2416 = vmatmul.mubr.bf16.gmra.mrb[0].mxu0 %v2205
    %v2417 = vpop.f32.mrb[0].mxu0
    %v2418 = vadd.f32 0.0, %v2417
    %v2419 = vpop.f32.mrb[0].mxu0
    %v2420 = vpop.f32.mrb[0].mxu0
    %v2421 = vpop.f32.mrb[0].mxu0
    %2422 = vdwg.mxu0
    %v2423 = vpack.c.b16 %v2061, %v2061
    %v2456 = vunpack.c.l.b16 %v1965
    %v2457 = vunpack.c.l.b16 %v1966
    %v2458 = vunpack.c.l.b16 %v1967
    %v2459 = vunpack.c.l.b16 %v1968
    %v2460 = vunpack.c.l.b16 %v1969
    %v2461 = vunpack.c.l.b16 %v1970
    %v2462 = vunpack.c.l.b16 %v1971
    %v2463 = vunpack.c.l.b16 %v1972
    %v2464 = vunpack.c.l.b16 %v1973
    %v2465 = vunpack.c.l.b16 %v1974
    %v2466 = vunpack.c.l.b16 %v1975
    %v2467 = vunpack.c.l.b16 %v1976
    %v2468 = vunpack.c.l.b16 %v1977
    %v2469 = vunpack.c.l.b16 %v1978
    %v2470 = vunpack.c.l.b16 %v1979
    %v2471 = vunpack.c.l.b16 %v1980
    %v2472 = vpack.c.b16 %v2457, %v2456
    %v2473 = vpack.c.b16 %v2459, %v2458
    %v2474 = vpack.c.b16 %v2461, %v2460
    %v2475 = vpack.c.b16 %v2463, %v2462
    %v2476 = vpack.c.b16 %v2465, %v2464
    %v2477 = vpack.c.b16 %v2467, %v2466
    %v2478 = vpack.c.b16 %v2469, %v2468
    %v2479 = vpack.c.b16 %v2471, %v2470
    %2488 = vmatprep.subr.bf16.mxu0 0
    %2489 = vmatpush1.bf16.msra.mxu0 %v2472
    %2490 = vmatprep.subr.bf16.mxu0 0
    %2491 = vmatpush1.bf16.msra.mxu0 %v2473
    %2492 = vmatprep.subr.bf16.mxu0 0
    %2493 = vmatpush1.bf16.msra.mxu0 %v2474
    %2494 = vmatprep.subr.bf16.mxu0 0
    %2495 = vmatpush1.bf16.msra.mxu0 %v2475
    %2496 = vmatprep.subr.bf16.mxu0 0
    %2497 = vmatpush1.bf16.msra.mxu0 %v2476
    %2498 = vmatprep.subr.bf16.mxu0 0
    %2499 = vmatpush1.bf16.msra.mxu0 %v2477
    %2500 = vmatprep.subr.bf16.mxu0 0
    %2501 = vmatpush1.bf16.msra.mxu0 %v2478
    %2502 = vmatprep.subr.bf16.mxu0 0
    %2503 = vmatpush1.bf16.msra.mxu0 %v2479
    %2504 = vmatprep.subr.bf16.mxu0 0
    %2505 = vmatpush1.bf16.msra.mxu0 0
    %2506 = vmatprep.subr.bf16.mxu0 0
    %2507 = vmatpush1.bf16.msra.mxu0 0
    %2508 = vmatprep.subr.bf16.mxu0 0
    %2509 = vmatpush1.bf16.msra.mxu0 0
    %2510 = vmatprep.subr.bf16.mxu0 0
    %2511 = vmatpush1.bf16.msra.mxu0 0
    %2512 = vmatprep.subr.bf16.mxu0 0
    %2513 = vmatpush1.bf16.msra.mxu0 0
    %2514 = vmatprep.subr.bf16.mxu0 0
    %2515 = vmatpush1.bf16.msra.mxu0 0
    %2516 = vmatprep.subr.bf16.mxu0 0
    %2517 = vmatpush1.bf16.msra.mxu0 0
    %2518 = vmatprep.subr.bf16.mxu0 0
    %2519 = vmatpush1.bf16.msra.mxu0 0
    %2520 = vmatprep.mubr.bf16.mxu0 0
    %2521 = vmatmul.mubr.bf16.gmra.mrb[0].mxu0 %v2063
    %v2522 = vpop.f32.mrb[0].mxu0
    %v2523 = vadd.f32 %v2305, %v2522
    %v2524 = vpop.f32.mrb[0].mxu0
    %v2525 = vpop.f32.mrb[0].mxu0
    %v2526 = vadd.f32 %v2308, %v2525
    %v2527 = vpop.f32.mrb[0].mxu0
    %2528 = vmatprep.mubr.bf16.mxu0 0
    %2529 = vmatmul.mubr.bf16.gmra.mrb[0].mxu0 %v2064
    %v2530 = vpop.f32.mrb[0].mxu0
    %v2531 = vadd.f32 %v2313, %v2530
    %v2532 = vpop.f32.mrb[0].mxu0
    %v2533 = vpop.f32.mrb[0].mxu0
    %v2534 = vpop.f32.mrb[0].mxu0
    %2535 = vmatprep.mubr.bf16.mxu0 0
    %2536 = vmatmul.mubr.bf16.gmra.mrb[0].mxu0 %v2065
    %v2537 = vpop.f32.mrb[0].mxu0
    %v2538 = vadd.f32 %v2320, %v2537
    %v2539 = vpop.f32.mrb[0].mxu0
    %v2540 = vpop.f32.mrb[0].mxu0
    %v2541 = vadd.f32 %v2323, %v2540
    %v2542 = vpop.f32.mrb[0].mxu0
    %2543 = vmatprep.mubr.bf16.mxu0 0
    %2544 = vmatmul.mubr.bf16.gmra.mrb[0].mxu0 %v2066
    %v2545 = vpop.f32.mrb[0].mxu0
    %v2546 = vadd.f32 %v2328, %v2545
    %v2547 = vpop.f32.mrb[0].mxu0
    %v2548 = vpop.f32.mrb[0].mxu0
    %v2549 = vpop.f32.mrb[0].mxu0
    %2550 = vmatprep.mubr.bf16.mxu0 0
    %2551 = vmatmul.mubr.bf16.gmra.mrb[0].mxu0 %v2067
    %v2552 = vpop.f32.mrb[0].mxu0
    %v2553 = vadd.f32 %v2335, %v2552
    %v2554 = vpop.f32.mrb[0].mxu0
    %v2555 = vpop.f32.mrb[0].mxu0
    %v2556 = vadd.f32 %v2338, %v2555
    %v2557 = vpop.f32.mrb[0].mxu0
    %2558 = vmatprep.mubr.bf16.mxu0 0
    %2559 = vmatmul.mubr.bf16.gmra.mrb[0].mxu0 %v2068
    %v2560 = vpop.f32.mrb[0].mxu0
    %v2561 = vadd.f32 %v2343, %v2560
    %v2562 = vpop.f32.mrb[0].mxu0
    %v2563 = vpop.f32.mrb[0].mxu0
    %v2564 = vpop.f32.mrb[0].mxu0
    %2565 = vmatprep.mubr.bf16.mxu0 0
    %2566 = vmatmul.mubr.bf16.gmra.mrb[0].mxu0 %v2069
    %v2567 = vpop.f32.mrb[0].mxu0
    %v2568 = vadd.f32 %v2350, %v2567
    %v2569 = vpop.f32.mrb[0].mxu0
    %v2570 = vpop.f32.mrb[0].mxu0
    %v2571 = vadd.f32 %v2353, %v2570
    %v2572 = vpop.f32.mrb[0].mxu0
    %2573 = vmatprep.mubr.bf16.mxu0 0
    %2574 = vmatmul.mubr.bf16.gmra.mrb[0].mxu0 %v2070
    %v2575 = vpop.f32.mrb[0].mxu0
    %v2576 = vadd.f32 %v2358, %v2575
    %v2577 = vpop.f32.mrb[0].mxu0
    %v2578 = vpop.f32.mrb[0].mxu0
    %v2579 = vpop.f32.mrb[0].mxu0
    %2580 = vmatprep.mubr.bf16.mxu0 0
    %2581 = vmatmul.mubr.bf16.gmra.mrb[0].mxu0 %v2071
    %v2582 = vpop.f32.mrb[0].mxu0
    %v2583 = vadd.f32 %v2365, %v2582
    %v2584 = vpop.f32.mrb[0].mxu0
    %v2585 = vpop.f32.mrb[0].mxu0
    %v2586 = vadd.f32 %v2368, %v2585
    %v2587 = vpop.f32.mrb[0].mxu0
    %2588 = vmatprep.mubr.bf16.mxu0 0
    %2589 = vmatmul.mubr.bf16.gmra.mrb[0].mxu0 %v2072
    %v2590 = vpop.f32.mrb[0].mxu0
    %v2591 = vadd.f32 %v2373, %v2590
    %v2592 = vpop.f32.mrb[0].mxu0
    %v2593 = vpop.f32.mrb[0].mxu0
    %v2594 = vpop.f32.mrb[0].mxu0
    %2595 = vmatprep.mubr.bf16.mxu0 0
    %2596 = vmatmul.mubr.bf16.gmra.mrb[0].mxu0 %v2073
    %v2597 = vpop.f32.mrb[0].mxu0
    %v2598 = vadd.f32 %v2380, %v2597
    %v2599 = vpop.f32.mrb[0].mxu0
    %v2600 = vpop.f32.mrb[0].mxu0
    %v2601 = vadd.f32 %v2383, %v2600
    %v2602 = vpop.f32.mrb[0].mxu0
    %2603 = vmatprep.mubr.bf16.mxu0 0
    %2604 = vmatmul.mubr.bf16.gmra.mrb[0].mxu0 %v2074
    %v2605 = vpop.f32.mrb[0].mxu0
    %v2606 = vadd.f32 %v2388, %v2605
    %v2607 = vpop.f32.mrb[0].mxu0
    %v2608 = vpop.f32.mrb[0].mxu0
    %v2609 = vpop.f32.mrb[0].mxu0
    %2610 = vmatprep.mubr.bf16.mxu0 0
    %2611 = vmatmul.mubr.bf16.gmra.mrb[0].mxu0 %v2075
    %v2612 = vpop.f32.mrb[0].mxu0
    %v2613 = vadd.f32 %v2395, %v2612
    %v2614 = vpop.f32.mrb[0].mxu0
    %v2615 = vpop.f32.mrb[0].mxu0
    %v2616 = vadd.f32 %v2398, %v2615
    %v2617 = vpop.f32.mrb[0].mxu0
    %2618 = vmatprep.mubr.bf16.mxu0 0
    %2619 = vmatmul.mubr.bf16.gmra.mrb[0].mxu0 %v2076
    %v2620 = vpop.f32.mrb[0].mxu0
    %v2621 = vadd.f32 %v2403, %v2620
    %v2622 = vpop.f32.mrb[0].mxu0
    %v2623 = vpop.f32.mrb[0].mxu0
    %v2624 = vpop.f32.mrb[0].mxu0
    %2625 = vmatprep.mubr.bf16.mxu0 0
    %2626 = vmatmul.mubr.bf16.gmra.mrb[0].mxu0 %v2077
    %v2627 = vpop.f32.mrb[0].mxu0
    %v2628 = vadd.f32 %v2410, %v2627
    %v2629 = vpop.f32.mrb[0].mxu0
    %v2630 = vpop.f32.mrb[0].mxu0
    %v2631 = vadd.f32 %v2413, %v2630
    %v2632 = vpop.f32.mrb[0].mxu0
    %2633 = vmatprep.mubr.bf16.mxu0 0
    %2634 = vmatmul.mubr.bf16.gmra.mrb[0].mxu0 %v2423
    %v2635 = vpop.f32.mrb[0].mxu0
    %v2636 = vadd.f32 %v2418, %v2635
    %v2637 = vpop.f32.mrb[0].mxu0
    %v2638 = vpop.f32.mrb[0].mxu0
    %v2639 = vpop.f32.mrb[0].mxu0
    %2640 = vdwg.mxu0
    %v2641 = vld [vmem:[#allocation2] sm:$0xe]
    %s2642 = scalar_lea.vmem [#allocation5], 128
    %v2643 = vld [vmem:[%s2642] sm:$0xf]
    %v2644 = vld [vmem:[%s2642 + $0x4] sm:$0xf]
    %v2645 = vld [vmem:[%s2642 + $0x8] sm:$0xf]
    %v2646 = vld [vmem:[%s2642 + $0xc] sm:$0xf]
    %v2647 = vld [vmem:[%s2642 + $0x10] sm:$0xf]
    %v2648 = vld [vmem:[%s2642 + $0x14] sm:$0xf]
    %v2649 = vld [vmem:[%s2642 + $0x18] sm:$0xf]
    %v2650 = vld [vmem:[%s2642 + $0x1c] sm:$0xf]
    %v2651 = vld [vmem:[%s2642 + $0x20] sm:$0xf]
    %v2652 = vld [vmem:[%s2642 + $0x24] sm:$0xf]
    %v2653 = vld [vmem:[%s2642 + $0x28] sm:$0xf]
    %v2654 = vld [vmem:[%s2642 + $0x2c] sm:$0xf]
    %v2655 = vld [vmem:[%s2642 + $0x30] sm:$0xf]
    %v2656 = vld [vmem:[%s2642 + $0x34] sm:$0xf]
    %v2657 = vld [vmem:[%s2642 + $0x38] sm:$0xf]
    %v2658 = vld [vmem:[%s2642 + $0x3c] sm:$0xf]
    %v2660 = vunpack.c.l.b16 %v2641
    %v2661 = vpack.c.b16 %v2032, %v2660
    %v2662 = vrot.slane %v2661, 1
    %v2663 = vrot.slane %v2064, 1
    %v2664 = vsel %vm791, %v2662, %v2663
    %v2665 = vrot.slane %v2065, 1
    %v2666 = vsel %vm791, %v2663, %v2665
    %v2667 = vrot.slane %v2066, 1
    %v2668 = vsel %vm791, %v2665, %v2667
    %v2669 = vrot.slane %v2067, 1
    %v2670 = vsel %vm791, %v2667, %v2669
    %v2671 = vrot.slane %v2068, 1
    %v2672 = vsel %vm791, %v2669, %v2671
    %v2673 = vrot.slane %v2069, 1
    %v2674 = vsel %vm791, %v2671, %v2673
    %v2675 = vrot.slane %v2070, 1
    %v2676 = vsel %vm791, %v2673, %v2675
    %v2677 = vrot.slane %v2071, 1
    %v2678 = vsel %vm791, %v2675, %v2677
    %v2679 = vrot.slane %v2072, 1
    %v2680 = vsel %vm791, %v2677, %v2679
    %v2681 = vrot.slane %v2073, 1
    %v2682 = vsel %vm791, %v2679, %v2681
    %v2683 = vrot.slane %v2074, 1
    %v2684 = vsel %vm791, %v2681, %v2683
    %v2685 = vrot.slane %v2075, 1
    %v2686 = vsel %vm791, %v2683, %v2685
    %v2687 = vrot.slane %v2076, 1
    %v2688 = vsel %vm791, %v2685, %v2687
    %v2689 = vrot.slane %v2077, 1
    %v2690 = vsel %vm791, %v2687, %v2689
    %v2691 = vrot.slane %v2078, 1
    %v2692 = vsel %vm791, %v2689, %v2691
    %v2725 = vunpack.c.l.b16 %v2643
    %v2726 = vunpack.c.l.b16 %v2644
    %v2727 = vunpack.c.l.b16 %v2645
    %v2728 = vunpack.c.l.b16 %v2646
    %v2729 = vunpack.c.l.b16 %v2647
    %v2730 = vunpack.c.l.b16 %v2648
    %v2731 = vunpack.c.l.b16 %v2649
    %v2732 = vunpack.c.l.b16 %v2650
    %v2733 = vunpack.c.l.b16 %v2651
    %v2734 = vunpack.c.l.b16 %v2652
    %v2735 = vunpack.c.l.b16 %v2653
    %v2736 = vunpack.c.l.b16 %v2654
    %v2737 = vunpack.c.l.b16 %v2655
    %v2738 = vunpack.c.l.b16 %v2656
    %v2739 = vunpack.c.l.b16 %v2657
    %v2740 = vunpack.c.l.b16 %v2658
    %v2741 = vpack.c.b16 %v2726, %v2725
    %v2742 = vpack.c.b16 %v2728, %v2727
    %v2743 = vpack.c.b16 %v2730, %v2729
    %v2744 = vpack.c.b16 %v2732, %v2731
    %v2745 = vpack.c.b16 %v2734, %v2733
    %v2746 = vpack.c.b16 %v2736, %v2735
    %v2747 = vpack.c.b16 %v2738, %v2737
    %v2748 = vpack.c.b16 %v2740, %v2739
    %2757 = vmatprep.subr.bf16.mxu0 0
    %2758 = vmatpush1.bf16.msra.mxu0 %v2741
    %2759 = vmatprep.subr.bf16.mxu0 0
    %2760 = vmatpush1.bf16.msra.mxu0 %v2742
    %2761 = vmatprep.subr.bf16.mxu0 0
    %2762 = vmatpush1.bf16.msra.mxu0 %v2743
    %2763 = vmatprep.subr.bf16.mxu0 0
    %2764 = vmatpush1.bf16.msra.mxu0 %v2744
    %2765 = vmatprep.subr.bf16.mxu0 0
    %2766 = vmatpush1.bf16.msra.mxu0 %v2745
    %2767 = vmatprep.subr.bf16.mxu0 0
    %2768 = vmatpush1.bf16.msra.mxu0 %v2746
    %2769 = vmatprep.subr.bf16.mxu0 0
    %2770 = vmatpush1.bf16.msra.mxu0 %v2747
    %2771 = vmatprep.subr.bf16.mxu0 0
    %2772 = vmatpush1.bf16.msra.mxu0 %v2748
    %2773 = vmatprep.subr.bf16.mxu0 0
    %2774 = vmatpush1.bf16.msra.mxu0 0
    %2775 = vmatprep.subr.bf16.mxu0 0
    %2776 = vmatpush1.bf16.msra.mxu0 0
    %2777 = vmatprep.subr.bf16.mxu0 0
    %2778 = vmatpush1.bf16.msra.mxu0 0
    %2779 = vmatprep.subr.bf16.mxu0 0
    %2780 = vmatpush1.bf16.msra.mxu0 0
    %2781 = vmatprep.subr.bf16.mxu0 0
    %2782 = vmatpush1.bf16.msra.mxu0 0
    %2783 = vmatprep.subr.bf16.mxu0 0
    %2784 = vmatpush1.bf16.msra.mxu0 0
    %2785 = vmatprep.subr.bf16.mxu0 0
    %2786 = vmatpush1.bf16.msra.mxu0 0
    %2787 = vmatprep.subr.bf16.mxu0 0
    %2788 = vmatpush1.bf16.msra.mxu0 0
    %2789 = vmatprep.mubr.bf16.mxu0 0
    %2790 = vmatmul.mubr.bf16.gmra.mrb[0].mxu0 %v2664
    %v2791 = vpop.f32.mrb[0].mxu0
    %v2792 = vadd.f32 0.0, %v2791
    %v2793 = vpop.f32.mrb[0].mxu0
    %v2794 = vpop.f32.mrb[0].mxu0
    %v2795 = vadd.f32 0.0, %v2794
    %v2796 = vpop.f32.mrb[0].mxu0
    %2797 = vmatprep.mubr.bf16.mxu0 0
    %2798 = vmatmul.mubr.bf16.gmra.mrb[0].mxu0 %v2666
    %v2799 = vpop.f32.mrb[0].mxu0
    %v2800 = vadd.f32 0.0, %v2799
    %v2801 = vpop.f32.mrb[0].mxu0
    %v2802 = vpop.f32.mrb[0].mxu0
    %v2803 = vpop.f32.mrb[0].mxu0
    %2804 = vmatprep.mubr.bf16.mxu0 0
    %2805 = vmatmul.mubr.bf16.gmra.mrb[0].mxu0 %v2668
    %v2806 = vpop.f32.mrb[0].mxu0
    %v2807 = vadd.f32 0.0, %v2806
    %v2808 = vpop.f32.mrb[0].mxu0
    %v2809 = vpop.f32.mrb[0].mxu0
    %v2810 = vadd.f32 0.0, %v2809
    %v2811 = vpop.f32.mrb[0].mxu0
    %2812 = vmatprep.mubr.bf16.mxu0 0
    %2813 = vmatmul.mubr.bf16.gmra.mrb[0].mxu0 %v2670
    %v2814 = vpop.f32.mrb[0].mxu0
    %v2815 = vadd.f32 0.0, %v2814
    %v2816 = vpop.f32.mrb[0].mxu0
    %v2817 = vpop.f32.mrb[0].mxu0
    %v2818 = vpop.f32.mrb[0].mxu0
    %2819 = vmatprep.mubr.bf16.mxu0 0
    %2820 = vmatmul.mubr.bf16.gmra.mrb[0].mxu0 %v2672
    %v2821 = vpop.f32.mrb[0].mxu0
    %v2822 = vadd.f32 0.0, %v2821
    %v2823 = vpop.f32.mrb[0].mxu0
    %v2824 = vpop.f32.mrb[0].mxu0
    %v2825 = vadd.f32 0.0, %v2824
    %v2826 = vpop.f32.mrb[0].mxu0
    %2827 = vmatprep.mubr.bf16.mxu0 0
    %2828 = vmatmul.mubr.bf16.gmra.mrb[0].mxu0 %v2674
    %v2829 = vpop.f32.mrb[0].mxu0
    %v2830 = vadd.f32 0.0, %v2829
    %v2831 = vpop.f32.mrb[0].mxu0
    %v2832 = vpop.f32.mrb[0].mxu0
    %v2833 = vpop.f32.mrb[0].mxu0
    %2834 = vmatprep.mubr.bf16.mxu0 0
    %2835 = vmatmul.mubr.bf16.gmra.mrb[0].mxu0 %v2676
    %v2836 = vpop.f32.mrb[0].mxu0
    %v2837 = vadd.f32 0.0, %v2836
    %v2838 = vpop.f32.mrb[0].mxu0
    %v2839 = vpop.f32.mrb[0].mxu0
    %v2840 = vadd.f32 0.0, %v2839
    %v2841 = vpop.f32.mrb[0].mxu0
    %2842 = vmatprep.mubr.bf16.mxu0 0
    %2843 = vmatmul.mubr.bf16.gmra.mrb[0].mxu0 %v2678
    %v2844 = vpop.f32.mrb[0].mxu0
    %v2845 = vadd.f32 0.0, %v2844
    %v2846 = vpop.f32.mrb[0].mxu0
    %v2847 = vpop.f32.mrb[0].mxu0
    %v2848 = vpop.f32.mrb[0].mxu0
    %2849 = vmatprep.mubr.bf16.mxu0 0
    %2850 = vmatmul.mubr.bf16.gmra.mrb[0].mxu0 %v2680
    %v2851 = vpop.f32.mrb[0].mxu0
    %v2852 = vadd.f32 0.0, %v2851
    %v2853 = vpop.f32.mrb[0].mxu0
    %v2854 = vpop.f32.mrb[0].mxu0
    %v2855 = vadd.f32 0.0, %v2854
    %v2856 = vpop.f32.mrb[0].mxu0
    %2857 = vmatprep.mubr.bf16.mxu0 0
    %2858 = vmatmul.mubr.bf16.gmra.mrb[0].mxu0 %v2682
    %v2859 = vpop.f32.mrb[0].mxu0
    %v2860 = vadd.f32 0.0, %v2859
    %v2861 = vpop.f32.mrb[0].mxu0
    %v2862 = vpop.f32.mrb[0].mxu0
    %v2863 = vpop.f32.mrb[0].mxu0
    %2864 = vmatprep.mubr.bf16.mxu0 0
    %2865 = vmatmul.mubr.bf16.gmra.mrb[0].mxu0 %v2684
    %v2866 = vpop.f32.mrb[0].mxu0
    %v2867 = vadd.f32 0.0, %v2866
    %v2868 = vpop.f32.mrb[0].mxu0
    %v2869 = vpop.f32.mrb[0].mxu0
    %v2870 = vadd.f32 0.0, %v2869
    %v2871 = vpop.f32.mrb[0].mxu0
    %2872 = vmatprep.mubr.bf16.mxu0 0
    %2873 = vmatmul.mubr.bf16.gmra.mrb[0].mxu0 %v2686
    %v2874 = vpop.f32.mrb[0].mxu0
    %v2875 = vadd.f32 0.0, %v2874
    %v2876 = vpop.f32.mrb[0].mxu0
    %v2877 = vpop.f32.mrb[0].mxu0
    %v2878 = vpop.f32.mrb[0].mxu0
    %2879 = vmatprep.mubr.bf16.mxu0 0
    %2880 = vmatmul.mubr.bf16.gmra.mrb[0].mxu0 %v2688
    %v2881 = vpop.f32.mrb[0].mxu0
    %v2882 = vadd.f32 0.0, %v2881
    %v2883 = vpop.f32.mrb[0].mxu0
    %v2884 = vpop.f32.mrb[0].mxu0
    %v2885 = vadd.f32 0.0, %v2884
    %v2886 = vpop.f32.mrb[0].mxu0
    %2887 = vmatprep.mubr.bf16.mxu0 0
    %2888 = vmatmul.mubr.bf16.gmra.mrb[0].mxu0 %v2690
    %v2889 = vpop.f32.mrb[0].mxu0
    %v2890 = vadd.f32 0.0, %v2889
    %v2891 = vpop.f32.mrb[0].mxu0
    %v2892 = vpop.f32.mrb[0].mxu0
    %v2893 = vpop.f32.mrb[0].mxu0
    %2894 = vmatprep.mubr.bf16.mxu0 0
    %2895 = vmatmul.mubr.bf16.gmra.mrb[0].mxu0 %v2692
    %v2896 = vpop.f32.mrb[0].mxu0
    %v2897 = vadd.f32 0.0, %v2896
    %v2898 = vpop.f32.mrb[0].mxu0
    %v2899 = vpop.f32.mrb[0].mxu0
    %v2900 = vadd.f32 0.0, %v2899
    %v2901 = vpop.f32.mrb[0].mxu0
    %2902 = vmatprep.mubr.bf16.mxu0 0
    %2903 = vmatmul.mubr.bf16.gmra.mrb[0].mxu0 %v2691
    %v2904 = vpop.f32.mrb[0].mxu0
    %v2905 = vadd.f32 0.0, %v2904
    %v2906 = vpop.f32.mrb[0].mxu0
    %v2907 = vpop.f32.mrb[0].mxu0
    %v2908 = vpop.f32.mrb[0].mxu0
    %2909 = vdwg.mxu0
    %v2910 = vadd.f32 %v2523, %v2792
    %v2911 = vadd.f32 %v2526, %v2795
    %v2912 = vadd.f32 %v2531, %v2800
    %v2913 = vadd.f32 %v2538, %v2807
    %v2914 = vadd.f32 %v2541, %v2810
    %v2915 = vadd.f32 %v2546, %v2815
    %v2916 = vadd.f32 %v2553, %v2822
    %v2917 = vadd.f32 %v2556, %v2825
    %v2918 = vadd.f32 %v2561, %v2830
    %v2919 = vadd.f32 %v2568, %v2837
    %v2920 = vadd.f32 %v2571, %v2840
    %v2921 = vadd.f32 %v2576, %v2845
    %v2922 = vadd.f32 %v2583, %v2852
    %v2923 = vadd.f32 %v2586, %v2855
    %v2924 = vadd.f32 %v2591, %v2860
    %v2925 = vadd.f32 %v2598, %v2867
    %v2926 = vadd.f32 %v2601, %v2870
    %v2927 = vadd.f32 %v2606, %v2875
    %v2928 = vadd.f32 %v2613, %v2882
    %v2929 = vadd.f32 %v2616, %v2885
    %v2930 = vadd.f32 %v2621, %v2890
    %v2931 = vadd.f32 %v2628, %v2897
    %v2932 = vadd.f32 %v2631, %v2900
    %v2933 = vadd.f32 %v2636, %v2905
    %v2934 = vld [vmem:[#allocation2 + $0x7c] sm:$0x3]
    %s2935 = scalar_lea.vmem [#allocation5], 192
    %v2936 = vld [vmem:[%s2935] sm:$0xf]
    %v2937 = vld [vmem:[%s2935 + $0x4] sm:$0xf]
    %v2938 = vld [vmem:[%s2935 + $0x8] sm:$0xf]
    %v2939 = vld [vmem:[%s2935 + $0xc] sm:$0xf]
    %v2940 = vld [vmem:[%s2935 + $0x10] sm:$0xf]
    %v2941 = vld [vmem:[%s2935 + $0x14] sm:$0xf]
    %v2942 = vld [vmem:[%s2935 + $0x18] sm:$0xf]
    %v2943 = vld [vmem:[%s2935 + $0x1c] sm:$0xf]
    %v2944 = vld [vmem:[%s2935 + $0x20] sm:$0xf]
    %v2945 = vld [vmem:[%s2935 + $0x24] sm:$0xf]
    %v2946 = vld [vmem:[%s2935 + $0x28] sm:$0xf]
    %v2947 = vld [vmem:[%s2935 + $0x2c] sm:$0xf]
    %v2948 = vld [vmem:[%s2935 + $0x30] sm:$0xf]
    %v2949 = vld [vmem:[%s2935 + $0x34] sm:$0xf]
    %v2950 = vld [vmem:[%s2935 + $0x38] sm:$0xf]
    %v2951 = vld [vmem:[%s2935 + $0x3c] sm:$0xf]
    %v2953 = vunpack.c.l.b16 %v2934
    %v2954 = vpack.c.b16 %v2953, %v2061
    %v2956 = vshrl.u32 %v2661, 16
    %v2958 = vrot.slane %v2956, 1
    %v2959 = vshll.u32 %v2661, 16
    %v2961 = vrot.slane %v2959, 2
    %v2962 = vor.u32 %v2958, %v2961
    %v2963 = vrot.slane %v2091, 1
    %v2964 = vrot.slane %v2087, 2
    %v2965 = vor.u32 %v2963, %v2964
    %v2966 = vsel %vm1101, %v2962, %v2965
    %v2967 = vrot.slane %v2099, 1
    %v2968 = vrot.slane %v2095, 2
    %v2969 = vor.u32 %v2967, %v2968
    %v2970 = vsel %vm1101, %v2965, %v2969
    %v2971 = vrot.slane %v2107, 1
    %v2972 = vrot.slane %v2103, 2
    %v2973 = vor.u32 %v2971, %v2972
    %v2974 = vsel %vm1101, %v2969, %v2973
    %v2975 = vrot.slane %v2115, 1
    %v2976 = vrot.slane %v2111, 2
    %v2977 = vor.u32 %v2975, %v2976
    %v2978 = vsel %vm1101, %v2973, %v2977
    %v2979 = vrot.slane %v2123, 1
    %v2980 = vrot.slane %v2119, 2
    %v2981 = vor.u32 %v2979, %v2980
    %v2982 = vsel %vm1101, %v2977, %v2981
    %v2983 = vrot.slane %v2131, 1
    %v2984 = vrot.slane %v2127, 2
    %v2985 = vor.u32 %v2983, %v2984
    %v2986 = vsel %vm1101, %v2981, %v2985
    %v2987 = vrot.slane %v2139, 1
    %v2988 = vrot.slane %v2135, 2
    %v2989 = vor.u32 %v2987, %v2988
    %v2990 = vsel %vm1101, %v2985, %v2989
    %v2991 = vrot.slane %v2147, 1
    %v2992 = vrot.slane %v2143, 2
    %v2993 = vor.u32 %v2991, %v2992
    %v2994 = vsel %vm1101, %v2989, %v2993
    %v2995 = vrot.slane %v2155, 1
    %v2996 = vrot.slane %v2151, 2
    %v2997 = vor.u32 %v2995, %v2996
    %v2998 = vsel %vm1101, %v2993, %v2997
    %v2999 = vrot.slane %v2163, 1
    %v3000 = vrot.slane %v2159, 2
    %v3001 = vor.u32 %v2999, %v3000
    %v3002 = vsel %vm1101, %v2997, %v3001
    %v3003 = vrot.slane %v2171, 1
    %v3004 = vrot.slane %v2167, 2
    %v3005 = vor.u32 %v3003, %v3004
    %v3006 = vsel %vm1101, %v3001, %v3005
    %v3007 = vrot.slane %v2179, 1
    %v3008 = vrot.slane %v2175, 2
    %v3009 = vor.u32 %v3007, %v3008
    %v3010 = vsel %vm1101, %v3005, %v3009
    %v3011 = vrot.slane %v2187, 1
    %v3012 = vrot.slane %v2183, 2
    %v3013 = vor.u32 %v3011, %v3012
    %v3014 = vsel %vm1101, %v3009, %v3013
    %v3015 = vrot.slane %v2195, 1
    %v3016 = vrot.slane %v2191, 2
    %v3017 = vor.u32 %v3015, %v3016
    %v3018 = vsel %vm1101, %v3013, %v3017
    %v3020 = vshrl.u32 %v2954, 16
    %v3022 = vrot.slane %v3020, 1
    %v3023 = vshll.u32 %v2954, 16
    %v3025 = vrot.slane %v3023, 2
    %v3026 = vor.u32 %v3022, %v3025
    %v3027 = vsel %vm1101, %v3017, %v3026
    %v3060 = vunpack.c.l.b16 %v2936
    %v3061 = vunpack.c.l.b16 %v2937
    %v3062 = vunpack.c.l.b16 %v2938
    %v3063 = vunpack.c.l.b16 %v2939
    %v3064 = vunpack.c.l.b16 %v2940
    %v3065 = vunpack.c.l.b16 %v2941
    %v3066 = vunpack.c.l.b16 %v2942
    %v3067 = vunpack.c.l.b16 %v2943
    %v3068 = vunpack.c.l.b16 %v2944
    %v3069 = vunpack.c.l.b16 %v2945
    %v3070 = vunpack.c.l.b16 %v2946
    %v3071 = vunpack.c.l.b16 %v2947
    %v3072 = vunpack.c.l.b16 %v2948
    %v3073 = vunpack.c.l.b16 %v2949
    %v3074 = vunpack.c.l.b16 %v2950
    %v3075 = vunpack.c.l.b16 %v2951
    %v3076 = vpack.c.b16 %v3061, %v3060
    %v3077 = vpack.c.b16 %v3063, %v3062
    %v3078 = vpack.c.b16 %v3065, %v3064
    %v3079 = vpack.c.b16 %v3067, %v3066
    %v3080 = vpack.c.b16 %v3069, %v3068
    %v3081 = vpack.c.b16 %v3071, %v3070
    %v3082 = vpack.c.b16 %v3073, %v3072
    %v3083 = vpack.c.b16 %v3075, %v3074
    %3092 = vmatprep.subr.bf16.mxu0 0
    %3093 = vmatpush1.bf16.msra.mxu0 %v3076
    %3094 = vmatprep.subr.bf16.mxu0 0
    %3095 = vmatpush1.bf16.msra.mxu0 %v3077
    %3096 = vmatprep.subr.bf16.mxu0 0
    %3097 = vmatpush1.bf16.msra.mxu0 %v3078
    %3098 = vmatprep.subr.bf16.mxu0 0
    %3099 = vmatpush1.bf16.msra.mxu0 %v3079
    %3100 = vmatprep.subr.bf16.mxu0 0
    %3101 = vmatpush1.bf16.msra.mxu0 %v3080
    %3102 = vmatprep.subr.bf16.mxu0 0
    %3103 = vmatpush1.bf16.msra.mxu0 %v3081
    %3104 = vmatprep.subr.bf16.mxu0 0
    %3105 = vmatpush1.bf16.msra.mxu0 %v3082
    %3106 = vmatprep.subr.bf16.mxu0 0
    %3107 = vmatpush1.bf16.msra.mxu0 %v3083
    %3108 = vmatprep.subr.bf16.mxu0 0
    %3109 = vmatpush1.bf16.msra.mxu0 0
    %3110 = vmatprep.subr.bf16.mxu0 0
    %3111 = vmatpush1.bf16.msra.mxu0 0
    %3112 = vmatprep.subr.bf16.mxu0 0
    %3113 = vmatpush1.bf16.msra.mxu0 0
    %3114 = vmatprep.subr.bf16.mxu0 0
    %3115 = vmatpush1.bf16.msra.mxu0 0
    %3116 = vmatprep.subr.bf16.mxu0 0
    %3117 = vmatpush1.bf16.msra.mxu0 0
    %3118 = vmatprep.subr.bf16.mxu0 0
    %3119 = vmatpush1.bf16.msra.mxu0 0
    %3120 = vmatprep.subr.bf16.mxu0 0
    %3121 = vmatpush1.bf16.msra.mxu0 0
    %3122 = vmatprep.subr.bf16.mxu0 0
    %3123 = vmatpush1.bf16.msra.mxu0 0
    %3124 = vmatprep.mubr.bf16.mxu0 0
    %3125 = vmatmul.mubr.bf16.gmra.mrb[0].mxu0 %v2966
    %v3126 = vpop.f32.mrb[0].mxu0
    %v3127 = vadd.f32 0.0, %v3126
    %v3128 = vpop.f32.mrb[0].mxu0
    %v3129 = vpop.f32.mrb[0].mxu0
    %v3130 = vadd.f32 0.0, %v3129
    %v3131 = vpop.f32.mrb[0].mxu0
    %3132 = vmatprep.mubr.bf16.mxu0 0
    %3133 = vmatmul.mubr.bf16.gmra.mrb[0].mxu0 %v2970
    %v3134 = vpop.f32.mrb[0].mxu0
    %v3135 = vadd.f32 0.0, %v3134
    %v3136 = vpop.f32.mrb[0].mxu0
    %v3137 = vpop.f32.mrb[0].mxu0
    %v3138 = vpop.f32.mrb[0].mxu0
    %3139 = vmatprep.mubr.bf16.mxu0 0
    %3140 = vmatmul.mubr.bf16.gmra.mrb[0].mxu0 %v2974
    %v3141 = vpop.f32.mrb[0].mxu0
    %v3142 = vadd.f32 0.0, %v3141
    %v3143 = vpop.f32.mrb[0].mxu0
    %v3144 = vpop.f32.mrb[0].mxu0
    %v3145 = vadd.f32 0.0, %v3144
    %v3146 = vpop.f32.mrb[0].mxu0
    %3147 = vmatprep.mubr.bf16.mxu0 0
    %3148 = vmatmul.mubr.bf16.gmra.mrb[0].mxu0 %v2978
    %v3149 = vpop.f32.mrb[0].mxu0
    %v3150 = vadd.f32 0.0, %v3149
    %v3151 = vpop.f32.mrb[0].mxu0
    %v3152 = vpop.f32.mrb[0].mxu0
    %v3153 = vpop.f32.mrb[0].mxu0
    %3154 = vmatprep.mubr.bf16.mxu0 0
    %3155 = vmatmul.mubr.bf16.gmra.mrb[0].mxu0 %v2982
    %v3156 = vpop.f32.mrb[0].mxu0
    %v3157 = vadd.f32 0.0, %v3156
    %v3158 = vpop.f32.mrb[0].mxu0
    %v3159 = vpop.f32.mrb[0].mxu0
    %v3160 = vadd.f32 0.0, %v3159
    %v3161 = vpop.f32.mrb[0].mxu0
    %3162 = vmatprep.mubr.bf16.mxu0 0
    %3163 = vmatmul.mubr.bf16.gmra.mrb[0].mxu0 %v2986
    %v3164 = vpop.f32.mrb[0].mxu0
    %v3165 = vadd.f32 0.0, %v3164
    %v3166 = vpop.f32.mrb[0].mxu0
    %v3167 = vpop.f32.mrb[0].mxu0
    %v3168 = vpop.f32.mrb[0].mxu0
    %3169 = vmatprep.mubr.bf16.mxu0 0
    %3170 = vmatmul.mubr.bf16.gmra.mrb[0].mxu0 %v2990
    %v3171 = vpop.f32.mrb[0].mxu0
    %v3172 = vadd.f32 0.0, %v3171
    %v3173 = vpop.f32.mrb[0].mxu0
    %v3174 = vpop.f32.mrb[0].mxu0
    %v3175 = vadd.f32 0.0, %v3174
    %v3176 = vpop.f32.mrb[0].mxu0
    %3177 = vmatprep.mubr.bf16.mxu0 0
    %3178 = vmatmul.mubr.bf16.gmra.mrb[0].mxu0 %v2994
    %v3179 = vpop.f32.mrb[0].mxu0
    %v3180 = vadd.f32 0.0, %v3179
    %v3181 = vpop.f32.mrb[0].mxu0
    %v3182 = vpop.f32.mrb[0].mxu0
    %v3183 = vpop.f32.mrb[0].mxu0
    %3184 = vmatprep.mubr.bf16.mxu0 0
    %3185 = vmatmul.mubr.bf16.gmra.mrb[0].mxu0 %v2998
    %v3186 = vpop.f32.mrb[0].mxu0
    %v3187 = vadd.f32 0.0, %v3186
    %v3188 = vpop.f32.mrb[0].mxu0
    %v3189 = vpop.f32.mrb[0].mxu0
    %v3190 = vadd.f32 0.0, %v3189
    %v3191 = vpop.f32.mrb[0].mxu0
    %3192 = vmatprep.mubr.bf16.mxu0 0
    %3193 = vmatmul.mubr.bf16.gmra.mrb[0].mxu0 %v3002
    %v3194 = vpop.f32.mrb[0].mxu0
    %v3195 = vadd.f32 0.0, %v3194
    %v3196 = vpop.f32.mrb[0].mxu0
    %v3197 = vpop.f32.mrb[0].mxu0
    %v3198 = vpop.f32.mrb[0].mxu0
    %3199 = vmatprep.mubr.bf16.mxu0 0
    %3200 = vmatmul.mubr.bf16.gmra.mrb[0].mxu0 %v3006
    %v3201 = vpop.f32.mrb[0].mxu0
    %v3202 = vadd.f32 0.0, %v3201
    %v3203 = vpop.f32.mrb[0].mxu0
    %v3204 = vpop.f32.mrb[0].mxu0
    %v3205 = vadd.f32 0.0, %v3204
    %v3206 = vpop.f32.mrb[0].mxu0
    %3207 = vmatprep.mubr.bf16.mxu0 0
    %3208 = vmatmul.mubr.bf16.gmra.mrb[0].mxu0 %v3010
    %v3209 = vpop.f32.mrb[0].mxu0
    %v3210 = vadd.f32 0.0, %v3209
    %v3211 = vpop.f32.mrb[0].mxu0
    %v3212 = vpop.f32.mrb[0].mxu0
    %v3213 = vpop.f32.mrb[0].mxu0
    %3214 = vmatprep.mubr.bf16.mxu0 0
    %3215 = vmatmul.mubr.bf16.gmra.mrb[0].mxu0 %v3014
    %v3216 = vpop.f32.mrb[0].mxu0
    %v3217 = vadd.f32 0.0, %v3216
    %v3218 = vpop.f32.mrb[0].mxu0
    %v3219 = vpop.f32.mrb[0].mxu0
    %v3220 = vadd.f32 0.0, %v3219
    %v3221 = vpop.f32.mrb[0].mxu0
    %3222 = vmatprep.mubr.bf16.mxu0 0
    %3223 = vmatmul.mubr.bf16.gmra.mrb[0].mxu0 %v3018
    %v3224 = vpop.f32.mrb[0].mxu0
    %v3225 = vadd.f32 0.0, %v3224
    %v3226 = vpop.f32.mrb[0].mxu0
    %v3227 = vpop.f32.mrb[0].mxu0
    %v3228 = vpop.f32.mrb[0].mxu0
    %3229 = vmatprep.mubr.bf16.mxu0 0
    %3230 = vmatmul.mubr.bf16.gmra.mrb[0].mxu0 %v3027
    %v3231 = vpop.f32.mrb[0].mxu0
    %v3232 = vadd.f32 0.0, %v3231
    %v3233 = vpop.f32.mrb[0].mxu0
    %v3234 = vpop.f32.mrb[0].mxu0
    %v3235 = vadd.f32 0.0, %v3234
    %v3236 = vpop.f32.mrb[0].mxu0
    %3237 = vmatprep.mubr.bf16.mxu0 0
    %3238 = vmatmul.mubr.bf16.gmra.mrb[0].mxu0 %v3026
    %v3239 = vpop.f32.mrb[0].mxu0
    %v3240 = vadd.f32 0.0, %v3239
    %v3241 = vpop.f32.mrb[0].mxu0
    %v3242 = vpop.f32.mrb[0].mxu0
    %v3243 = vpop.f32.mrb[0].mxu0
    %3244 = vdwg.mxu0
    %v3245 = vadd.f32 %v2910, %v3127
    %v3246 = vadd.f32 %v2911, %v3130
    %v3247 = vadd.f32 %v2912, %v3135
    %v3248 = vadd.f32 %v2913, %v3142
    %v3249 = vadd.f32 %v2914, %v3145
    %v3250 = vadd.f32 %v2915, %v3150
    %v3251 = vadd.f32 %v2916, %v3157
    %v3252 = vadd.f32 %v2917, %v3160
    %v3253 = vadd.f32 %v2918, %v3165
    %v3254 = vadd.f32 %v2919, %v3172
    %v3255 = vadd.f32 %v2920, %v3175
    %v3256 = vadd.f32 %v2921, %v3180
    %v3257 = vadd.f32 %v2922, %v3187
    %v3258 = vadd.f32 %v2923, %v3190
    %v3259 = vadd.f32 %v2924, %v3195
    %v3260 = vadd.f32 %v2925, %v3202
    %v3261 = vadd.f32 %v2926, %v3205
    %v3262 = vadd.f32 %v2927, %v3210
    %v3263 = vadd.f32 %v2928, %v3217
    %v3264 = vadd.f32 %v2929, %v3220
    %v3265 = vadd.f32 %v2930, %v3225
    %v3266 = vadd.f32 %v2931, %v3232
    %v3267 = vadd.f32 %v2932, %v3235
    %v3268 = vadd.f32 %v2933, %v3240
    %v3269 = vld [vmem:[#allocation2] sm:$0xc]
    %s3270 = scalar_lea.vmem [#allocation5], 256
    %v3271 = vld [vmem:[%s3270] sm:$0xf]
    %v3272 = vld [vmem:[%s3270 + $0x4] sm:$0xf]
    %v3273 = vld [vmem:[%s3270 + $0x8] sm:$0xf]
    %v3274 = vld [vmem:[%s3270 + $0xc] sm:$0xf]
    %v3275 = vld [vmem:[%s3270 + $0x10] sm:$0xf]
    %v3276 = vld [vmem:[%s3270 + $0x14] sm:$0xf]
    %v3277 = vld [vmem:[%s3270 + $0x18] sm:$0xf]
    %v3278 = vld [vmem:[%s3270 + $0x1c] sm:$0xf]
    %v3279 = vld [vmem:[%s3270 + $0x20] sm:$0xf]
    %v3280 = vld [vmem:[%s3270 + $0x24] sm:$0xf]
    %v3281 = vld [vmem:[%s3270 + $0x28] sm:$0xf]
    %v3282 = vld [vmem:[%s3270 + $0x2c] sm:$0xf]
    %v3283 = vld [vmem:[%s3270 + $0x30] sm:$0xf]
    %v3284 = vld [vmem:[%s3270 + $0x34] sm:$0xf]
    %v3285 = vld [vmem:[%s3270 + $0x38] sm:$0xf]
    %v3286 = vld [vmem:[%s3270 + $0x3c] sm:$0xf]
    %v3288 = vunpack.c.l.b16 %v3269
    %v3289 = vpack.c.b16 %v2032, %v3288
    %v3290 = vrot.slane %v3289, 2
    %v3291 = vrot.slane %v2064, 2
    %v3292 = vsel %vm1453, %v3290, %v3291
    %v3293 = vrot.slane %v2065, 2
    %v3294 = vsel %vm1453, %v3291, %v3293
    %v3295 = vrot.slane %v2066, 2
    %v3296 = vsel %vm1453, %v3293, %v3295
    %v3297 = vrot.slane %v2067, 2
    %v3298 = vsel %vm1453, %v3295, %v3297
    %v3299 = vrot.slane %v2068, 2
    %v3300 = vsel %vm1453, %v3297, %v3299
    %v3301 = vrot.slane %v2069, 2
    %v3302 = vsel %vm1453, %v3299, %v3301
    %v3303 = vrot.slane %v2070, 2
    %v3304 = vsel %vm1453, %v3301, %v3303
    %v3305 = vrot.slane %v2071, 2
    %v3306 = vsel %vm1453, %v3303, %v3305
    %v3307 = vrot.slane %v2072, 2
    %v3308 = vsel %vm1453, %v3305, %v3307
    %v3309 = vrot.slane %v2073, 2
    %v3310 = vsel %vm1453, %v3307, %v3309
    %v3311 = vrot.slane %v2074, 2
    %v3312 = vsel %vm1453, %v3309, %v3311
    %v3313 = vrot.slane %v2075, 2
    %v3314 = vsel %vm1453, %v3311, %v3313
    %v3315 = vrot.slane %v2076, 2
    %v3316 = vsel %vm1453, %v3313, %v3315
    %v3317 = vrot.slane %v2077, 2
    %v3318 = vsel %vm1453, %v3315, %v3317
    %v3319 = vrot.slane %v2954, 2
    %v3320 = vsel %vm1453, %v3317, %v3319
    %v3353 = vunpack.c.l.b16 %v3271
    %v3354 = vunpack.c.l.b16 %v3272
    %v3355 = vunpack.c.l.b16 %v3273
    %v3356 = vunpack.c.l.b16 %v3274
    %v3357 = vunpack.c.l.b16 %v3275
    %v3358 = vunpack.c.l.b16 %v3276
    %v3359 = vunpack.c.l.b16 %v3277
    %v3360 = vunpack.c.l.b16 %v3278
    %v3361 = vunpack.c.l.b16 %v3279
    %v3362 = vunpack.c.l.b16 %v3280
    %v3363 = vunpack.c.l.b16 %v3281
    %v3364 = vunpack.c.l.b16 %v3282
    %v3365 = vunpack.c.l.b16 %v3283
    %v3366 = vunpack.c.l.b16 %v3284
    %v3367 = vunpack.c.l.b16 %v3285
    %v3368 = vunpack.c.l.b16 %v3286
    %v3369 = vpack.c.b16 %v3354, %v3353
    %v3370 = vpack.c.b16 %v3356, %v3355
    %v3371 = vpack.c.b16 %v3358, %v3357
    %v3372 = vpack.c.b16 %v3360, %v3359
    %v3373 = vpack.c.b16 %v3362, %v3361
    %v3374 = vpack.c.b16 %v3364, %v3363
    %v3375 = vpack.c.b16 %v3366, %v3365
    %v3376 = vpack.c.b16 %v3368, %v3367
    %3385 = vmatprep.subr.bf16.mxu0 0
    %3386 = vmatpush1.bf16.msra.mxu0 %v3369
    %3387 = vmatprep.subr.bf16.mxu0 0
    %3388 = vmatpush1.bf16.msra.mxu0 %v3370
    %3389 = vmatprep.subr.bf16.mxu0 0
    %3390 = vmatpush1.bf16.msra.mxu0 %v3371
    %3391 = vmatprep.subr.bf16.mxu0 0
    %3392 = vmatpush1.bf16.msra.mxu0 %v3372
    %3393 = vmatprep.subr.bf16.mxu0 0
    %3394 = vmatpush1.bf16.msra.mxu0 %v3373
    %3395 = vmatprep.subr.bf16.mxu0 0
    %3396 = vmatpush1.bf16.msra.mxu0 %v3374
    %3397 = vmatprep.subr.bf16.mxu0 0
    %3398 = vmatpush1.bf16.msra.mxu0 %v3375
    %3399 = vmatprep.subr.bf16.mxu0 0
    %3400 = vmatpush1.bf16.msra.mxu0 %v3376
    %3401 = vmatprep.subr.bf16.mxu0 0
    %3402 = vmatpush1.bf16.msra.mxu0 0
    %3403 = vmatprep.subr.bf16.mxu0 0
    %3404 = vmatpush1.bf16.msra.mxu0 0
    %3405 = vmatprep.subr.bf16.mxu0 0
    %3406 = vmatpush1.bf16.msra.mxu0 0
    %3407 = vmatprep.subr.bf16.mxu0 0
    %3408 = vmatpush1.bf16.msra.mxu0 0
    %3409 = vmatprep.subr.bf16.mxu0 0
    %3410 = vmatpush1.bf16.msra.mxu0 0
    %3411 = vmatprep.subr.bf16.mxu0 0
    %3412 = vmatpush1.bf16.msra.mxu0 0
    %3413 = vmatprep.subr.bf16.mxu0 0
    %3414 = vmatpush1.bf16.msra.mxu0 0
    %3415 = vmatprep.subr.bf16.mxu0 0
    %3416 = vmatpush1.bf16.msra.mxu0 0
    %3417 = vmatprep.mubr.bf16.mxu0 0
    %3418 = vmatmul.mubr.bf16.gmra.mrb[0].mxu0 %v3292
    %v3419 = vpop.f32.mrb[0].mxu0
    %v3420 = vadd.f32 0.0, %v3419
    %v3421 = vpop.f32.mrb[0].mxu0
    %v3422 = vpop.f32.mrb[0].mxu0
    %v3423 = vadd.f32 0.0, %v3422
    %v3424 = vpop.f32.mrb[0].mxu0
    %3425 = vmatprep.mubr.bf16.mxu0 0
    %3426 = vmatmul.mubr.bf16.gmra.mrb[0].mxu0 %v3294
    %v3427 = vpop.f32.mrb[0].mxu0
    %v3428 = vadd.f32 0.0, %v3427
    %v3429 = vpop.f32.mrb[0].mxu0
    %v3430 = vpop.f32.mrb[0].mxu0
    %v3431 = vpop.f32.mrb[0].mxu0
    %3432 = vmatprep.mubr.bf16.mxu0 0
    %3433 = vmatmul.mubr.bf16.gmra.mrb[0].mxu0 %v3296
    %v3434 = vpop.f32.mrb[0].mxu0
    %v3435 = vadd.f32 0.0, %v3434
    %v3436 = vpop.f32.mrb[0].mxu0
    %v3437 = vpop.f32.mrb[0].mxu0
    %v3438 = vadd.f32 0.0, %v3437
    %v3439 = vpop.f32.mrb[0].mxu0
    %3440 = vmatprep.mubr.bf16.mxu0 0
    %3441 = vmatmul.mubr.bf16.gmra.mrb[0].mxu0 %v3298
    %v3442 = vpop.f32.mrb[0].mxu0
    %v3443 = vadd.f32 0.0, %v3442
    %v3444 = vpop.f32.mrb[0].mxu0
    %v3445 = vpop.f32.mrb[0].mxu0
    %v3446 = vpop.f32.mrb[0].mxu0
    %3447 = vmatprep.mubr.bf16.mxu0 0
    %3448 = vmatmul.mubr.bf16.gmra.mrb[0].mxu0 %v3300
    %v3449 = vpop.f32.mrb[0].mxu0
    %v3450 = vadd.f32 0.0, %v3449
    %v3451 = vpop.f32.mrb[0].mxu0
    %v3452 = vpop.f32.mrb[0].mxu0
    %v3453 = vadd.f32 0.0, %v3452
    %v3454 = vpop.f32.mrb[0].mxu0
    %3455 = vmatprep.mubr.bf16.mxu0 0
    %3456 = vmatmul.mubr.bf16.gmra.mrb[0].mxu0 %v3302
    %v3457 = vpop.f32.mrb[0].mxu0
    %v3458 = vadd.f32 0.0, %v3457
    %v3459 = vpop.f32.mrb[0].mxu0
    %v3460 = vpop.f32.mrb[0].mxu0
    %v3461 = vpop.f32.mrb[0].mxu0
    %3462 = vmatprep.mubr.bf16.mxu0 0
    %3463 = vmatmul.mubr.bf16.gmra.mrb[0].mxu0 %v3304
    %v3464 = vpop.f32.mrb[0].mxu0
    %v3465 = vadd.f32 0.0, %v3464
    %v3466 = vpop.f32.mrb[0].mxu0
    %v3467 = vpop.f32.mrb[0].mxu0
    %v3468 = vadd.f32 0.0, %v3467
    %v3469 = vpop.f32.mrb[0].mxu0
    %3470 = vmatprep.mubr.bf16.mxu0 0
    %3471 = vmatmul.mubr.bf16.gmra.mrb[0].mxu0 %v3306
    %v3472 = vpop.f32.mrb[0].mxu0
    %v3473 = vadd.f32 0.0, %v3472
    %v3474 = vpop.f32.mrb[0].mxu0
    %v3475 = vpop.f32.mrb[0].mxu0
    %v3476 = vpop.f32.mrb[0].mxu0
    %3477 = vmatprep.mubr.bf16.mxu0 0
    %3478 = vmatmul.mubr.bf16.gmra.mrb[0].mxu0 %v3308
    %v3479 = vpop.f32.mrb[0].mxu0
    %v3480 = vadd.f32 0.0, %v3479
    %v3481 = vpop.f32.mrb[0].mxu0
    %v3482 = vpop.f32.mrb[0].mxu0
    %v3483 = vadd.f32 0.0, %v3482
    %v3484 = vpop.f32.mrb[0].mxu0
    %3485 = vmatprep.mubr.bf16.mxu0 0
    %3486 = vmatmul.mubr.bf16.gmra.mrb[0].mxu0 %v3310
    %v3487 = vpop.f32.mrb[0].mxu0
    %v3488 = vadd.f32 0.0, %v3487
    %v3489 = vpop.f32.mrb[0].mxu0
    %v3490 = vpop.f32.mrb[0].mxu0
    %v3491 = vpop.f32.mrb[0].mxu0
    %3492 = vmatprep.mubr.bf16.mxu0 0
    %3493 = vmatmul.mubr.bf16.gmra.mrb[0].mxu0 %v3312
    %v3494 = vpop.f32.mrb[0].mxu0
    %v3495 = vadd.f32 0.0, %v3494
    %v3496 = vpop.f32.mrb[0].mxu0
    %v3497 = vpop.f32.mrb[0].mxu0
    %v3498 = vadd.f32 0.0, %v3497
    %v3499 = vpop.f32.mrb[0].mxu0
    %3500 = vmatprep.mubr.bf16.mxu0 0
    %3501 = vmatmul.mubr.bf16.gmra.mrb[0].mxu0 %v3314
    %v3502 = vpop.f32.mrb[0].mxu0
    %v3503 = vadd.f32 0.0, %v3502
    %v3504 = vpop.f32.mrb[0].mxu0
    %v3505 = vpop.f32.mrb[0].mxu0
    %v3506 = vpop.f32.mrb[0].mxu0
    %3507 = vmatprep.mubr.bf16.mxu0 0
    %3508 = vmatmul.mubr.bf16.gmra.mrb[0].mxu0 %v3316
    %v3509 = vpop.f32.mrb[0].mxu0
    %v3510 = vadd.f32 0.0, %v3509
    %v3511 = vpop.f32.mrb[0].mxu0
    %v3512 = vpop.f32.mrb[0].mxu0
    %v3513 = vadd.f32 0.0, %v3512
    %v3514 = vpop.f32.mrb[0].mxu0
    %3515 = vmatprep.mubr.bf16.mxu0 0
    %3516 = vmatmul.mubr.bf16.gmra.mrb[0].mxu0 %v3318
    %v3517 = vpop.f32.mrb[0].mxu0
    %v3518 = vadd.f32 0.0, %v3517
    %v3519 = vpop.f32.mrb[0].mxu0
    %v3520 = vpop.f32.mrb[0].mxu0
    %v3521 = vpop.f32.mrb[0].mxu0
    %3522 = vmatprep.mubr.bf16.mxu0 0
    %3523 = vmatmul.mubr.bf16.gmra.mrb[0].mxu0 %v3320
    %v3524 = vpop.f32.mrb[0].mxu0
    %v3525 = vadd.f32 0.0, %v3524
    %v3526 = vpop.f32.mrb[0].mxu0
    %v3527 = vpop.f32.mrb[0].mxu0
    %v3528 = vadd.f32 0.0, %v3527
    %v3529 = vpop.f32.mrb[0].mxu0
    %3530 = vmatprep.mubr.bf16.mxu0 0
    %3531 = vmatmul.mubr.bf16.gmra.mrb[0].mxu0 %v3319
    %v3532 = vpop.f32.mrb[0].mxu0
    %v3533 = vadd.f32 0.0, %v3532
    %v3534 = vpop.f32.mrb[0].mxu0
    %v3535 = vpop.f32.mrb[0].mxu0
    %v3536 = vpop.f32.mrb[0].mxu0
    %3537 = vdwg.mxu0
    %v3538 = vadd.f32 %v3245, %v3420
    %v3539 = vadd.f32 %v3246, %v3423
    %v3540 = vadd.f32 %v3247, %v3428
    %v3541 = vadd.f32 %v3248, %v3435
    %v3542 = vadd.f32 %v3249, %v3438
    %v3543 = vadd.f32 %v3250, %v3443
    %v3544 = vadd.f32 %v3251, %v3450
    %v3545 = vadd.f32 %v3252, %v3453
    %v3546 = vadd.f32 %v3253, %v3458
    %v3547 = vadd.f32 %v3254, %v3465
    %v3548 = vadd.f32 %v3255, %v3468
    %v3549 = vadd.f32 %v3256, %v3473
    %v3550 = vadd.f32 %v3257, %v3480
    %v3551 = vadd.f32 %v3258, %v3483
    %v3552 = vadd.f32 %v3259, %v3488
    %v3553 = vadd.f32 %v3260, %v3495
    %v3554 = vadd.f32 %v3261, %v3498
    %v3555 = vadd.f32 %v3262, %v3503
    %v3556 = vadd.f32 %v3263, %v3510
    %v3557 = vadd.f32 %v3264, %v3513
    %v3558 = vadd.f32 %v3265, %v3518
    %v3559 = vadd.f32 %v3266, %v3525
    %v3560 = vadd.f32 %v3267, %v3528
    %v3561 = vadd.f32 %v3268, %v3533
    %v3562 = vmax.f32 %v3538, 0.0
    %v3563 = vmax.f32 %v3539, 0.0
    %v3564 = vmax.f32 %v3540, 0.0
    %v3565 = vmax.f32 %v3541, 0.0
    %v3566 = vmax.f32 %v3542, 0.0
    %v3567 = vmax.f32 %v3543, 0.0
    %v3568 = vmax.f32 %v3544, 0.0
    %v3569 = vmax.f32 %v3545, 0.0
    %v3570 = vmax.f32 %v3546, 0.0
    %v3571 = vmax.f32 %v3547, 0.0
    %v3572 = vmax.f32 %v3548, 0.0
    %v3573 = vmax.f32 %v3549, 0.0
    %v3574 = vmax.f32 %v3550, 0.0
    %v3575 = vmax.f32 %v3551, 0.0
    %v3576 = vmax.f32 %v3552, 0.0
    %v3577 = vmax.f32 %v3553, 0.0
    %v3578 = vmax.f32 %v3554, 0.0
    %v3579 = vmax.f32 %v3555, 0.0
    %v3580 = vmax.f32 %v3556, 0.0
    %v3581 = vmax.f32 %v3557, 0.0
    %v3582 = vmax.f32 %v3558, 0.0
    %v3583 = vmax.f32 %v3559, 0.0
    %v3584 = vmax.f32 %v3560, 0.0
    %v3585 = vmax.f32 %v3561, 0.0
    %v3586 = vpack.c.bf16 %v3563, %v3562
    %v3587 = vpack.c.bf16 %v3564, %v3564
    %v3590 = vunpack.c.l.b16 %v3586
    %v3591 = vunpack.c.h.b16 %v3586
    %v3592 = vunpack.c.l.b16 %v3587
    %v3593 = vpack.c.b16 %v3590, %v3590
    %v3594 = vpack.c.b16 %v3591, %v3591
    %v3595 = vpack.c.b16 %v3592, %v3592
    %3599 = vst [vmem:[%s3] sm:$0xf] %v3593
    %3600 = vst [vmem:[%s3 + $0x4] sm:$0xf] %v3594
    %3601 = vst [vmem:[%s3 + $0x8] sm:$0xf] %v3595
    %v3602 = vpack.c.bf16 %v3566, %v3565
    %v3603 = vpack.c.bf16 %v3567, %v3567
    %v3606 = vunpack.c.l.b16 %v3602
    %v3607 = vunpack.c.h.b16 %v3602
    %v3608 = vunpack.c.l.b16 %v3603
    %v3609 = vpack.c.b16 %v3606, %v3606
    %v3610 = vpack.c.b16 %v3607, %v3607
    %v3611 = vpack.c.b16 %v3608, %v3608
    %s3615 = scalar_lea.vmem %s3, 12
    %3616 = vst [vmem:[%s3615] sm:$0xf] %v3609
    %3617 = vst [vmem:[%s3615 + $0x4] sm:$0xf] %v3610
    %3618 = vst [vmem:[%s3615 + $0x8] sm:$0xf] %v3611
    %v3619 = vpack.c.bf16 %v3569, %v3568
    %v3620 = vpack.c.bf16 %v3570, %v3570
    %v3623 = vunpack.c.l.b16 %v3619
    %v3624 = vunpack.c.h.b16 %v3619
    %v3625 = vunpack.c.l.b16 %v3620
    %v3626 = vpack.c.b16 %v3623, %v3623
    %v3627 = vpack.c.b16 %v3624, %v3624
    %v3628 = vpack.c.b16 %v3625, %v3625
    %s3632 = scalar_lea.vmem %s3, 24
    %3633 = vst [vmem:[%s3632] sm:$0xf] %v3626
    %3634 = vst [vmem:[%s3632 + $0x4] sm:$0xf] %v3627
    %3635 = vst [vmem:[%s3632 + $0x8] sm:$0xf] %v3628
    %v3636 = vpack.c.bf16 %v3572, %v3571
    %v3637 = vpack.c.bf16 %v3573, %v3573
    %v3640 = vunpack.c.l.b16 %v3636
    %v3641 = vunpack.c.h.b16 %v3636
    %v3642 = vunpack.c.l.b16 %v3637
    %v3643 = vpack.c.b16 %v3640, %v3640
    %v3644 = vpack.c.b16 %v3641, %v3641
    %v3645 = vpack.c.b16 %v3642, %v3642
    %s3649 = scalar_lea.vmem %s3, 36
    %3650 = vst [vmem:[%s3649] sm:$0xf] %v3643
    %3651 = vst [vmem:[%s3649 + $0x4] sm:$0xf] %v3644
    %3652 = vst [vmem:[%s3649 + $0x8] sm:$0xf] %v3645
    %v3653 = vpack.c.bf16 %v3575, %v3574
    %v3654 = vpack.c.bf16 %v3576, %v3576
    %v3657 = vunpack.c.l.b16 %v3653
    %v3658 = vunpack.c.h.b16 %v3653
    %v3659 = vunpack.c.l.b16 %v3654
    %v3660 = vpack.c.b16 %v3657, %v3657
    %v3661 = vpack.c.b16 %v3658, %v3658
    %v3662 = vpack.c.b16 %v3659, %v3659
    %s3666 = scalar_lea.vmem %s3, 48
    %3667 = vst [vmem:[%s3666] sm:$0xf] %v3660
    %3668 = vst [vmem:[%s3666 + $0x4] sm:$0xf] %v3661
    %3669 = vst [vmem:[%s3666 + $0x8] sm:$0xf] %v3662
    %v3670 = vpack.c.bf16 %v3578, %v3577
    %v3671 = vpack.c.bf16 %v3579, %v3579
    %v3674 = vunpack.c.l.b16 %v3670
    %v3675 = vunpack.c.h.b16 %v3670
    %v3676 = vunpack.c.l.b16 %v3671
    %v3677 = vpack.c.b16 %v3674, %v3674
    %v3678 = vpack.c.b16 %v3675, %v3675
    %v3679 = vpack.c.b16 %v3676, %v3676
    %s3683 = scalar_lea.vmem %s3, 60
    %3684 = vst [vmem:[%s3683] sm:$0xf] %v3677
    %3685 = vst [vmem:[%s3683 + $0x4] sm:$0xf] %v3678
    %3686 = vst [vmem:[%s3683 + $0x8] sm:$0xf] %v3679
    %v3687 = vpack.c.bf16 %v3581, %v3580
    %v3688 = vpack.c.bf16 %v3582, %v3582
    %v3691 = vunpack.c.l.b16 %v3687
    %v3692 = vunpack.c.h.b16 %v3687
    %v3693 = vunpack.c.l.b16 %v3688
    %v3694 = vpack.c.b16 %v3691, %v3691
    %v3695 = vpack.c.b16 %v3692, %v3692
    %v3696 = vpack.c.b16 %v3693, %v3693
    %s3700 = scalar_lea.vmem %s3, 72
    %3701 = vst [vmem:[%s3700] sm:$0xf] %v3694
    %3702 = vst [vmem:[%s3700 + $0x4] sm:$0xf] %v3695
    %3703 = vst [vmem:[%s3700 + $0x8] sm:$0xf] %v3696
    %v3704 = vpack.c.bf16 %v3584, %v3583
    %v3705 = vpack.c.bf16 %v3585, %v3585
    %v3708 = vunpack.c.l.b16 %v3704
    %v3709 = vunpack.c.h.b16 %v3704
    %v3710 = vunpack.c.l.b16 %v3705
    %v3711 = vpack.c.b16 %v3708, %v3708
    %v3712 = vpack.c.b16 %v3709, %v3709
    %v3713 = vpack.c.b16 %v3710, %v3710
    %s3717 = scalar_lea.vmem %s3, 84
    %3718 = vst [vmem:[%s3717] sm:$0xf] %v3711
    %3719 = vst [vmem:[%s3717 + $0x4] sm:$0xf] %v3712
    %3720 = vst [vmem:[%s3717 + $0x8] sm:$0xf] %v3713
    // Predicated region
    $region22: #{adaptive_conv_net.2} parent=1 // pred_check
      _
    $region23: #{adaptive_conv_net.2} parent=1 // pred_check_branch
      %3722 = sbr.rel (0) target = $region25
    $region24: #{adaptive_conv_net.2} parent=1 // pred_region
      _
    $region25: #{adaptive_conv_net.2} parent=1 // pred_fallthru
      _
    // Predicated region
    $region26: #{adaptive_conv_net.2} parent=1 // pred_check
      _
    $region27: #{adaptive_conv_net.2} parent=1 // pred_check_branch
      %3724 = sbr.rel (0) target = $region29
    $region28: #{adaptive_conv_net.2} parent=1 // pred_region
      _
    $region29: #{adaptive_conv_net.2} parent=1 // pred_fallthru
      _
    %3725 = vsyncpa [#allocation4], 1
    %3726 = vsyncpa [#allocation6], 1

</llo_original>
